<compile_context>
chip_gen: v5e
topology: v5e:2x2
jax: 0.10.0
libtpu: 0.0.40
codegen_flags: <defaults>
</compile_context>

<pallas_src>
import math

import jax
import jax.numpy as jnp
from jax.experimental import pallas as pl
from jax.experimental.pallas import tpu as pltpu

LANE = 128
_VMEM_LIMIT = 32 * 1024 * 1024  # explicit scoped-VMEM budget (safe on v5e/v6e/v7x)


def _round_up(x, m):
    return (x + m - 1) // m * m


# ----------------------------- JAX-side im2col glue ----------------------------- #

def _pooled_im2col(x_nhwc, k, rows_spatial_major):
    """Build the 4 pooled-im2col candidate matrices and stack them on rows.

    For each 2x2 pooling offset (a, b), P_ab[row, (di,dj,ci)] =
        x[n, 2*po + a + di, 2*pw + b + dj, ci]
    rows ordered (n, po, pw) or, if rows_spatial_major, (po, pw, n).
    Returns (concat of the 4 matrices over rows, M, K, Po, Pw).
    """
    Nb, H, W, Cin = x_nhwc.shape
    Po, Pw = (H - k + 1) // 2, (W - k + 1) // 2
    M = Nb * Po * Pw
    K = k * k * Cin
    mats = []
    for a in (0, 1):
        for b in (0, 1):
            cols = []
            for di in range(k):
                for dj in range(k):
                    cols.append(x_nhwc[:, a + di:a + di + 2 * Po:2,
                                       b + dj:b + dj + 2 * Pw:2, :])
            p = jnp.stack(cols, axis=3)                    # (Nb, Po, Pw, k*k, Cin)
            if rows_spatial_major:
                p = jnp.transpose(p, (1, 2, 0, 3, 4))      # rows = (po, pw, n)
            mats.append(p.reshape(M, K))
    return jnp.concatenate(mats, axis=0), M, K, Po, Pw


# ----------------------- stage 1: conv1 + bias + ReLU + pool ---------------------- #

def _conv_pool_kernel(p_ref, w_ref, b_ref, o_ref):
    """relu(max over the 4 stacked pooling candidates of (P @ W) + b)."""
    m = jnp.dot(p_ref[...], w_ref[...], preferred_element_type=jnp.float32)
    M = m.shape[0] // 4
    m = jnp.maximum(jnp.maximum(m[0:M], m[M:2 * M]),
                    jnp.maximum(m[2 * M:3 * M], m[3 * M:]))
    o_ref[...] = jnp.maximum(m + b_ref[...], 0.0).astype(o_ref.dtype)


def conv1_pool_stage(x_nhwc, w_oihw, bias, k=5):
    Nb = x_nhwc.shape[0]
    Cout = w_oihw.shape[0]
    Npad = _round_up(Cout, LANE)                    # lane-dense output stores

    pcat, M, K, Po, Pw = _pooled_im2col(x_nhwc.astype(jnp.bfloat16), k,
                                        rows_spatial_major=False)
    w_mat = jnp.transpose(w_oihw, (2, 3, 1, 0)).reshape(K, Cout)
    w_mat = jnp.pad(w_mat, ((0, 0), (0, Npad - Cout))).astype(jnp.bfloat16)
    b_row = jnp.pad(bias.reshape(1, Cout), ((0, 0), (0, Npad - Cout)))  # f32

    out = pl.pallas_call(
        _conv_pool_kernel,
        out_shape=jax.ShapeDtypeStruct((M, Npad), jnp.bfloat16),
        compiler_params=pltpu.CompilerParams(vmem_limit_bytes=_VMEM_LIMIT),
    )(pcat, w_mat, b_row)
    return out[:, :Cout].reshape(Nb, Po, Pw, Cout)   # NHWC, bf16


# ------------- stage 2: conv2 + bias + ReLU + pool + fc1 + ReLU + fc2 ------------- #

def conv2_mlp_stage(pooled1, conv2_w, conv2_b, fc1_w, fc1_b, fc2_w, fc2_b, k=5):
    Nb = pooled1.shape[0]
    Cout = conv2_w.shape[0]
    Hdim = fc1_w.shape[1]
    Ncls = fc2_w.shape[1]
    Npad = _round_up(Ncls, LANE)

    # conv2 pooled-im2col, rows ordered (po, pw, n) so fc1 consumes contiguous
    # per-spatial-position row blocks (no in-kernel transpose / flatten).
    p2cat, M2, K2, Po, Pw = _pooled_im2col(pooled1, k, rows_spatial_major=True)
    S = Po * Pw

    w2_mat = jnp.transpose(conv2_w, (2, 3, 1, 0)).reshape(K2, Cout).astype(jnp.bfloat16)
    b2_row = conv2_b.reshape(1, Cout)                                   # f32

    # fc1 weight regrouped so the torch flatten order (c, h, w) is absorbed into
    # the weight layout:  hidden[n] = sum_s pooled2[(s, n), :] @ w1r[s]
    w1r = jnp.transpose(fc1_w.reshape(Cout, S, Hdim), (1, 0, 2)).astype(jnp.bfloat16)
    b1_row = fc1_b.reshape(1, Hdim)                                     # f32

    wf2 = jnp.pad(fc2_w, ((0, 0), (0, Npad - Ncls))).astype(jnp.bfloat16)
    bf2 = jnp.pad(fc2_b.reshape(1, Ncls), ((0, 0), (0, Npad - Ncls)))   # f32

    def kernel(p2_ref, w2c_ref, b2c_ref, w1_hbm, b1_ref, wf2_ref, bf2_ref,
               o_ref, w1_vmem, sem):
        # Start the big fc1-weight DMA first; it overlaps the conv2 matmul below.
        w1_copy = pltpu.make_async_copy(w1_hbm, w1_vmem, sem)
        w1_copy.start()

        # conv2: one matmul over the 4 stacked pooling candidates, then
        # 4-way max + bias + ReLU (all commute correctly with the pool).
        m = jnp.dot(p2_ref[...], w2c_ref[...], preferred_element_type=jnp.float32)
        m = jnp.maximum(jnp.maximum(m[0:M2], m[M2:2 * M2]),
                        jnp.maximum(m[2 * M2:3 * M2], m[3 * M2:]))
        pooled2 = jnp.maximum(m + b2c_ref[...], 0.0).astype(jnp.bfloat16)  # (M2, Cout)

        w1_copy.wait()

        # fc1: flatten folded into the (S, Cout, Hdim) weight layout.
        h = jnp.zeros((Nb, Hdim), jnp.float32)
        for s in range(S):
            h = h + jnp.dot(pooled2[s * Nb:(s + 1) * Nb, :], w1_vmem[s],
                            preferred_element_type=jnp.float32)
        h = jnp.maximum(h + b1_ref[...], 0.0).astype(jnp.bfloat16)

        # fc2 (lane-dense padded to 128 output columns).
        y = jnp.dot(h, wf2_ref[...], preferred_element_type=jnp.float32) + bf2_ref[...]
        o_ref[...] = y.astype(o_ref.dtype)

    out = pl.pallas_call(
        kernel,
        out_shape=jax.ShapeDtypeStruct((Nb, Npad), jnp.float32),
        in_specs=[
            pl.BlockSpec(memory_space=pltpu.MemorySpace.VMEM),  # p2cat
            pl.BlockSpec(memory_space=pltpu.MemorySpace.VMEM),  # w2_mat
            pl.BlockSpec(memory_space=pltpu.MemorySpace.VMEM),  # b2_row
            pl.BlockSpec(memory_space=pl.ANY),                  # w1r stays in HBM
            pl.BlockSpec(memory_space=pltpu.MemorySpace.VMEM),  # b1_row
            pl.BlockSpec(memory_space=pltpu.MemorySpace.VMEM),  # wf2
            pl.BlockSpec(memory_space=pltpu.MemorySpace.VMEM),  # bf2
        ],
        out_specs=pl.BlockSpec(memory_space=pltpu.MemorySpace.VMEM),
        scratch_shapes=[pltpu.VMEM(w1r.shape, jnp.bfloat16),
                        pltpu.SemaphoreType.DMA(())],
        compiler_params=pltpu.CompilerParams(vmem_limit_bytes=_VMEM_LIMIT),
    )(p2cat, w2_mat, b2_row, w1r, b1_row, wf2, bf2)
    return out[:, :Ncls]


# ---------------------------------- forward pass ---------------------------------- #

def cnn_forward(params, x_nchw):
    x = jnp.transpose(x_nchw, (0, 2, 3, 1))                       # NCHW -> NHWC
    pooled1 = conv1_pool_stage(x, params["conv1_w"], params["conv1_b"], 5)
    return conv2_mlp_stage(pooled1, params["conv2_w"], params["conv2_b"],
                           params["fc1_w"], params["fc1_b"],
                           params["fc2_w"], params["fc2_b"], 5)


# -------------------------- deterministic parameter init -------------------------- #

def init_params(key, num_channel=1, num_classes=10, num_pixel=28):
    X = num_pixel
    X = math.floor(1 + (X - 5))
    X = X / 2
    X = math.floor(1 + (X - 5))
    X = int(X / 2)
    fc1_in = 64 * X * X

    def uniform(k, shape, fan_in):
        bound = 1.0 / math.sqrt(fan_in)
        return jax.random.uniform(k, shape, jnp.float32, -bound, bound)

    ks = jax.random.split(key, 8)
    return {
        "conv1_w": uniform(ks[0], (32, num_channel, 5, 5), num_channel * 25),
        "conv1_b": uniform(ks[1], (32,), num_channel * 25),
        "conv2_w": uniform(ks[2], (64, 32, 5, 5), 32 * 25),
        "conv2_b": uniform(ks[3], (64,), 32 * 25),
        "fc1_w":   uniform(ks[4], (fc1_in, 512), fc1_in),   # stored as (in, out)
        "fc1_b":   uniform(ks[5], (1, 512), fc1_in),
        "fc2_w":   uniform(ks[6], (512, num_classes), 512),
        "fc2_b":   uniform(ks[7], (1, num_classes), 512),
    }


# ------------------------------ pure-JAX reference -------------------------------- #

def cnn_reference(params, x):
    def conv(x, w, b):
        y = jax.lax.conv_general_dilated(
            x, w, (1, 1), "VALID",
            dimension_numbers=("NCHW", "OIHW", "NCHW"),
            precision=jax.lax.Precision.HIGHEST)
        return jax.nn.relu(y + b.reshape(1, -1, 1, 1))

    def pool(x):
        return jax.lax.reduce_window(x, -jnp.inf, jax.lax.max,
                                     (1, 1, 2, 2), (1, 1, 2, 2), "VALID")

    x = pool(conv(x, params["conv1_w"], params["conv1_b"]))
    x = pool(conv(x, params["conv2_w"], params["conv2_b"]))
    x = x.reshape(x.shape[0], -1)
    x = jax.nn.relu(jnp.dot(x, params["fc1_w"],
                            precision=jax.lax.Precision.HIGHEST) + params["fc1_b"])
    return jnp.dot(x, params["fc2_w"],
                   precision=jax.lax.Precision.HIGHEST) + params["fc2_b"]


# --------------------------------------- main -------------------------------------- #

if __name__ == "__main__":
    key = jax.random.PRNGKey(0)
    k_param, k_x = jax.random.split(key)

    batch, num_channel, num_pixel, num_classes = 2, 1, 28, 10
    params = init_params(k_param, num_channel, num_classes, num_pixel)
    x = jax.random.normal(k_x, (batch, num_channel, num_pixel, num_pixel),
                          jnp.float32)

    out = jax.jit(cnn_forward)(params, x)
    out = jax.block_until_ready(out)
    assert out.shape == (batch, num_classes), out.shape

    ref = jax.block_until_ready(cnn_reference(params, x))
    # bf16 matmul inputs with f32 accumulation: loose-but-honest tolerance.
    assert jnp.allclose(out, ref, rtol=2e-2, atol=2e-2), (
        float(jnp.max(jnp.abs(out - ref))))

    print("KERNEL_OK")
</pallas_src>

<mosaic_0001>
module attributes {stable_mosaic.version = 11 : i64} {
  func.func @_conv_pool_kernel(%arg0: memref<1152x25xbf16, #tpu.memory_space<vmem>>, %arg1: memref<25x128xbf16, #tpu.memory_space<vmem>>, %arg2: memref<1x128xf32, #tpu.memory_space<vmem>>, %arg3: memref<288x128xbf16, #tpu.memory_space<vmem>>) attributes {dimension_semantics = [], scalar_prefetch = 0 : i64, scratch_operands = 0 : i64, tpu.core_type = #tpu.core_type<tc>} {
    %c0 = arith.constant 0 : index
    %c0_0 = arith.constant 0 : index
    %0 = vector.load %arg0[%c0, %c0_0] : memref<1152x25xbf16, #tpu.memory_space<vmem>>, vector<1152x25xbf16>
    %c0_1 = arith.constant 0 : index
    %c0_2 = arith.constant 0 : index
    %1 = vector.load %arg1[%c0_1, %c0_2] : memref<25x128xbf16, #tpu.memory_space<vmem>>, vector<25x128xbf16>
    %cst = arith.constant dense<0.000000e+00> : vector<1152x128xf32>
    %2 = tpu.matmul %0, %1, %cst {dimension_numbers = #tpu.dot_dimension_numbers<[1], [0], [0], [1], [0, 0, 1, 1], [], []>} : vector<1152x25xbf16>, vector<25x128xbf16>, vector<1152x128xf32> -> vector<1152x128xf32>
    %3 = vector.extract_strided_slice %2 {offsets = [0, 0], sizes = [288, 128], strides = [1, 1]} : vector<1152x128xf32> to vector<288x128xf32>
    %4 = vector.extract_strided_slice %2 {offsets = [288, 0], sizes = [288, 128], strides = [1, 1]} : vector<1152x128xf32> to vector<288x128xf32>
    %5 = arith.maximumf %3, %4 : vector<288x128xf32>
    %6 = vector.extract_strided_slice %2 {offsets = [576, 0], sizes = [288, 128], strides = [1, 1]} : vector<1152x128xf32> to vector<288x128xf32>
    %7 = vector.extract_strided_slice %2 {offsets = [864, 0], sizes = [288, 128], strides = [1, 1]} : vector<1152x128xf32> to vector<288x128xf32>
    %8 = arith.maximumf %6, %7 : vector<288x128xf32>
    %9 = arith.maximumf %5, %8 : vector<288x128xf32>
    %c0_3 = arith.constant 0 : index
    %c0_4 = arith.constant 0 : index
    %10 = vector.load %arg2[%c0_3, %c0_4] : memref<1x128xf32, #tpu.memory_space<vmem>>, vector<1x128xf32>
    %11 = vector.broadcast %10 : vector<1x128xf32> to vector<288x128xf32>
    %12 = arith.addf %9, %11 : vector<288x128xf32>
    %cst_5 = arith.constant 0.000000e+00 : f32
    %13 = vector.broadcast %cst_5 : f32 to vector<288x128xf32>
    %14 = arith.maximumf %12, %13 : vector<288x128xf32>
    %15 = arith.truncf %14 : vector<288x128xf32> to vector<288x128xbf16>
    %c0_6 = arith.constant 0 : index
    %c0_7 = arith.constant 0 : index
    %16 = vector.load %arg3[%c0_6, %c0_7] : memref<288x128xbf16, #tpu.memory_space<vmem>>, vector<288x128xbf16>
    tpu.vector_store %arg3[%c0_6, %c0_7], %15 {strides = array<i32>} : memref<288x128xbf16, #tpu.memory_space<vmem>>, vector<288x128xbf16>,
    return
  }
}

module attributes {stable_mosaic.version = 11 : i64} {
  func.func @kernel(%arg0: memref<128x800xbf16, #tpu.memory_space<vmem>>, %arg1: memref<800x64xbf16, #tpu.memory_space<vmem>>, %arg2: memref<1x64xf32, #tpu.memory_space<vmem>>, %arg3: memref<16x64x512xbf16, #tpu.memory_space<any>>, %arg4: memref<1x512xf32, #tpu.memory_space<vmem>>, %arg5: memref<512x128xbf16, #tpu.memory_space<vmem>>, %arg6: memref<1x128xf32, #tpu.memory_space<vmem>>, %arg7: memref<2x128xf32, #tpu.memory_space<vmem>>, %arg8: memref<16x64x512xbf16, #tpu.memory_space<vmem>>, %arg9: memref<!tpu.dma_semaphore, #tpu.memory_space<semaphore_mem>>) attributes {dimension_semantics = [], scalar_prefetch = 0 : i64, scratch_operands = 2 : i64, tpu.core_type = #tpu.core_type<tc>} {
    tpu.enqueue_dma source(%arg3 : memref<16x64x512xbf16, #tpu.memory_space<any>>) target(%arg8 : memref<16x64x512xbf16, #tpu.memory_space<vmem>>) target_semaphore(%arg9 : memref<!tpu.dma_semaphore, #tpu.memory_space<semaphore_mem>>)
    %c0 = arith.constant 0 : index
    %c0_0 = arith.constant 0 : index
    %0 = vector.load %arg0[%c0, %c0_0] : memref<128x800xbf16, #tpu.memory_space<vmem>>, vector<128x800xbf16>
    %c0_1 = arith.constant 0 : index
    %c0_2 = arith.constant 0 : index
    %1 = vector.load %arg1[%c0_1, %c0_2] : memref<800x64xbf16, #tpu.memory_space<vmem>>, vector<800x64xbf16>
    %cst = arith.constant dense<0.000000e+00> : vector<128x64xf32>
    %2 = tpu.matmul %0, %1, %cst {dimension_numbers = #tpu.dot_dimension_numbers<[1], [0], [0], [1], [0, 0, 1, 1], [], []>} : vector<128x800xbf16>, vector<800x64xbf16>, vector<128x64xf32> -> vector<128x64xf32>
    %3 = vector.extract_strided_slice %2 {offsets = [0, 0], sizes = [32, 64], strides = [1, 1]} : vector<128x64xf32> to vector<32x64xf32>
    %4 = vector.extract_strided_slice %2 {offsets = [32, 0], sizes = [32, 64], strides = [1, 1]} : vector<128x64xf32> to vector<32x64xf32>
    %5 = arith.maximumf %3, %4 : vector<32x64xf32>
    %6 = vector.extract_strided_slice %2 {offsets = [64, 0], sizes = [32, 64], strides = [1, 1]} : vector<128x64xf32> to vector<32x64xf32>
    %7 = vector.extract_strided_slice %2 {offsets = [96, 0], sizes = [32, 64], strides = [1, 1]} : vector<128x64xf32> to vector<32x64xf32>
    %8 = arith.maximumf %6, %7 : vector<32x64xf32>
    %9 = arith.maximumf %5, %8 : vector<32x64xf32>
    %c0_3 = arith.constant 0 : index
    %c0_4 = arith.constant 0 : index
    %10 = vector.load %arg2[%c0_3, %c0_4] : memref<1x64xf32, #tpu.memory_space<vmem>>, vector<1x64xf32>
    %11 = vector.broadcast %10 : vector<1x64xf32> to vector<32x64xf32>
    %12 = arith.addf %9, %11 : vector<32x64xf32>
    %cst_5 = arith.constant 0.000000e+00 : f32
    %13 = vector.broadcast %cst_5 : f32 to vector<32x64xf32>
    %14 = arith.maximumf %12, %13 : vector<32x64xf32>
    %15 = arith.truncf %14 : vector<32x64xf32> to vector<32x64xbf16>
    tpu.wait_dma2 semaphore(%arg9 : memref<!tpu.dma_semaphore, #tpu.memory_space<semaphore_mem>>) src(%arg3 : memref<16x64x512xbf16, #tpu.memory_space<any>>) dst(%arg8 : memref<16x64x512xbf16, #tpu.memory_space<vmem>>)
    %cst_6 = arith.constant 0.000000e+00 : f32
    %16 = vector.broadcast %cst_6 : f32 to vector<2x512xf32>
    %17 = vector.extract_strided_slice %15 {offsets = [0, 0], sizes = [2, 64], strides = [1, 1]} : vector<32x64xbf16> to vector<2x64xbf16>
    %c0_7 = arith.constant 0 : index
    %c0_8 = arith.constant 0 : index
    %c0_9 = arith.constant 0 : index
    %18 = vector.load %arg8[%c0_7, %c0_8, %c0_9] : memref<16x64x512xbf16, #tpu.memory_space<vmem>>, vector<1x64x512xbf16>
    %19 = vector.shape_cast %18 : vector<1x64x512xbf16> to vector<64x512xbf16>
    %cst_10 = arith.constant dense<0.000000e+00> : vector<2x512xf32>
    %20 = tpu.matmul %17, %19, %cst_10 {dimension_numbers = #tpu.dot_dimension_numbers<[1], [0], [0], [1], [0, 0, 1, 1], [], []>} : vector<2x64xbf16>, vector<64x512xbf16>, vector<2x512xf32> -> vector<2x512xf32>
    %21 = arith.addf %16, %20 : vector<2x512xf32>
    %22 = vector.extract_strided_slice %15 {offsets = [2, 0], sizes = [2, 64], strides = [1, 1]} : vector<32x64xbf16> to vector<2x64xbf16>
    %c1 = arith.constant 1 : index
    %c0_11 = arith.constant 0 : index
    %c0_12 = arith.constant 0 : index
    %23 = vector.load %arg8[%c1, %c0_11, %c0_12] : memref<16x64x512xbf16, #tpu.memory_space<vmem>>, vector<1x64x512xbf16>
    %24 = vector.shape_cast %23 : vector<1x64x512xbf16> to vector<64x512xbf16>
    %cst_13 = arith.constant dense<0.000000e+00> : vector<2x512xf32>
    %25 = tpu.matmul %22, %24, %cst_13 {dimension_numbers = #tpu.dot_dimension_numbers<[1], [0], [0], [1], [0, 0, 1, 1], [], []>} : vector<2x64xbf16>, vector<64x512xbf16>, vector<2x512xf32> -> vector<2x512xf32>
    %26 = arith.addf %21, %25 : vector<2x512xf32>
    %27 = vector.extract_strided_slice %15 {offsets = [4, 0], sizes = [2, 64], strides = [1, 1]} : vector<32x64xbf16> to vector<2x64xbf16>
    %c2 = arith.constant 2 : index
    %c0_14 = arith.constant 0 : index
    %c0_15 = arith.constant 0 : index
    %28 = vector.load %arg8[%c2, %c0_14, %c0_15] : memref<16x64x512xbf16, #tpu.memory_space<vmem>>, vector<1x64x512xbf16>
    %29 = vector.shape_cast %28 : vector<1x64x512xbf16> to vector<64x512xbf16>
    %cst_16 = arith.constant dense<0.000000e+00> : vector<2x512xf32>
    %30 = tpu.matmul %27, %29, %cst_16 {dimension_numbers = #tpu.dot_dimension_numbers<[1], [0], [0], [1], [0, 0, 1, 1], [], []>} : vector<2x64xbf16>, vector<64x512xbf16>, vector<2x512xf32> -> vector<2x512xf32>
    %31 = arith.addf %26, %30 : vector<2x512xf32>
    %32 = vector.extract_strided_slice %15 {offsets = [6, 0], sizes = [2, 64], strides = [1, 1]} : vector<32x64xbf16> to vector<2x64xbf16>
    %c3 = arith.constant 3 : index
    %c0_17 = arith.constant 0 : index
    %c0_18 = arith.constant 0 : index
    %33 = vector.load %arg8[%c3, %c0_17, %c0_18] : memref<16x64x512xbf16, #tpu.memory_space<vmem>>, vector<1x64x512xbf16>
    %34 = vector.shape_cast %33 : vector<1x64x512xbf16> to vector<64x512xbf16>
    %cst_19 = arith.constant dense<0.000000e+00> : vector<2x512xf32>
    %35 = tpu.matmul %32, %34, %cst_19 {dimension_numbers = #tpu.dot_dimension_numbers<[1], [0], [0], [1], [0, 0, 1, 1], [], []>} : vector<2x64xbf16>, vector<64x512xbf16>, vector<2x512xf32> -> vector<2x512xf32>
    %36 = arith.addf %31, %35 : vector<2x512xf32>
    %37 = vector.extract_strided_slice %15 {offsets = [8, 0], sizes = [2, 64], strides = [1, 1]} : vector<32x64xbf16> to vector<2x64xbf16>
    %c4 = arith.constant 4 : index
    %c0_20 = arith.constant 0 : index
    %c0_21 = arith.constant 0 : index
    %38 = vector.load %arg8[%c4, %c0_20, %c0_21] : memref<16x64x512xbf16, #tpu.memory_space<vmem>>, vector<1x64x512xbf16>
    %39 = vector.shape_cast %38 : vector<1x64x512xbf16> to vector<64x512xbf16>
    %cst_22 = arith.constant dense<0.000000e+00> : vector<2x512xf32>
    %40 = tpu.matmul %37, %39, %cst_22 {dimension_numbers = #tpu.dot_dimension_numbers<[1], [0], [0], [1], [0, 0, 1, 1], [], []>} : vector<2x64xbf16>, vector<64x512xbf16>, vector<2x512xf32> -> vector<2x512xf32>
    %41 = arith.addf %36, %40 : vector<2x512xf32>
    %42 = vector.extract_strided_slice %15 {offsets = [10, 0], sizes = [2, 64], strides = [1, 1]} : vector<32x64xbf16> to vector<2x64xbf16>
    %c5 = arith.constant 5 : index
    %c0_23 = arith.constant 0 : index
    %c0_24 = arith.constant 0 : index
    %43 = vector.load %arg8[%c5, %c0_23, %c0_24] : memref<16x64x512xbf16, #tpu.memory_space<vmem>>, vector<1x64x512xbf16>
    %44 = vector.shape_cast %43 : vector<1x64x512xbf16> to vector<64x512xbf16>
    %cst_25 = arith.constant dense<0.000000e+00> : vector<2x512xf32>
    %45 = tpu.matmul %42, %44, %cst_25 {dimension_numbers = #tpu.dot_dimension_numbers<[1], [0], [0], [1], [0, 0, 1, 1], [], []>} : vector<2x64xbf16>, vector<64x512xbf16>, vector<2x512xf32> -> vector<2x512xf32>
    %46 = arith.addf %41, %45 : vector<2x512xf32>
    %47 = vector.extract_strided_slice %15 {offsets = [12, 0], sizes = [2, 64], strides = [1, 1]} : vector<32x64xbf16> to vector<2x64xbf16>
    %c6 = arith.constant 6 : index
    %c0_26 = arith.constant 0 : index
    %c0_27 = arith.constant 0 : index
    %48 = vector.load %arg8[%c6, %c0_26, %c0_27] : memref<16x64x512xbf16, #tpu.memory_space<vmem>>, vector<1x64x512xbf16>
    %49 = vector.shape_cast %48 : vector<1x64x512xbf16> to vector<64x512xbf16>
    %cst_28 = arith.constant dense<0.000000e+00> : vector<2x512xf32>
    %50 = tpu.matmul %47, %49, %cst_28 {dimension_numbers = #tpu.dot_dimension_numbers<[1], [0], [0], [1], [0, 0, 1, 1], [], []>} : vector<2x64xbf16>, vector<64x512xbf16>, vector<2x512xf32> -> vector<2x512xf32>
    %51 = arith.addf %46, %50 : vector<2x512xf32>
    %52 = vector.extract_strided_slice %15 {offsets = [14, 0], sizes = [2, 64], strides = [1, 1]} : vector<32x64xbf16> to vector<2x64xbf16>
    %c7 = arith.constant 7 : index
    %c0_29 = arith.constant 0 : index
    %c0_30 = arith.constant 0 : index
    %53 = vector.load %arg8[%c7, %c0_29, %c0_30] : memref<16x64x512xbf16, #tpu.memory_space<vmem>>, vector<1x64x512xbf16>
    %54 = vector.shape_cast %53 : vector<1x64x512xbf16> to vector<64x512xbf16>
    %cst_31 = arith.constant dense<0.000000e+00> : vector<2x512xf32>
    %55 = tpu.matmul %52, %54, %cst_31 {dimension_numbers = #tpu.dot_dimension_numbers<[1], [0], [0], [1], [0, 0, 1, 1], [], []>} : vector<2x64xbf16>, vector<64x512xbf16>, vector<2x512xf32> -> vector<2x512xf32>
    %56 = arith.addf %51, %55 : vector<2x512xf32>
    %57 = vector.extract_strided_slice %15 {offsets = [16, 0], sizes = [2, 64], strides = [1, 1]} : vector<32x64xbf16> to vector<2x64xbf16>
    %c8 = arith.constant 8 : index
    %c0_32 = arith.constant 0 : index
    %c0_33 = arith.constant 0 : index
    %58 = vector.load %arg8[%c8, %c0_32, %c0_33] : memref<16x64x512xbf16, #tpu.memory_space<vmem>>, vector<1x64x512xbf16>
    %59 = vector.shape_cast %58 : vector<1x64x512xbf16> to vector<64x512xbf16>
    %cst_34 = arith.constant dense<0.000000e+00> : vector<2x512xf32>
    %60 = tpu.matmul %57, %59, %cst_34 {dimension_numbers = #tpu.dot_dimension_numbers<[1], [0], [0], [1], [0, 0, 1, 1], [], []>} : vector<2x64xbf16>, vector<64x512xbf16>, vector<2x512xf32> -> vector<2x512xf32>
    %61 = arith.addf %56, %60 : vector<2x512xf32>
    %62 = vector.extract_strided_slice %15 {offsets = [18, 0], sizes = [2, 64], strides = [1, 1]} : vector<32x64xbf16> to vector<2x64xbf16>
    %c9 = arith.constant 9 : index
    %c0_35 = arith.constant 0 : index
    %c0_36 = arith.constant 0 : index
    %63 = vector.load %arg8[%c9, %c0_35, %c0_36] : memref<16x64x512xbf16, #tpu.memory_space<vmem>>, vector<1x64x512xbf16>
    %64 = vector.shape_cast %63 : vector<1x64x512xbf16> to vector<64x512xbf16>
    %cst_37 = arith.constant dense<0.000000e+00> : vector<2x512xf32>
    %65 = tpu.matmul %62, %64, %cst_37 {dimension_numbers = #tpu.dot_dimension_numbers<[1], [0], [0], [1], [0, 0, 1, 1], [], []>} : vector<2x64xbf16>, vector<64x512xbf16>, vector<2x512xf32> -> vector<2x512xf32>
    %66 = arith.addf %61, %65 : vector<2x512xf32>
    %67 = vector.extract_strided_slice %15 {offsets = [20, 0], sizes = [2, 64], strides = [1, 1]} : vector<32x64xbf16> to vector<2x64xbf16>
    %c10 = arith.constant 10 : index
    %c0_38 = arith.constant 0 : index
    %c0_39 = arith.constant 0 : index
    %68 = vector.load %arg8[%c10, %c0_38, %c0_39] : memref<16x64x512xbf16, #tpu.memory_space<vmem>>, vector<1x64x512xbf16>
    %69 = vector.shape_cast %68 : vector<1x64x512xbf16> to vector<64x512xbf16>
    %cst_40 = arith.constant dense<0.000000e+00> : vector<2x512xf32>
    %70 = tpu.matmul %67, %69, %cst_40 {dimension_numbers = #tpu.dot_dimension_numbers<[1], [0], [0], [1], [0, 0, 1, 1], [], []>} : vector<2x64xbf16>, vector<64x512xbf16>, vector<2x512xf32> -> vector<2x512xf32>
    %71 = arith.addf %66, %70 : vector<2x512xf32>
    %72 = vector.extract_strided_slice %15 {offsets = [22, 0], sizes = [2, 64], strides = [1, 1]} : vector<32x64xbf16> to vector<2x64xbf16>
    %c11 = arith.constant 11 : index
    %c0_41 = arith.constant 0 : index
    %c0_42 = arith.constant 0 : index
    %73 = vector.load %arg8[%c11, %c0_41, %c0_42] : memref<16x64x512xbf16, #tpu.memory_space<vmem>>, vector<1x64x512xbf16>
    %74 = vector.shape_cast %73 : vector<1x64x512xbf16> to vector<64x512xbf16>
    %cst_43 = arith.constant dense<0.000000e+00> : vector<2x512xf32>
    %75 = tpu.matmul %72, %74, %cst_43 {dimension_numbers = #tpu.dot_dimension_numbers<[1], [0], [0], [1], [0, 0, 1, 1], [], []>} : vector<2x64xbf16>, vector<64x512xbf16>, vector<2x512xf32> -> vector<2x512xf32>
    %76 = arith.addf %71, %75 : vector<2x512xf32>
    %77 = vector.extract_strided_slice %15 {offsets = [24, 0], sizes = [2, 64], strides = [1, 1]} : vector<32x64xbf16> to vector<2x64xbf16>
    %c12 = arith.constant 12 : index
    %c0_44 = arith.constant 0 : index
    %c0_45 = arith.constant 0 : index
    %78 = vector.load %arg8[%c12, %c0_44, %c0_45] : memref<16x64x512xbf16, #tpu.memory_space<vmem>>, vector<1x64x512xbf16>
    %79 = vector.shape_cast %78 : vector<1x64x512xbf16> to vector<64x512xbf16>
    %cst_46 = arith.constant dense<0.000000e+00> : vector<2x512xf32>
    %80 = tpu.matmul %77, %79, %cst_46 {dimension_numbers = #tpu.dot_dimension_numbers<[1], [0], [0], [1], [0, 0, 1, 1], [], []>} : vector<2x64xbf16>, vector<64x512xbf16>, vector<2x512xf32> -> vector<2x512xf32>
    %81 = arith.addf %76, %80 : vector<2x512xf32>
    %82 = vector.extract_strided_slice %15 {offsets = [26, 0], sizes = [2, 64], strides = [1, 1]} : vector<32x64xbf16> to vector<2x64xbf16>
    %c13 = arith.constant 13 : index
    %c0_47 = arith.constant 0 : index
    %c0_48 = arith.constant 0 : index
    %83 = vector.load %arg8[%c13, %c0_47, %c0_48] : memref<16x64x512xbf16, #tpu.memory_space<vmem>>, vector<1x64x512xbf16>
    %84 = vector.shape_cast %83 : vector<1x64x512xbf16> to vector<64x512xbf16>
    %cst_49 = arith.constant dense<0.000000e+00> : vector<2x512xf32>
    %85 = tpu.matmul %82, %84, %cst_49 {dimension_numbers = #tpu.dot_dimension_numbers<[1], [0], [0], [1], [0, 0, 1, 1], [], []>} : vector<2x64xbf16>, vector<64x512xbf16>, vector<2x512xf32> -> vector<2x512xf32>
    %86 = arith.addf %81, %85 : vector<2x512xf32>
    %87 = vector.extract_strided_slice %15 {offsets = [28, 0], sizes = [2, 64], strides = [1, 1]} : vector<32x64xbf16> to vector<2x64xbf16>
    %c14 = arith.constant 14 : index
    %c0_50 = arith.constant 0 : index
    %c0_51 = arith.constant 0 : index
    %88 = vector.load %arg8[%c14, %c0_50, %c0_51] : memref<16x64x512xbf16, #tpu.memory_space<vmem>>, vector<1x64x512xbf16>
    %89 = vector.shape_cast %88 : vector<1x64x512xbf16> to vector<64x512xbf16>
    %cst_52 = arith.constant dense<0.000000e+00> : vector<2x512xf32>
    %90 = tpu.matmul %87, %89, %cst_52 {dimension_numbers = #tpu.dot_dimension_numbers<[1], [0], [0], [1], [0, 0, 1, 1], [], []>} : vector<2x64xbf16>, vector<64x512xbf16>, vector<2x512xf32> -> vector<2x512xf32>
    %91 = arith.addf %86, %90 : vector<2x512xf32>
    %92 = vector.extract_strided_slice %15 {offsets = [30, 0], sizes = [2, 64], strides = [1, 1]} : vector<32x64xbf16> to vector<2x64xbf16>
    %c15 = arith.constant 15 : index
    %c0_53 = arith.constant 0 : index
    %c0_54 = arith.constant 0 : index
    %93 = vector.load %arg8[%c15, %c0_53, %c0_54] : memref<16x64x512xbf16, #tpu.memory_space<vmem>>, vector<1x64x512xbf16>
    %94 = vector.shape_cast %93 : vector<1x64x512xbf16> to vector<64x512xbf16>
    %cst_55 = arith.constant dense<0.000000e+00> : vector<2x512xf32>
    %95 = tpu.matmul %92, %94, %cst_55 {dimension_numbers = #tpu.dot_dimension_numbers<[1], [0], [0], [1], [0, 0, 1, 1], [], []>} : vector<2x64xbf16>, vector<64x512xbf16>, vector<2x512xf32> -> vector<2x512xf32>
    %96 = arith.addf %91, %95 : vector<2x512xf32>
    %c0_56 = arith.constant 0 : index
    %c0_57 = arith.constant 0 : index
    %97 = vector.load %arg4[%c0_56, %c0_57] : memref<1x512xf32, #tpu.memory_space<vmem>>, vector<1x512xf32>
    %98 = vector.broadcast %97 : vector<1x512xf32> to vector<2x512xf32>
    %99 = arith.addf %96, %98 : vector<2x512xf32>
    %cst_58 = arith.constant 0.000000e+00 : f32
    %100 = vector.broadcast %cst_58 : f32 to vector<2x512xf32>
    %101 = arith.maximumf %99, %100 : vector<2x512xf32>
    %102 = arith.truncf %101 : vector<2x512xf32> to vector<2x512xbf16>
    %c0_59 = arith.constant 0 : index
    %c0_60 = arith.constant 0 : index
    %103 = vector.load %arg5[%c0_59, %c0_60] : memref<512x128xbf16, #tpu.memory_space<vmem>>, vector<512x128xbf16>
    %cst_61 = arith.constant dense<0.000000e+00> : vector<2x128xf32>
    %104 = tpu.matmul %102, %103, %cst_61 {dimension_numbers = #tpu.dot_dimension_numbers<[1], [0], [0], [1], [0, 0, 1, 1], [], []>} : vector<2x512xbf16>, vector<512x128xbf16>, vector<2x128xf32> -> vector<2x128xf32>
    %c0_62 = arith.constant 0 : index
    %c0_63 = arith.constant 0 : index
    %105 = vector.load %arg6[%c0_62, %c0_63] : memref<1x128xf32, #tpu.memory_space<vmem>>, vector<1x128xf32>
    %106 = vector.broadcast %105 : vector<1x128xf32> to vector<2x128xf32>
    %107 = arith.addf %104, %106 : vector<2x128xf32>
    %c0_64 = arith.constant 0 : index
    %c0_65 = arith.constant 0 : index
    %108 = vector.load %arg7[%c0_64, %c0_65] : memref<2x128xf32, #tpu.memory_space<vmem>>, vector<2x128xf32>
    tpu.vector_store %arg7[%c0_64, %c0_65], %107 {strides = array<i32>} : memref<2x128xf32, #tpu.memory_space<vmem>>, vector<2x128xf32>,
    return
  }
}

</mosaic_0001>

<llo_original>
// kernel: cnn_forward.2
$region0: #{cnn_forward.2}
  #allocation0 [shape = 'u32[]', space=smem, size = 0x4, offset = 0x4, fixed_abs, tag = 'smem constant byte address 0x4 - core index']
  #allocation1 [shape = 'u32[72,128]{1,0:T(1,128)}', space=vmem, size = 0x9000, scoped, tag = 'internal scratch']
  %s0 = inlined_call_operand.vmem [shape: bf16[1152,25], index: 0, kind: input, shape index: {}]
  %s1 = inlined_call_operand.vmem [shape: bf16[25,128], index: 1, kind: input, shape index: {}]
  %s2 = inlined_call_operand.vmem [shape: f32[1,128], index: 2, kind: input, shape index: {}]
  %s3 = inlined_call_operand.vmem [shape: bf16[288,128], index: 3, kind: output, shape index: {}]
  %s4 = sld [smem:[#allocation0]]
  $region22: #{cnn_forward.2} parent=0
    _
  %s6 = ssub.s32 1, %s4
  %s7 = scalar_select 0, %s6, %s4
  // Predicated region
  $region2: #{cnn_forward.2} parent=0 // pred_check
    _
  $region3: #{cnn_forward.2} parent=0 // pred_check_branch
    %9 = sbr.rel (0) target = $region5
  $region4: #{cnn_forward.2} parent=0 // pred_region
    _
  $region5: #{cnn_forward.2} parent=0 // pred_fallthru
    _
  // Predicated region
  $region6: #{cnn_forward.2} parent=0 // pred_check
    _
  $region7: #{cnn_forward.2} parent=0 // pred_check_branch
    %11 = sbr.rel (0) target = $region9
  $region8: #{cnn_forward.2} parent=0 // pred_region
    _
  $region9: #{cnn_forward.2} parent=0 // pred_fallthru
    _
  // Predicated region
  $region10: #{cnn_forward.2} parent=0 // pred_check
    _
  $region11: #{cnn_forward.2} parent=0 // pred_check_branch
    %13 = sbr.rel (0) target = $region13
  $region12: #{cnn_forward.2} parent=0 // pred_region
    _
  $region13: #{cnn_forward.2} parent=0 // pred_fallthru
    _
  %v15 = vld [vmem:[%s0] sm:$0xf]
  %v16 = vld [vmem:[%s0 + $0x4] sm:$0xf]
  %v17 = vld [vmem:[%s0 + $0x8] sm:$0xf]
  %v18 = vld [vmem:[%s0 + $0xc] sm:$0xf]
  %v19 = vld [vmem:[%s0 + $0x10] sm:$0xf]
  %v20 = vld [vmem:[%s0 + $0x14] sm:$0xf]
  %v21 = vld [vmem:[%s0 + $0x18] sm:$0xf]
  %v22 = vld [vmem:[%s0 + $0x1c] sm:$0xf]
  %v23 = vld [vmem:[%s0 + $0x20] sm:$0xf]
  %v24 = vld [vmem:[%s0 + $0x24] sm:$0xf]
  %v25 = vld [vmem:[%s0 + $0x28] sm:$0xf]
  %v26 = vld [vmem:[%s0 + $0x2c] sm:$0xf]
  %v27 = vld [vmem:[%s0 + $0x30] sm:$0xf]
  %v28 = vld [vmem:[%s0 + $0x34] sm:$0xf]
  %v29 = vld [vmem:[%s0 + $0x38] sm:$0xf]
  %v30 = vld [vmem:[%s0 + $0x3c] sm:$0xf]
  %v31 = vld [vmem:[%s0 + $0x40] sm:$0xf]
  %v32 = vld [vmem:[%s0 + $0x44] sm:$0xf]
  %v33 = vld [vmem:[%s0 + $0x48] sm:$0xf]
  %v34 = vld [vmem:[%s0 + $0x4c] sm:$0xf]
  %v35 = vld [vmem:[%s0 + $0x50] sm:$0xf]
  %v36 = vld [vmem:[%s0 + $0x54] sm:$0xf]
  %v37 = vld [vmem:[%s0 + $0x58] sm:$0xf]
  %v38 = vld [vmem:[%s0 + $0x5c] sm:$0xf]
  %v39 = vld [vmem:[%s0 + $0x60] sm:$0xf]
  %v40 = vld [vmem:[%s0 + $0x64] sm:$0xf]
  %v41 = vld [vmem:[%s0 + $0x68] sm:$0xf]
  %v42 = vld [vmem:[%s0 + $0x6c] sm:$0xf]
  %v43 = vld [vmem:[%s0 + $0x70] sm:$0xf]
  %v44 = vld [vmem:[%s0 + $0x74] sm:$0xf]
  %v45 = vld [vmem:[%s0 + $0x78] sm:$0xf]
  %v46 = vld [vmem:[%s0 + $0x7c] sm:$0xf]
  %v47 = vld [vmem:[%s0 + $0x80] sm:$0xf]
  %v48 = vld [vmem:[%s0 + $0x84] sm:$0xf]
  %v49 = vld [vmem:[%s0 + $0x88] sm:$0xf]
  %v50 = vld [vmem:[%s0 + $0x8c] sm:$0xf]
  %v51 = vld [vmem:[%s0 + $0x90] sm:$0xf]
  %v52 = vld [vmem:[%s0 + $0x94] sm:$0xf]
  %v53 = vld [vmem:[%s0 + $0x98] sm:$0xf]
  %v54 = vld [vmem:[%s0 + $0x9c] sm:$0xf]
  %v55 = vld [vmem:[%s0 + $0xa0] sm:$0xf]
  %v56 = vld [vmem:[%s0 + $0xa4] sm:$0xf]
  %v57 = vld [vmem:[%s0 + $0xa8] sm:$0xf]
  %v58 = vld [vmem:[%s0 + $0xac] sm:$0xf]
  %v59 = vld [vmem:[%s0 + $0xb0] sm:$0xf]
  %v60 = vld [vmem:[%s0 + $0xb4] sm:$0xf]
  %v61 = vld [vmem:[%s0 + $0xb8] sm:$0xf]
  %v62 = vld [vmem:[%s0 + $0xbc] sm:$0xf]
  %v63 = vld [vmem:[%s0 + $0xc0] sm:$0xf]
  %v64 = vld [vmem:[%s0 + $0xc4] sm:$0xf]
  %v65 = vld [vmem:[%s0 + $0xc8] sm:$0xf]
  %v66 = vld [vmem:[%s0 + $0xcc] sm:$0xf]
  %v67 = vld [vmem:[%s0 + $0xd0] sm:$0xf]
  %v68 = vld [vmem:[%s0 + $0xd4] sm:$0xf]
  %v69 = vld [vmem:[%s0 + $0xd8] sm:$0xf]
  %v70 = vld [vmem:[%s0 + $0xdc] sm:$0xf]
  %v71 = vld [vmem:[%s0 + $0xe0] sm:$0xf]
  %v72 = vld [vmem:[%s0 + $0xe4] sm:$0xf]
  %v73 = vld [vmem:[%s0 + $0xe8] sm:$0xf]
  %v74 = vld [vmem:[%s0 + $0xec] sm:$0xf]
  %v75 = vld [vmem:[%s0 + $0xf0] sm:$0xf]
  %v76 = vld [vmem:[%s0 + $0xf4] sm:$0xf]
  %v77 = vld [vmem:[%s0 + $0xf8] sm:$0xf]
  %v78 = vld [vmem:[%s0 + $0xfc] sm:$0xf]
  %v79 = vld [vmem:[%s0 + $0x100] sm:$0xf]
  %v80 = vld [vmem:[%s0 + $0x104] sm:$0xf]
  %v81 = vld [vmem:[%s0 + $0x108] sm:$0xf]
  %v82 = vld [vmem:[%s0 + $0x10c] sm:$0xf]
  %v83 = vld [vmem:[%s0 + $0x110] sm:$0xf]
  %v84 = vld [vmem:[%s0 + $0x114] sm:$0xf]
  %v85 = vld [vmem:[%s0 + $0x118] sm:$0xf]
  %v86 = vld [vmem:[%s0 + $0x11c] sm:$0xf]
  %v87 = vld [vmem:[%s0 + $0x120] sm:$0xf]
  %v88 = vld [vmem:[%s0 + $0x124] sm:$0xf]
  %v89 = vld [vmem:[%s0 + $0x128] sm:$0xf]
  %v90 = vld [vmem:[%s0 + $0x12c] sm:$0xf]
  %v91 = vld [vmem:[%s0 + $0x130] sm:$0xf]
  %v92 = vld [vmem:[%s0 + $0x134] sm:$0xf]
  %v93 = vld [vmem:[%s0 + $0x138] sm:$0xf]
  %v94 = vld [vmem:[%s0 + $0x13c] sm:$0xf]
  %v95 = vld [vmem:[%s0 + $0x140] sm:$0xf]
  %v96 = vld [vmem:[%s0 + $0x144] sm:$0xf]
  %v97 = vld [vmem:[%s0 + $0x148] sm:$0xf]
  %v98 = vld [vmem:[%s0 + $0x14c] sm:$0xf]
  %v99 = vld [vmem:[%s0 + $0x150] sm:$0xf]
  %v100 = vld [vmem:[%s0 + $0x154] sm:$0xf]
  %v101 = vld [vmem:[%s0 + $0x158] sm:$0xf]
  %v102 = vld [vmem:[%s0 + $0x15c] sm:$0xf]
  %v103 = vld [vmem:[%s0 + $0x160] sm:$0xf]
  %v104 = vld [vmem:[%s0 + $0x164] sm:$0xf]
  %v105 = vld [vmem:[%s0 + $0x168] sm:$0xf]
  %v106 = vld [vmem:[%s0 + $0x16c] sm:$0xf]
  %v107 = vld [vmem:[%s0 + $0x170] sm:$0xf]
  %v108 = vld [vmem:[%s0 + $0x174] sm:$0xf]
  %v109 = vld [vmem:[%s0 + $0x178] sm:$0xf]
  %v110 = vld [vmem:[%s0 + $0x17c] sm:$0xf]
  %v111 = vld [vmem:[%s0 + $0x180] sm:$0xf]
  %v112 = vld [vmem:[%s0 + $0x184] sm:$0xf]
  %v113 = vld [vmem:[%s0 + $0x188] sm:$0xf]
  %v114 = vld [vmem:[%s0 + $0x18c] sm:$0xf]
  %v115 = vld [vmem:[%s0 + $0x190] sm:$0xf]
  %v116 = vld [vmem:[%s0 + $0x194] sm:$0xf]
  %v117 = vld [vmem:[%s0 + $0x198] sm:$0xf]
  %v118 = vld [vmem:[%s0 + $0x19c] sm:$0xf]
  %v119 = vld [vmem:[%s0 + $0x1a0] sm:$0xf]
  %v120 = vld [vmem:[%s0 + $0x1a4] sm:$0xf]
  %v121 = vld [vmem:[%s0 + $0x1a8] sm:$0xf]
  %v122 = vld [vmem:[%s0 + $0x1ac] sm:$0xf]
  %v123 = vld [vmem:[%s0 + $0x1b0] sm:$0xf]
  %v124 = vld [vmem:[%s0 + $0x1b4] sm:$0xf]
  %v125 = vld [vmem:[%s0 + $0x1b8] sm:$0xf]
  %v126 = vld [vmem:[%s0 + $0x1bc] sm:$0xf]
  %v127 = vld [vmem:[%s0 + $0x1c0] sm:$0xf]
  %v128 = vld [vmem:[%s0 + $0x1c4] sm:$0xf]
  %v129 = vld [vmem:[%s0 + $0x1c8] sm:$0xf]
  %v130 = vld [vmem:[%s0 + $0x1cc] sm:$0xf]
  %v131 = vld [vmem:[%s0 + $0x1d0] sm:$0xf]
  %v132 = vld [vmem:[%s0 + $0x1d4] sm:$0xf]
  %v133 = vld [vmem:[%s0 + $0x1d8] sm:$0xf]
  %v134 = vld [vmem:[%s0 + $0x1dc] sm:$0xf]
  %v135 = vld [vmem:[%s0 + $0x1e0] sm:$0xf]
  %v136 = vld [vmem:[%s0 + $0x1e4] sm:$0xf]
  %v137 = vld [vmem:[%s0 + $0x1e8] sm:$0xf]
  %v138 = vld [vmem:[%s0 + $0x1ec] sm:$0xf]
  %v139 = vld [vmem:[%s0 + $0x1f0] sm:$0xf]
  %v140 = vld [vmem:[%s0 + $0x1f4] sm:$0xf]
  %v141 = vld [vmem:[%s0 + $0x1f8] sm:$0xf]
  %v142 = vld [vmem:[%s0 + $0x1fc] sm:$0xf]
  %v143 = vld [vmem:[%s0 + $0x200] sm:$0xf]
  %v144 = vld [vmem:[%s0 + $0x204] sm:$0xf]
  %v145 = vld [vmem:[%s0 + $0x208] sm:$0xf]
  %v146 = vld [vmem:[%s0 + $0x20c] sm:$0xf]
  %v147 = vld [vmem:[%s0 + $0x210] sm:$0xf]
  %v148 = vld [vmem:[%s0 + $0x214] sm:$0xf]
  %v149 = vld [vmem:[%s0 + $0x218] sm:$0xf]
  %v150 = vld [vmem:[%s0 + $0x21c] sm:$0xf]
  %v151 = vld [vmem:[%s0 + $0x220] sm:$0xf]
  %v152 = vld [vmem:[%s0 + $0x224] sm:$0xf]
  %v153 = vld [vmem:[%s0 + $0x228] sm:$0xf]
  %v154 = vld [vmem:[%s0 + $0x22c] sm:$0xf]
  %v155 = vld [vmem:[%s0 + $0x230] sm:$0xf]
  %v156 = vld [vmem:[%s0 + $0x234] sm:$0xf]
  %v157 = vld [vmem:[%s0 + $0x238] sm:$0xf]
  %v158 = vld [vmem:[%s0 + $0x23c] sm:$0xf]
  %v159 = vld [vmem:[%s1] sm:$0xf]
  %v160 = vld [vmem:[%s1 + $0x4] sm:$0xf]
  %v161 = vld [vmem:[%s1 + $0x8] sm:$0xf]
  %v162 = vld [vmem:[%s1 + $0xc] sm:$0x1]
  %v307 = vunpack.c.l.b16 %v15
  %v308 = vunpack.c.l.b16 %v16
  %v309 = vunpack.c.l.b16 %v17
  %v310 = vunpack.c.l.b16 %v18
  %v311 = vunpack.c.l.b16 %v19
  %v312 = vunpack.c.l.b16 %v20
  %v313 = vunpack.c.l.b16 %v21
  %v314 = vunpack.c.l.b16 %v22
  %v315 = vunpack.c.l.b16 %v23
  %v316 = vunpack.c.l.b16 %v24
  %v317 = vunpack.c.l.b16 %v25
  %v318 = vunpack.c.l.b16 %v26
  %v319 = vunpack.c.l.b16 %v27
  %v320 = vunpack.c.l.b16 %v28
  %v321 = vunpack.c.l.b16 %v29
  %v322 = vunpack.c.l.b16 %v30
  %v323 = vunpack.c.l.b16 %v31
  %v324 = vunpack.c.l.b16 %v32
  %v325 = vunpack.c.l.b16 %v33
  %v326 = vunpack.c.l.b16 %v34
  %v327 = vunpack.c.l.b16 %v35
  %v328 = vunpack.c.l.b16 %v36
  %v329 = vunpack.c.l.b16 %v37
  %v330 = vunpack.c.l.b16 %v38
  %v331 = vunpack.c.l.b16 %v39
  %v332 = vunpack.c.l.b16 %v40
  %v333 = vunpack.c.l.b16 %v41
  %v334 = vunpack.c.l.b16 %v42
  %v335 = vunpack.c.l.b16 %v43
  %v336 = vunpack.c.l.b16 %v44
  %v337 = vunpack.c.l.b16 %v45
  %v338 = vunpack.c.l.b16 %v46
  %v339 = vunpack.c.l.b16 %v47
  %v340 = vunpack.c.l.b16 %v48
  %v341 = vunpack.c.l.b16 %v49
  %v342 = vunpack.c.l.b16 %v50
  %v343 = vunpack.c.l.b16 %v51
  %v344 = vunpack.c.l.b16 %v52
  %v345 = vunpack.c.l.b16 %v53
  %v346 = vunpack.c.l.b16 %v54
  %v347 = vunpack.c.l.b16 %v55
  %v348 = vunpack.c.l.b16 %v56
  %v349 = vunpack.c.l.b16 %v57
  %v350 = vunpack.c.l.b16 %v58
  %v351 = vunpack.c.l.b16 %v59
  %v352 = vunpack.c.l.b16 %v60
  %v353 = vunpack.c.l.b16 %v61
  %v354 = vunpack.c.l.b16 %v62
  %v355 = vunpack.c.l.b16 %v63
  %v356 = vunpack.c.l.b16 %v64
  %v357 = vunpack.c.l.b16 %v65
  %v358 = vunpack.c.l.b16 %v66
  %v359 = vunpack.c.l.b16 %v67
  %v360 = vunpack.c.l.b16 %v68
  %v361 = vunpack.c.l.b16 %v69
  %v362 = vunpack.c.l.b16 %v70
  %v363 = vunpack.c.l.b16 %v71
  %v364 = vunpack.c.l.b16 %v72
  %v365 = vunpack.c.l.b16 %v73
  %v366 = vunpack.c.l.b16 %v74
  %v367 = vunpack.c.l.b16 %v75
  %v368 = vunpack.c.l.b16 %v76
  %v369 = vunpack.c.l.b16 %v77
  %v370 = vunpack.c.l.b16 %v78
  %v371 = vunpack.c.l.b16 %v79
  %v372 = vunpack.c.l.b16 %v80
  %v373 = vunpack.c.l.b16 %v81
  %v374 = vunpack.c.l.b16 %v82
  %v375 = vunpack.c.l.b16 %v83
  %v376 = vunpack.c.l.b16 %v84
  %v377 = vunpack.c.l.b16 %v85
  %v378 = vunpack.c.l.b16 %v86
  %v379 = vunpack.c.l.b16 %v87
  %v380 = vunpack.c.l.b16 %v88
  %v381 = vunpack.c.l.b16 %v89
  %v382 = vunpack.c.l.b16 %v90
  %v383 = vunpack.c.l.b16 %v91
  %v384 = vunpack.c.l.b16 %v92
  %v385 = vunpack.c.l.b16 %v93
  %v386 = vunpack.c.l.b16 %v94
  %v387 = vunpack.c.l.b16 %v95
  %v388 = vunpack.c.l.b16 %v96
  %v389 = vunpack.c.l.b16 %v97
  %v390 = vunpack.c.l.b16 %v98
  %v391 = vunpack.c.l.b16 %v99
  %v392 = vunpack.c.l.b16 %v100
  %v393 = vunpack.c.l.b16 %v101
  %v394 = vunpack.c.l.b16 %v102
  %v395 = vunpack.c.l.b16 %v103
  %v396 = vunpack.c.l.b16 %v104
  %v397 = vunpack.c.l.b16 %v105
  %v398 = vunpack.c.l.b16 %v106
  %v399 = vunpack.c.l.b16 %v107
  %v400 = vunpack.c.l.b16 %v108
  %v401 = vunpack.c.l.b16 %v109
  %v402 = vunpack.c.l.b16 %v110
  %v403 = vunpack.c.l.b16 %v111
  %v404 = vunpack.c.l.b16 %v112
  %v405 = vunpack.c.l.b16 %v113
  %v406 = vunpack.c.l.b16 %v114
  %v407 = vunpack.c.l.b16 %v115
  %v408 = vunpack.c.l.b16 %v116
  %v409 = vunpack.c.l.b16 %v117
  %v410 = vunpack.c.l.b16 %v118
  %v411 = vunpack.c.l.b16 %v119
  %v412 = vunpack.c.l.b16 %v120
  %v413 = vunpack.c.l.b16 %v121
  %v414 = vunpack.c.l.b16 %v122
  %v415 = vunpack.c.l.b16 %v123
  %v416 = vunpack.c.l.b16 %v124
  %v417 = vunpack.c.l.b16 %v125
  %v418 = vunpack.c.l.b16 %v126
  %v419 = vunpack.c.l.b16 %v127
  %v420 = vunpack.c.l.b16 %v128
  %v421 = vunpack.c.l.b16 %v129
  %v422 = vunpack.c.l.b16 %v130
  %v423 = vunpack.c.l.b16 %v131
  %v424 = vunpack.c.l.b16 %v132
  %v425 = vunpack.c.l.b16 %v133
  %v426 = vunpack.c.l.b16 %v134
  %v427 = vunpack.c.l.b16 %v135
  %v428 = vunpack.c.l.b16 %v136
  %v429 = vunpack.c.l.b16 %v137
  %v430 = vunpack.c.l.b16 %v138
  %v431 = vunpack.c.l.b16 %v139
  %v432 = vunpack.c.l.b16 %v140
  %v433 = vunpack.c.l.b16 %v141
  %v434 = vunpack.c.l.b16 %v142
  %v435 = vunpack.c.l.b16 %v143
  %v436 = vunpack.c.l.b16 %v144
  %v437 = vunpack.c.l.b16 %v145
  %v438 = vunpack.c.l.b16 %v146
  %v439 = vunpack.c.l.b16 %v147
  %v440 = vunpack.c.l.b16 %v148
  %v441 = vunpack.c.l.b16 %v149
  %v442 = vunpack.c.l.b16 %v150
  %v443 = vunpack.c.l.b16 %v151
  %v444 = vunpack.c.l.b16 %v152
  %v445 = vunpack.c.l.b16 %v153
  %v446 = vunpack.c.l.b16 %v154
  %v447 = vunpack.c.l.b16 %v155
  %v448 = vunpack.c.l.b16 %v156
  %v449 = vunpack.c.l.b16 %v157
  %v450 = vunpack.c.l.b16 %v158
  %v451 = vpack.c.b16 %v308, %v307
  %v452 = vpack.c.b16 %v310, %v309
  %v453 = vpack.c.b16 %v312, %v311
  %v454 = vpack.c.b16 %v314, %v313
  %v455 = vpack.c.b16 %v316, %v315
  %v456 = vpack.c.b16 %v318, %v317
  %v457 = vpack.c.b16 %v320, %v319
  %v458 = vpack.c.b16 %v322, %v321
  %v459 = vpack.c.b16 %v324, %v323
  %v460 = vpack.c.b16 %v326, %v325
  %v461 = vpack.c.b16 %v328, %v327
  %v462 = vpack.c.b16 %v330, %v329
  %v463 = vpack.c.b16 %v332, %v331
  %v464 = vpack.c.b16 %v334, %v333
  %v465 = vpack.c.b16 %v336, %v335
  %v466 = vpack.c.b16 %v338, %v337
  %v467 = vpack.c.b16 %v340, %v339
  %v468 = vpack.c.b16 %v342, %v341
  %v469 = vpack.c.b16 %v344, %v343
  %v470 = vpack.c.b16 %v346, %v345
  %v471 = vpack.c.b16 %v348, %v347
  %v472 = vpack.c.b16 %v350, %v349
  %v473 = vpack.c.b16 %v352, %v351
  %v474 = vpack.c.b16 %v354, %v353
  %v475 = vpack.c.b16 %v356, %v355
  %v476 = vpack.c.b16 %v358, %v357
  %v477 = vpack.c.b16 %v360, %v359
  %v478 = vpack.c.b16 %v362, %v361
  %v479 = vpack.c.b16 %v364, %v363
  %v480 = vpack.c.b16 %v366, %v365
  %v481 = vpack.c.b16 %v368, %v367
  %v482 = vpack.c.b16 %v370, %v369
  %v483 = vpack.c.b16 %v372, %v371
  %v484 = vpack.c.b16 %v374, %v373
  %v485 = vpack.c.b16 %v376, %v375
  %v486 = vpack.c.b16 %v378, %v377
  %v487 = vpack.c.b16 %v380, %v379
  %v488 = vpack.c.b16 %v382, %v381
  %v489 = vpack.c.b16 %v384, %v383
  %v490 = vpack.c.b16 %v386, %v385
  %v491 = vpack.c.b16 %v388, %v387
  %v492 = vpack.c.b16 %v390, %v389
  %v493 = vpack.c.b16 %v392, %v391
  %v494 = vpack.c.b16 %v394, %v393
  %v495 = vpack.c.b16 %v396, %v395
  %v496 = vpack.c.b16 %v398, %v397
  %v497 = vpack.c.b16 %v400, %v399
  %v498 = vpack.c.b16 %v402, %v401
  %v499 = vpack.c.b16 %v404, %v403
  %v500 = vpack.c.b16 %v406, %v405
  %v501 = vpack.c.b16 %v408, %v407
  %v502 = vpack.c.b16 %v410, %v409
  %v503 = vpack.c.b16 %v412, %v411
  %v504 = vpack.c.b16 %v414, %v413
  %v505 = vpack.c.b16 %v416, %v415
  %v506 = vpack.c.b16 %v418, %v417
  %v507 = vpack.c.b16 %v420, %v419
  %v508 = vpack.c.b16 %v422, %v421
  %v509 = vpack.c.b16 %v424, %v423
  %v510 = vpack.c.b16 %v426, %v425
  %v511 = vpack.c.b16 %v428, %v427
  %v512 = vpack.c.b16 %v430, %v429
  %v513 = vpack.c.b16 %v432, %v431
  %v514 = vpack.c.b16 %v434, %v433
  %v515 = vpack.c.b16 %v436, %v435
  %v516 = vpack.c.b16 %v438, %v437
  %v517 = vpack.c.b16 %v440, %v439
  %v518 = vpack.c.b16 %v442, %v441
  %v519 = vpack.c.b16 %v444, %v443
  %v520 = vpack.c.b16 %v446, %v445
  %v521 = vpack.c.b16 %v448, %v447
  %v522 = vpack.c.b16 %v450, %v449
  %v527 = vunpack.c.l.b16 %v159
  %v528 = vunpack.c.l.b16 %v160
  %v529 = vunpack.c.l.b16 %v161
  %v530 = vunpack.c.l.b16 %v162
  %v531 = vpack.c.b16 %v528, %v527
  %v532 = vpack.c.b16 %v530, %v529
  %vm534 = vcmask 203776
  %v536 = vsel %vm534, %v451, 0
  %v539 = vsel %vm534, %v452, 0
  %v542 = vsel %vm534, %v453, 0
  %v545 = vsel %vm534, %v454, 0
  %v548 = vsel %vm534, %v455, 0
  %v551 = vsel %vm534, %v456, 0
  %v554 = vsel %vm534, %v457, 0
  %v557 = vsel %vm534, %v458, 0
  %v560 = vsel %vm534, %v459, 0
  %v563 = vsel %vm534, %v460, 0
  %v566 = vsel %vm534, %v461, 0
  %v569 = vsel %vm534, %v462, 0
  %v572 = vsel %vm534, %v463, 0
  %v575 = vsel %vm534, %v464, 0
  %v578 = vsel %vm534, %v465, 0
  %v581 = vsel %vm534, %v466, 0
  %v584 = vsel %vm534, %v467, 0
  %v587 = vsel %vm534, %v468, 0
  %v590 = vsel %vm534, %v469, 0
  %v593 = vsel %vm534, %v470, 0
  %v596 = vsel %vm534, %v471, 0
  %v599 = vsel %vm534, %v472, 0
  %v602 = vsel %vm534, %v473, 0
  %v605 = vsel %vm534, %v474, 0
  %v608 = vsel %vm534, %v475, 0
  %v611 = vsel %vm534, %v476, 0
  %v614 = vsel %vm534, %v477, 0
  %v617 = vsel %vm534, %v478, 0
  %v620 = vsel %vm534, %v479, 0
  %v623 = vsel %vm534, %v480, 0
  %v626 = vsel %vm534, %v481, 0
  %v629 = vsel %vm534, %v482, 0
  %v632 = vsel %vm534, %v483, 0
  %v635 = vsel %vm534, %v484, 0
  %v638 = vsel %vm534, %v485, 0
  %v641 = vsel %vm534, %v486, 0
  %v644 = vsel %vm534, %v487, 0
  %v647 = vsel %vm534, %v488, 0
  %v650 = vsel %vm534, %v489, 0
  %v653 = vsel %vm534, %v490, 0
  %v656 = vsel %vm534, %v491, 0
  %v659 = vsel %vm534, %v492, 0
  %v662 = vsel %vm534, %v493, 0
  %v665 = vsel %vm534, %v494, 0
  %v668 = vsel %vm534, %v495, 0
  %v671 = vsel %vm534, %v496, 0
  %v674 = vsel %vm534, %v497, 0
  %v677 = vsel %vm534, %v498, 0
  %v680 = vsel %vm534, %v499, 0
  %v683 = vsel %vm534, %v500, 0
  %v686 = vsel %vm534, %v501, 0
  %v689 = vsel %vm534, %v502, 0
  %v692 = vsel %vm534, %v503, 0
  %v695 = vsel %vm534, %v504, 0
  %v698 = vsel %vm534, %v505, 0
  %v701 = vsel %vm534, %v506, 0
  %v704 = vsel %vm534, %v507, 0
  %v707 = vsel %vm534, %v508, 0
  %v710 = vsel %vm534, %v509, 0
  %v713 = vsel %vm534, %v510, 0
  %v716 = vsel %vm534, %v511, 0
  %v719 = vsel %vm534, %v512, 0
  %v722 = vsel %vm534, %v513, 0
  %v725 = vsel %vm534, %v514, 0
  %v728 = vsel %vm534, %v515, 0
  %v731 = vsel %vm534, %v516, 0
  %v734 = vsel %vm534, %v517, 0
  %v737 = vsel %vm534, %v518, 0
  %v740 = vsel %vm534, %v519, 0
  %v743 = vsel %vm534, %v520, 0
  %v746 = vsel %vm534, %v521, 0
  %v749 = vsel %vm534, %v522, 0
  %vm751 = vcmask 1043456
  %vm752 = vcmask 1044480
  %v753 = vsel %vm751, 4294967295, 65535
  %v754 = vsel %vm752, %v753, 0
  %v756 = vand.u32 %v532, %v754
  %758 = vmatpush.bf16.msra.mxu0 0
  %759 = vmatpush.bf16.msra.mxu0 0
  %760 = vmatpush.bf16.msra.mxu0 0
  %761 = vmatpush.bf16.msra.mxu0 0
  %762 = vmatpush.bf16.msra.mxu0 0
  %763 = vmatpush.bf16.msra.mxu0 0
  %764 = vmatpush.bf16.msra.mxu0 %v756
  %765 = vmatpush.bf16.msra.mxu0 %v531
  %766 = vmatmul.bf16.gmra.mxu0 %v536
  %v767 = vpop.f32.mrf.mxu0
  %v768 = vadd.f32 0.0, %v767
  %v769 = vpop.f32.mrf.mxu0
  %v770 = vadd.f32 0.0, %v769
  %771 = vmatmul.bf16.gmra.mxu0 %v539
  %v772 = vpop.f32.mrf.mxu0
  %v773 = vadd.f32 0.0, %v772
  %v774 = vpop.f32.mrf.mxu0
  %v775 = vadd.f32 0.0, %v774
  %776 = vmatmul.bf16.gmra.mxu0 %v542
  %v777 = vpop.f32.mrf.mxu0
  %v778 = vadd.f32 0.0, %v777
  %v779 = vpop.f32.mrf.mxu0
  %v780 = vadd.f32 0.0, %v779
  %781 = vmatmul.bf16.gmra.mxu0 %v545
  %v782 = vpop.f32.mrf.mxu0
  %v783 = vadd.f32 0.0, %v782
  %v784 = vpop.f32.mrf.mxu0
  %v785 = vadd.f32 0.0, %v784
  %786 = vmatmul.bf16.gmra.mxu0 %v548
  %v787 = vpop.f32.mrf.mxu0
  %v788 = vadd.f32 0.0, %v787
  %v789 = vpop.f32.mrf.mxu0
  %v790 = vadd.f32 0.0, %v789
  %791 = vmatmul.bf16.gmra.mxu0 %v551
  %v792 = vpop.f32.mrf.mxu0
  %v793 = vadd.f32 0.0, %v792
  %v794 = vpop.f32.mrf.mxu0
  %v795 = vadd.f32 0.0, %v794
  %796 = vmatmul.bf16.gmra.mxu0 %v554
  %v797 = vpop.f32.mrf.mxu0
  %v798 = vadd.f32 0.0, %v797
  %v799 = vpop.f32.mrf.mxu0
  %v800 = vadd.f32 0.0, %v799
  %801 = vmatmul.bf16.gmra.mxu0 %v557
  %v802 = vpop.f32.mrf.mxu0
  %v803 = vadd.f32 0.0, %v802
  %v804 = vpop.f32.mrf.mxu0
  %v805 = vadd.f32 0.0, %v804
  %806 = vmatmul.bf16.gmra.mxu0 %v560
  %v807 = vpop.f32.mrf.mxu0
  %v808 = vadd.f32 0.0, %v807
  %v809 = vpop.f32.mrf.mxu0
  %v810 = vadd.f32 0.0, %v809
  %811 = vmatmul.bf16.gmra.mxu0 %v563
  %v812 = vpop.f32.mrf.mxu0
  %v813 = vadd.f32 0.0, %v812
  %v814 = vpop.f32.mrf.mxu0
  %v815 = vadd.f32 0.0, %v814
  %816 = vmatmul.bf16.gmra.mxu0 %v566
  %v817 = vpop.f32.mrf.mxu0
  %v818 = vadd.f32 0.0, %v817
  %v819 = vpop.f32.mrf.mxu0
  %v820 = vadd.f32 0.0, %v819
  %821 = vmatmul.bf16.gmra.mxu0 %v569
  %v822 = vpop.f32.mrf.mxu0
  %v823 = vadd.f32 0.0, %v822
  %v824 = vpop.f32.mrf.mxu0
  %v825 = vadd.f32 0.0, %v824
  %826 = vmatmul.bf16.gmra.mxu0 %v572
  %v827 = vpop.f32.mrf.mxu0
  %v828 = vadd.f32 0.0, %v827
  %v829 = vpop.f32.mrf.mxu0
  %v830 = vadd.f32 0.0, %v829
  %831 = vmatmul.bf16.gmra.mxu0 %v575
  %v832 = vpop.f32.mrf.mxu0
  %v833 = vadd.f32 0.0, %v832
  %v834 = vpop.f32.mrf.mxu0
  %v835 = vadd.f32 0.0, %v834
  %836 = vmatmul.bf16.gmra.mxu0 %v578
  %v837 = vpop.f32.mrf.mxu0
  %v838 = vadd.f32 0.0, %v837
  %v839 = vpop.f32.mrf.mxu0
  %v840 = vadd.f32 0.0, %v839
  %841 = vmatmul.bf16.gmra.mxu0 %v581
  %v842 = vpop.f32.mrf.mxu0
  %v843 = vadd.f32 0.0, %v842
  %v844 = vpop.f32.mrf.mxu0
  %v845 = vadd.f32 0.0, %v844
  %846 = vmatmul.bf16.gmra.mxu0 %v584
  %v847 = vpop.f32.mrf.mxu0
  %v848 = vadd.f32 0.0, %v847
  %v849 = vpop.f32.mrf.mxu0
  %v850 = vadd.f32 0.0, %v849
  %851 = vmatmul.bf16.gmra.mxu0 %v587
  %v852 = vpop.f32.mrf.mxu0
  %v853 = vadd.f32 0.0, %v852
  %v854 = vpop.f32.mrf.mxu0
  %v855 = vadd.f32 0.0, %v854
  %856 = vmatmul.bf16.gmra.mxu0 %v590
  %v857 = vpop.f32.mrf.mxu0
  %v858 = vadd.f32 0.0, %v857
  %v859 = vpop.f32.mrf.mxu0
  %v860 = vadd.f32 0.0, %v859
  %861 = vmatmul.bf16.gmra.mxu0 %v593
  %v862 = vpop.f32.mrf.mxu0
  %v863 = vadd.f32 0.0, %v862
  %v864 = vpop.f32.mrf.mxu0
  %v865 = vadd.f32 0.0, %v864
  %866 = vmatmul.bf16.gmra.mxu0 %v596
  %v867 = vpop.f32.mrf.mxu0
  %v868 = vadd.f32 0.0, %v867
  %v869 = vpop.f32.mrf.mxu0
  %v870 = vadd.f32 0.0, %v869
  %871 = vmatmul.bf16.gmra.mxu0 %v599
  %v872 = vpop.f32.mrf.mxu0
  %v873 = vadd.f32 0.0, %v872
  %v874 = vpop.f32.mrf.mxu0
  %v875 = vadd.f32 0.0, %v874
  %876 = vmatmul.bf16.gmra.mxu0 %v602
  %v877 = vpop.f32.mrf.mxu0
  %v878 = vadd.f32 0.0, %v877
  %v879 = vpop.f32.mrf.mxu0
  %v880 = vadd.f32 0.0, %v879
  %881 = vmatmul.bf16.gmra.mxu0 %v605
  %v882 = vpop.f32.mrf.mxu0
  %v883 = vadd.f32 0.0, %v882
  %v884 = vpop.f32.mrf.mxu0
  %v885 = vadd.f32 0.0, %v884
  %886 = vmatmul.bf16.gmra.mxu0 %v608
  %v887 = vpop.f32.mrf.mxu0
  %v888 = vadd.f32 0.0, %v887
  %v889 = vpop.f32.mrf.mxu0
  %v890 = vadd.f32 0.0, %v889
  %891 = vmatmul.bf16.gmra.mxu0 %v611
  %v892 = vpop.f32.mrf.mxu0
  %v893 = vadd.f32 0.0, %v892
  %v894 = vpop.f32.mrf.mxu0
  %v895 = vadd.f32 0.0, %v894
  %896 = vmatmul.bf16.gmra.mxu0 %v614
  %v897 = vpop.f32.mrf.mxu0
  %v898 = vadd.f32 0.0, %v897
  %v899 = vpop.f32.mrf.mxu0
  %v900 = vadd.f32 0.0, %v899
  %901 = vmatmul.bf16.gmra.mxu0 %v617
  %v902 = vpop.f32.mrf.mxu0
  %v903 = vadd.f32 0.0, %v902
  %v904 = vpop.f32.mrf.mxu0
  %v905 = vadd.f32 0.0, %v904
  %906 = vmatmul.bf16.gmra.mxu0 %v620
  %v907 = vpop.f32.mrf.mxu0
  %v908 = vadd.f32 0.0, %v907
  %v909 = vpop.f32.mrf.mxu0
  %v910 = vadd.f32 0.0, %v909
  %911 = vmatmul.bf16.gmra.mxu0 %v623
  %v912 = vpop.f32.mrf.mxu0
  %v913 = vadd.f32 0.0, %v912
  %v914 = vpop.f32.mrf.mxu0
  %v915 = vadd.f32 0.0, %v914
  %916 = vmatmul.bf16.gmra.mxu0 %v626
  %v917 = vpop.f32.mrf.mxu0
  %v918 = vadd.f32 0.0, %v917
  %v919 = vpop.f32.mrf.mxu0
  %v920 = vadd.f32 0.0, %v919
  %921 = vmatmul.bf16.gmra.mxu0 %v629
  %v922 = vpop.f32.mrf.mxu0
  %v923 = vadd.f32 0.0, %v922
  %v924 = vpop.f32.mrf.mxu0
  %v925 = vadd.f32 0.0, %v924
  %926 = vmatmul.bf16.gmra.mxu0 %v632
  %v927 = vpop.f32.mrf.mxu0
  %v928 = vadd.f32 0.0, %v927
  %v929 = vpop.f32.mrf.mxu0
  %v930 = vadd.f32 0.0, %v929
  %931 = vmatmul.bf16.gmra.mxu0 %v635
  %v932 = vpop.f32.mrf.mxu0
  %v933 = vadd.f32 0.0, %v932
  %v934 = vpop.f32.mrf.mxu0
  %v935 = vadd.f32 0.0, %v934
  %936 = vmatmul.bf16.gmra.mxu0 %v638
  %v937 = vpop.f32.mrf.mxu0
  %v938 = vadd.f32 0.0, %v937
  %v939 = vpop.f32.mrf.mxu0
  %v940 = vadd.f32 0.0, %v939
  %941 = vmatmul.bf16.gmra.mxu0 %v641
  %v942 = vpop.f32.mrf.mxu0
  %v943 = vadd.f32 0.0, %v942
  %v944 = vpop.f32.mrf.mxu0
  %v945 = vadd.f32 0.0, %v944
  %946 = vmatmul.bf16.gmra.mxu0 %v644
  %v947 = vpop.f32.mrf.mxu0
  %v948 = vadd.f32 0.0, %v947
  %v949 = vpop.f32.mrf.mxu0
  %v950 = vadd.f32 0.0, %v949
  %951 = vmatmul.bf16.gmra.mxu0 %v647
  %v952 = vpop.f32.mrf.mxu0
  %v953 = vadd.f32 0.0, %v952
  %v954 = vpop.f32.mrf.mxu0
  %v955 = vadd.f32 0.0, %v954
  %956 = vmatmul.bf16.gmra.mxu0 %v650
  %v957 = vpop.f32.mrf.mxu0
  %v958 = vadd.f32 0.0, %v957
  %v959 = vpop.f32.mrf.mxu0
  %v960 = vadd.f32 0.0, %v959
  %961 = vmatmul.bf16.gmra.mxu0 %v653
  %v962 = vpop.f32.mrf.mxu0
  %v963 = vadd.f32 0.0, %v962
  %v964 = vpop.f32.mrf.mxu0
  %v965 = vadd.f32 0.0, %v964
  %966 = vmatmul.bf16.gmra.mxu0 %v656
  %v967 = vpop.f32.mrf.mxu0
  %v968 = vadd.f32 0.0, %v967
  %v969 = vpop.f32.mrf.mxu0
  %v970 = vadd.f32 0.0, %v969
  %971 = vmatmul.bf16.gmra.mxu0 %v659
  %v972 = vpop.f32.mrf.mxu0
  %v973 = vadd.f32 0.0, %v972
  %v974 = vpop.f32.mrf.mxu0
  %v975 = vadd.f32 0.0, %v974
  %976 = vmatmul.bf16.gmra.mxu0 %v662
  %v977 = vpop.f32.mrf.mxu0
  %v978 = vadd.f32 0.0, %v977
  %v979 = vpop.f32.mrf.mxu0
  %v980 = vadd.f32 0.0, %v979
  %981 = vmatmul.bf16.gmra.mxu0 %v665
  %v982 = vpop.f32.mrf.mxu0
  %v983 = vadd.f32 0.0, %v982
  %v984 = vpop.f32.mrf.mxu0
  %v985 = vadd.f32 0.0, %v984
  %986 = vmatmul.bf16.gmra.mxu0 %v668
  %v987 = vpop.f32.mrf.mxu0
  %v988 = vadd.f32 0.0, %v987
  %v989 = vpop.f32.mrf.mxu0
  %v990 = vadd.f32 0.0, %v989
  %991 = vmatmul.bf16.gmra.mxu0 %v671
  %v992 = vpop.f32.mrf.mxu0
  %v993 = vadd.f32 0.0, %v992
  %v994 = vpop.f32.mrf.mxu0
  %v995 = vadd.f32 0.0, %v994
  %996 = vmatmul.bf16.gmra.mxu0 %v674
  %v997 = vpop.f32.mrf.mxu0
  %v998 = vadd.f32 0.0, %v997
  %v999 = vpop.f32.mrf.mxu0
  %v1000 = vadd.f32 0.0, %v999
  %1001 = vmatmul.bf16.gmra.mxu0 %v677
  %v1002 = vpop.f32.mrf.mxu0
  %v1003 = vadd.f32 0.0, %v1002
  %v1004 = vpop.f32.mrf.mxu0
  %v1005 = vadd.f32 0.0, %v1004
  %1006 = vmatmul.bf16.gmra.mxu0 %v680
  %v1007 = vpop.f32.mrf.mxu0
  %v1008 = vadd.f32 0.0, %v1007
  %v1009 = vpop.f32.mrf.mxu0
  %v1010 = vadd.f32 0.0, %v1009
  %1011 = vmatmul.bf16.gmra.mxu0 %v683
  %v1012 = vpop.f32.mrf.mxu0
  %v1013 = vadd.f32 0.0, %v1012
  %v1014 = vpop.f32.mrf.mxu0
  %v1015 = vadd.f32 0.0, %v1014
  %1016 = vmatmul.bf16.gmra.mxu0 %v686
  %v1017 = vpop.f32.mrf.mxu0
  %v1018 = vadd.f32 0.0, %v1017
  %v1019 = vpop.f32.mrf.mxu0
  %v1020 = vadd.f32 0.0, %v1019
  %1021 = vmatmul.bf16.gmra.mxu0 %v689
  %v1022 = vpop.f32.mrf.mxu0
  %v1023 = vadd.f32 0.0, %v1022
  %v1024 = vpop.f32.mrf.mxu0
  %v1025 = vadd.f32 0.0, %v1024
  %1026 = vmatmul.bf16.gmra.mxu0 %v692
  %v1027 = vpop.f32.mrf.mxu0
  %v1028 = vadd.f32 0.0, %v1027
  %v1029 = vpop.f32.mrf.mxu0
  %v1030 = vadd.f32 0.0, %v1029
  %1031 = vmatmul.bf16.gmra.mxu0 %v695
  %v1032 = vpop.f32.mrf.mxu0
  %v1033 = vadd.f32 0.0, %v1032
  %v1034 = vpop.f32.mrf.mxu0
  %v1035 = vadd.f32 0.0, %v1034
  %1036 = vmatmul.bf16.gmra.mxu0 %v698
  %v1037 = vpop.f32.mrf.mxu0
  %v1038 = vadd.f32 0.0, %v1037
  %v1039 = vpop.f32.mrf.mxu0
  %v1040 = vadd.f32 0.0, %v1039
  %1041 = vmatmul.bf16.gmra.mxu0 %v701
  %v1042 = vpop.f32.mrf.mxu0
  %v1043 = vadd.f32 0.0, %v1042
  %v1044 = vpop.f32.mrf.mxu0
  %v1045 = vadd.f32 0.0, %v1044
  %1046 = vmatmul.bf16.gmra.mxu0 %v704
  %v1047 = vpop.f32.mrf.mxu0
  %v1048 = vadd.f32 0.0, %v1047
  %v1049 = vpop.f32.mrf.mxu0
  %v1050 = vadd.f32 0.0, %v1049
  %1051 = vmatmul.bf16.gmra.mxu0 %v707
  %v1052 = vpop.f32.mrf.mxu0
  %v1053 = vadd.f32 0.0, %v1052
  %v1054 = vpop.f32.mrf.mxu0
  %v1055 = vadd.f32 0.0, %v1054
  %1056 = vmatmul.bf16.gmra.mxu0 %v710
  %v1057 = vpop.f32.mrf.mxu0
  %v1058 = vadd.f32 0.0, %v1057
  %v1059 = vpop.f32.mrf.mxu0
  %v1060 = vadd.f32 0.0, %v1059
  %1061 = vmatmul.bf16.gmra.mxu0 %v713
  %v1062 = vpop.f32.mrf.mxu0
  %v1063 = vadd.f32 0.0, %v1062
  %v1064 = vpop.f32.mrf.mxu0
  %v1065 = vadd.f32 0.0, %v1064
  %1066 = vmatmul.bf16.gmra.mxu0 %v716
  %v1067 = vpop.f32.mrf.mxu0
  %v1068 = vadd.f32 0.0, %v1067
  %v1069 = vpop.f32.mrf.mxu0
  %v1070 = vadd.f32 0.0, %v1069
  %1071 = vmatmul.bf16.gmra.mxu0 %v719
  %v1072 = vpop.f32.mrf.mxu0
  %v1073 = vadd.f32 0.0, %v1072
  %v1074 = vpop.f32.mrf.mxu0
  %v1075 = vadd.f32 0.0, %v1074
  %1076 = vmatmul.bf16.gmra.mxu0 %v722
  %v1077 = vpop.f32.mrf.mxu0
  %v1078 = vadd.f32 0.0, %v1077
  %v1079 = vpop.f32.mrf.mxu0
  %v1080 = vadd.f32 0.0, %v1079
  %1081 = vmatmul.bf16.gmra.mxu0 %v725
  %v1082 = vpop.f32.mrf.mxu0
  %v1083 = vadd.f32 0.0, %v1082
  %v1084 = vpop.f32.mrf.mxu0
  %v1085 = vadd.f32 0.0, %v1084
  %1086 = vmatmul.bf16.gmra.mxu0 %v728
  %v1087 = vpop.f32.mrf.mxu0
  %v1088 = vadd.f32 0.0, %v1087
  %v1089 = vpop.f32.mrf.mxu0
  %v1090 = vadd.f32 0.0, %v1089
  %1091 = vmatmul.bf16.gmra.mxu0 %v731
  %v1092 = vpop.f32.mrf.mxu0
  %v1093 = vadd.f32 0.0, %v1092
  %v1094 = vpop.f32.mrf.mxu0
  %v1095 = vadd.f32 0.0, %v1094
  %1096 = vmatmul.bf16.gmra.mxu0 %v734
  %v1097 = vpop.f32.mrf.mxu0
  %v1098 = vadd.f32 0.0, %v1097
  %v1099 = vpop.f32.mrf.mxu0
  %v1100 = vadd.f32 0.0, %v1099
  %1101 = vmatmul.bf16.gmra.mxu0 %v737
  %v1102 = vpop.f32.mrf.mxu0
  %v1103 = vadd.f32 0.0, %v1102
  %v1104 = vpop.f32.mrf.mxu0
  %v1105 = vadd.f32 0.0, %v1104
  %1106 = vmatmul.bf16.gmra.mxu0 %v740
  %v1107 = vpop.f32.mrf.mxu0
  %v1108 = vadd.f32 0.0, %v1107
  %v1109 = vpop.f32.mrf.mxu0
  %v1110 = vadd.f32 0.0, %v1109
  %1111 = vmatmul.bf16.gmra.mxu0 %v743
  %v1112 = vpop.f32.mrf.mxu0
  %v1113 = vadd.f32 0.0, %v1112
  %v1114 = vpop.f32.mrf.mxu0
  %v1115 = vadd.f32 0.0, %v1114
  %1116 = vmatmul.bf16.gmra.mxu0 %v746
  %v1117 = vpop.f32.mrf.mxu0
  %v1118 = vadd.f32 0.0, %v1117
  %v1119 = vpop.f32.mrf.mxu0
  %v1120 = vadd.f32 0.0, %v1119
  %1121 = vmatmul.bf16.gmra.mxu0 %v749
  %v1122 = vpop.f32.mrf.mxu0
  %v1123 = vadd.f32 0.0, %v1122
  %v1124 = vpop.f32.mrf.mxu0
  %v1125 = vadd.f32 0.0, %v1124
  %1126 = vdwg.mxu0
  %v1127 = vmax.f32 %v768, %v858
  %v1128 = vmax.f32 %v770, %v860
  %v1129 = vmax.f32 %v773, %v863
  %v1130 = vmax.f32 %v775, %v865
  %v1131 = vmax.f32 %v778, %v868
  %v1132 = vmax.f32 %v780, %v870
  %v1133 = vmax.f32 %v783, %v873
  %v1134 = vmax.f32 %v785, %v875
  %v1135 = vmax.f32 %v788, %v878
  %v1136 = vmax.f32 %v790, %v880
  %v1137 = vmax.f32 %v793, %v883
  %v1138 = vmax.f32 %v795, %v885
  %v1139 = vmax.f32 %v798, %v888
  %v1140 = vmax.f32 %v800, %v890
  %v1141 = vmax.f32 %v803, %v893
  %v1142 = vmax.f32 %v805, %v895
  %v1143 = vmax.f32 %v808, %v898
  %v1144 = vmax.f32 %v810, %v900
  %v1145 = vmax.f32 %v813, %v903
  %v1146 = vmax.f32 %v815, %v905
  %v1147 = vmax.f32 %v818, %v908
  %v1148 = vmax.f32 %v820, %v910
  %v1149 = vmax.f32 %v823, %v913
  %v1150 = vmax.f32 %v825, %v915
  %v1151 = vmax.f32 %v828, %v918
  %v1152 = vmax.f32 %v830, %v920
  %v1153 = vmax.f32 %v833, %v923
  %v1154 = vmax.f32 %v835, %v925
  %v1155 = vmax.f32 %v838, %v928
  %v1156 = vmax.f32 %v840, %v930
  %v1157 = vmax.f32 %v843, %v933
  %v1158 = vmax.f32 %v845, %v935
  %v1159 = vmax.f32 %v848, %v938
  %v1160 = vmax.f32 %v850, %v940
  %v1161 = vmax.f32 %v853, %v943
  %v1162 = vmax.f32 %v855, %v945
  %v1163 = vmax.f32 %v948, %v1038
  %v1164 = vmax.f32 %v950, %v1040
  %v1165 = vmax.f32 %v953, %v1043
  %v1166 = vmax.f32 %v955, %v1045
  %v1167 = vmax.f32 %v958, %v1048
  %v1168 = vmax.f32 %v960, %v1050
  %v1169 = vmax.f32 %v963, %v1053
  %v1170 = vmax.f32 %v965, %v1055
  %v1171 = vmax.f32 %v968, %v1058
  %v1172 = vmax.f32 %v970, %v1060
  %v1173 = vmax.f32 %v973, %v1063
  %v1174 = vmax.f32 %v975, %v1065
  %v1175 = vmax.f32 %v978, %v1068
  %v1176 = vmax.f32 %v980, %v1070
  %v1177 = vmax.f32 %v983, %v1073
  %v1178 = vmax.f32 %v985, %v1075
  %v1179 = vmax.f32 %v988, %v1078
  %v1180 = vmax.f32 %v990, %v1080
  %v1181 = vmax.f32 %v993, %v1083
  %v1182 = vmax.f32 %v995, %v1085
  %v1183 = vmax.f32 %v998, %v1088
  %v1184 = vmax.f32 %v1000, %v1090
  %v1185 = vmax.f32 %v1003, %v1093
  %v1186 = vmax.f32 %v1005, %v1095
  %v1187 = vmax.f32 %v1008, %v1098
  %v1188 = vmax.f32 %v1010, %v1100
  %v1189 = vmax.f32 %v1013, %v1103
  %v1190 = vmax.f32 %v1015, %v1105
  %v1191 = vmax.f32 %v1018, %v1108
  %v1192 = vmax.f32 %v1020, %v1110
  %v1193 = vmax.f32 %v1023, %v1113
  %v1194 = vmax.f32 %v1025, %v1115
  %v1195 = vmax.f32 %v1028, %v1118
  %v1196 = vmax.f32 %v1030, %v1120
  %v1197 = vmax.f32 %v1033, %v1123
  %v1198 = vmax.f32 %v1035, %v1125
  %v1199 = vmax.f32 %v1127, %v1163
  %v1200 = vmax.f32 %v1128, %v1164
  %v1201 = vmax.f32 %v1129, %v1165
  %v1202 = vmax.f32 %v1130, %v1166
  %v1203 = vmax.f32 %v1131, %v1167
  %v1204 = vmax.f32 %v1132, %v1168
  %v1205 = vmax.f32 %v1133, %v1169
  %v1206 = vmax.f32 %v1134, %v1170
  %v1207 = vmax.f32 %v1135, %v1171
  %v1208 = vmax.f32 %v1136, %v1172
  %v1209 = vmax.f32 %v1137, %v1173
  %v1210 = vmax.f32 %v1138, %v1174
  %v1211 = vmax.f32 %v1139, %v1175
  %v1212 = vmax.f32 %v1140, %v1176
  %v1213 = vmax.f32 %v1141, %v1177
  %v1214 = vmax.f32 %v1142, %v1178
  %v1215 = vmax.f32 %v1143, %v1179
  %v1216 = vmax.f32 %v1144, %v1180
  %v1217 = vmax.f32 %v1145, %v1181
  %v1218 = vmax.f32 %v1146, %v1182
  %v1219 = vmax.f32 %v1147, %v1183
  %v1220 = vmax.f32 %v1148, %v1184
  %v1221 = vmax.f32 %v1149, %v1185
  %v1222 = vmax.f32 %v1150, %v1186
  %v1223 = vmax.f32 %v1151, %v1187
  %v1224 = vmax.f32 %v1152, %v1188
  %v1225 = vmax.f32 %v1153, %v1189
  %v1226 = vmax.f32 %v1154, %v1190
  %v1227 = vmax.f32 %v1155, %v1191
  %v1228 = vmax.f32 %v1156, %v1192
  %v1229 = vmax.f32 %v1157, %v1193
  %v1230 = vmax.f32 %v1158, %v1194
  %v1231 = vmax.f32 %v1159, %v1195
  %v1232 = vmax.f32 %v1160, %v1196
  %v1233 = vmax.f32 %v1161, %v1197
  %v1234 = vmax.f32 %v1162, %v1198
  %v1235 = vld [vmem:[%s2] sm:$0x1]
  %v1237 = vperm.slane %v1235, 0
  %v1239 = vadd.f32 %v1199, %v1237
  %v1240 = vadd.f32 %v1200, %v1237
  %v1241 = vadd.f32 %v1201, %v1237
  %v1242 = vadd.f32 %v1202, %v1237
  %v1243 = vadd.f32 %v1203, %v1237
  %v1244 = vadd.f32 %v1204, %v1237
  %v1245 = vadd.f32 %v1205, %v1237
  %v1246 = vadd.f32 %v1206, %v1237
  %v1247 = vadd.f32 %v1207, %v1237
  %v1248 = vadd.f32 %v1208, %v1237
  %v1249 = vadd.f32 %v1209, %v1237
  %v1250 = vadd.f32 %v1210, %v1237
  %v1251 = vadd.f32 %v1211, %v1237
  %v1252 = vadd.f32 %v1212, %v1237
  %v1253 = vadd.f32 %v1213, %v1237
  %v1254 = vadd.f32 %v1214, %v1237
  %v1255 = vadd.f32 %v1215, %v1237
  %v1256 = vadd.f32 %v1216, %v1237
  %v1257 = vadd.f32 %v1217, %v1237
  %v1258 = vadd.f32 %v1218, %v1237
  %v1259 = vadd.f32 %v1219, %v1237
  %v1260 = vadd.f32 %v1220, %v1237
  %v1261 = vadd.f32 %v1221, %v1237
  %v1262 = vadd.f32 %v1222, %v1237
  %v1263 = vadd.f32 %v1223, %v1237
  %v1264 = vadd.f32 %v1224, %v1237
  %v1265 = vadd.f32 %v1225, %v1237
  %v1266 = vadd.f32 %v1226, %v1237
  %v1267 = vadd.f32 %v1227, %v1237
  %v1268 = vadd.f32 %v1228, %v1237
  %v1269 = vadd.f32 %v1229, %v1237
  %v1270 = vadd.f32 %v1230, %v1237
  %v1271 = vadd.f32 %v1231, %v1237
  %v1272 = vadd.f32 %v1232, %v1237
  %v1273 = vadd.f32 %v1233, %v1237
  %v1274 = vadd.f32 %v1234, %v1237
  %v1275 = vmax.f32 %v1239, 0.0
  %v1276 = vmax.f32 %v1240, 0.0
  %v1277 = vmax.f32 %v1241, 0.0
  %v1278 = vmax.f32 %v1242, 0.0
  %v1279 = vmax.f32 %v1243, 0.0
  %v1280 = vmax.f32 %v1244, 0.0
  %v1281 = vmax.f32 %v1245, 0.0
  %v1282 = vmax.f32 %v1246, 0.0
  %v1283 = vmax.f32 %v1247, 0.0
  %v1284 = vmax.f32 %v1248, 0.0
  %v1285 = vmax.f32 %v1249, 0.0
  %v1286 = vmax.f32 %v1250, 0.0
  %v1287 = vmax.f32 %v1251, 0.0
  %v1288 = vmax.f32 %v1252, 0.0
  %v1289 = vmax.f32 %v1253, 0.0
  %v1290 = vmax.f32 %v1254, 0.0
  %v1291 = vmax.f32 %v1255, 0.0
  %v1292 = vmax.f32 %v1256, 0.0
  %v1293 = vmax.f32 %v1257, 0.0
  %v1294 = vmax.f32 %v1258, 0.0
  %v1295 = vmax.f32 %v1259, 0.0
  %v1296 = vmax.f32 %v1260, 0.0
  %v1297 = vmax.f32 %v1261, 0.0
  %v1298 = vmax.f32 %v1262, 0.0
  %v1299 = vmax.f32 %v1263, 0.0
  %v1300 = vmax.f32 %v1264, 0.0
  %v1301 = vmax.f32 %v1265, 0.0
  %v1302 = vmax.f32 %v1266, 0.0
  %v1303 = vmax.f32 %v1267, 0.0
  %v1304 = vmax.f32 %v1268, 0.0
  %v1305 = vmax.f32 %v1269, 0.0
  %v1306 = vmax.f32 %v1270, 0.0
  %v1307 = vmax.f32 %v1271, 0.0
  %v1308 = vmax.f32 %v1272, 0.0
  %v1309 = vmax.f32 %v1273, 0.0
  %v1310 = vmax.f32 %v1274, 0.0
  %v1311 = vpack.c.bf16 %v1275, %v1275
  %v1312 = vpack.c.bf16 %v1276, %v1276
  %v1313 = vpack.c.bf16 %v1277, %v1277
  %v1314 = vpack.c.bf16 %v1278, %v1278
  %v1315 = vpack.c.bf16 %v1279, %v1279
  %v1316 = vpack.c.bf16 %v1280, %v1280
  %v1317 = vpack.c.bf16 %v1281, %v1281
  %v1318 = vpack.c.bf16 %v1282, %v1282
  %v1319 = vpack.c.bf16 %v1283, %v1283
  %v1320 = vpack.c.bf16 %v1284, %v1284
  %v1321 = vpack.c.bf16 %v1285, %v1285
  %v1322 = vpack.c.bf16 %v1286, %v1286
  %v1323 = vpack.c.bf16 %v1287, %v1287
  %v1324 = vpack.c.bf16 %v1288, %v1288
  %v1325 = vpack.c.bf16 %v1289, %v1289
  %v1326 = vpack.c.bf16 %v1290, %v1290
  %v1327 = vpack.c.bf16 %v1291, %v1291
  %v1328 = vpack.c.bf16 %v1292, %v1292
  %v1329 = vpack.c.bf16 %v1293, %v1293
  %v1330 = vpack.c.bf16 %v1294, %v1294
  %v1331 = vpack.c.bf16 %v1295, %v1295
  %v1332 = vpack.c.bf16 %v1296, %v1296
  %v1333 = vpack.c.bf16 %v1297, %v1297
  %v1334 = vpack.c.bf16 %v1298, %v1298
  %v1335 = vpack.c.bf16 %v1299, %v1299
  %v1336 = vpack.c.bf16 %v1300, %v1300
  %v1337 = vpack.c.bf16 %v1301, %v1301
  %v1338 = vpack.c.bf16 %v1302, %v1302
  %v1339 = vpack.c.bf16 %v1303, %v1303
  %v1340 = vpack.c.bf16 %v1304, %v1304
  %v1341 = vpack.c.bf16 %v1305, %v1305
  %v1342 = vpack.c.bf16 %v1306, %v1306
  %v1343 = vpack.c.bf16 %v1307, %v1307
  %v1344 = vpack.c.bf16 %v1308, %v1308
  %v1345 = vpack.c.bf16 %v1309, %v1309
  %v1346 = vpack.c.bf16 %v1310, %v1310
  %1347 = vst [vmem:[%s3] sm:$0xf] %v1311
  %1348 = vst [vmem:[%s3 + $0x4] sm:$0xf] %v1312
  %1349 = vst [vmem:[%s3 + $0x8] sm:$0xf] %v1313
  %1350 = vst [vmem:[%s3 + $0xc] sm:$0xf] %v1314
  %1351 = vst [vmem:[%s3 + $0x10] sm:$0xf] %v1315
  %1352 = vst [vmem:[%s3 + $0x14] sm:$0xf] %v1316
  %1353 = vst [vmem:[%s3 + $0x18] sm:$0xf] %v1317
  %1354 = vst [vmem:[%s3 + $0x1c] sm:$0xf] %v1318
  %1355 = vst [vmem:[%s3 + $0x20] sm:$0xf] %v1319
  %1356 = vst [vmem:[%s3 + $0x24] sm:$0xf] %v1320
  %1357 = vst [vmem:[%s3 + $0x28] sm:$0xf] %v1321
  %1358 = vst [vmem:[%s3 + $0x2c] sm:$0xf] %v1322
  %1359 = vst [vmem:[%s3 + $0x30] sm:$0xf] %v1323
  %1360 = vst [vmem:[%s3 + $0x34] sm:$0xf] %v1324
  %1361 = vst [vmem:[%s3 + $0x38] sm:$0xf] %v1325
  %1362 = vst [vmem:[%s3 + $0x3c] sm:$0xf] %v1326
  %1363 = vst [vmem:[%s3 + $0x40] sm:$0xf] %v1327
  %1364 = vst [vmem:[%s3 + $0x44] sm:$0xf] %v1328
  %1365 = vst [vmem:[%s3 + $0x48] sm:$0xf] %v1329
  %1366 = vst [vmem:[%s3 + $0x4c] sm:$0xf] %v1330
  %1367 = vst [vmem:[%s3 + $0x50] sm:$0xf] %v1331
  %1368 = vst [vmem:[%s3 + $0x54] sm:$0xf] %v1332
  %1369 = vst [vmem:[%s3 + $0x58] sm:$0xf] %v1333
  %1370 = vst [vmem:[%s3 + $0x5c] sm:$0xf] %v1334
  %1371 = vst [vmem:[%s3 + $0x60] sm:$0xf] %v1335
  %1372 = vst [vmem:[%s3 + $0x64] sm:$0xf] %v1336
  %1373 = vst [vmem:[%s3 + $0x68] sm:$0xf] %v1337
  %1374 = vst [vmem:[%s3 + $0x6c] sm:$0xf] %v1338
  %1375 = vst [vmem:[%s3 + $0x70] sm:$0xf] %v1339
  %1376 = vst [vmem:[%s3 + $0x74] sm:$0xf] %v1340
  %1377 = vst [vmem:[%s3 + $0x78] sm:$0xf] %v1341
  %1378 = vst [vmem:[%s3 + $0x7c] sm:$0xf] %v1342
  %1379 = vst [vmem:[%s3 + $0x80] sm:$0xf] %v1343
  %1380 = vst [vmem:[%s3 + $0x84] sm:$0xf] %v1344
  %1381 = vst [vmem:[%s3 + $0x88] sm:$0xf] %v1345
  %1382 = vst [vmem:[%s3 + $0x8c] sm:$0xf] %v1346
  // Predicated region
  $region14: #{cnn_forward.2} parent=0 // pred_check
    _
  $region15: #{cnn_forward.2} parent=0 // pred_check_branch
    %1384 = sbr.rel (0) target = $region17
  $region16: #{cnn_forward.2} parent=0 // pred_region
    _
  $region17: #{cnn_forward.2} parent=0 // pred_fallthru
    _
  // Predicated region
  $region18: #{cnn_forward.2} parent=0 // pred_check
    _
  $region19: #{cnn_forward.2} parent=0 // pred_check_branch
    %1386 = sbr.rel (0) target = $region21
  $region20: #{cnn_forward.2} parent=0 // pred_region
    _
  $region21: #{cnn_forward.2} parent=0 // pred_fallthru
    _

// kernel: cnn_forward.3
$region0: #{cnn_forward.3}
  #allocation0 [shape = 'u32[]', space=smem, size = 0x4, offset = 0x4, fixed_abs, tag = 'smem constant byte address 0x4 - core index']
  #allocation1 [shape = 'u32[72,128]{1,0:T(1,128)}', space=vmem, size = 0x9000, scoped, tag = 'internal scratch']
  #allocation2 [shape = 'bf16[16,64,512]{2,1,0:T(8,128)(2,1)}', space=vmem, size = 0x100000, scoped, tag = 'scratch operand']
  #allocation3 [shape = 's32[1]{0}', space=sflag, size = 0x4, scoped, tag = 'scratch operand']
  #allocation6 [shape = 's32[]', space=sflag, size = 0x4, offset = 0, fixed_abs, tag = 'sflag constant byte address 0x0 - dummy sync flag']
  %s0 = inlined_call_operand.vmem [shape: bf16[128,800], index: 0, kind: input, shape index: {}]
  %s1 = inlined_call_operand.vmem [shape: bf16[800,64], index: 1, kind: input, shape index: {}]
  %s2 = inlined_call_operand.vmem [shape: f32[1,64], index: 2, kind: input, shape index: {}]
  %s3 = inlined_call_operand.vmem [shape: bf16[16,64,512], index: 3, kind: input, shape index: {}]
  %s4 = inlined_call_operand.vmem [shape: f32[1,512], index: 4, kind: input, shape index: {}]
  %s5 = inlined_call_operand.vmem [shape: bf16[512,128], index: 5, kind: input, shape index: {}]
  %s6 = inlined_call_operand.vmem [shape: f32[1,128], index: 6, kind: input, shape index: {}]
  %s7 = inlined_call_operand.hbm [shape: f32[2,128], index: 7, kind: output, shape index: {}]
  %s8 = sld [smem:[#allocation0]]
  $region53: #{cnn_forward.3} parent=0
    _
  %s10 = ssub.s32 1, %s8
  %s11 = scalar_select 0, %s10, %s8
  $region1: #{cnn_forward.3} parent=0
    #allocation4 [shape = 'u8[1024]{0}', space=vmem, size = 0x400, scoped, tag = 'output window, operand 0, single buffered']
    #allocation5 [shape = 's32[1]{0}', space=sflag, size = 0x4, scoped, tag = 'scoped memory for cnn_forward.3']
    %12 = vsyncpa [#allocation5], 0
    // Predicated region
    $region2: #{cnn_forward.3} parent=1 // pred_check
      _
    $region3: #{cnn_forward.3} parent=1 // pred_check_branch
      %14 = sbr.rel (0) target = $region5
    $region4: #{cnn_forward.3} parent=1 // pred_region
      _
    $region5: #{cnn_forward.3} parent=1 // pred_fallthru
      _
    // Predicated region
    $region6: #{cnn_forward.3} parent=1 // pred_check
      _
    $region7: #{cnn_forward.3} parent=1 // pred_check_branch
      %16 = sbr.rel (0) target = $region9
    $region8: #{cnn_forward.3} parent=1 // pred_region
      _
    $region9: #{cnn_forward.3} parent=1 // pred_fallthru
      _
    // Predicated region
    $region10: #{cnn_forward.3} parent=1 // pred_check
      _
    $region11: #{cnn_forward.3} parent=1 // pred_check_branch
      %18 = sbr.rel (0) target = $region13
    $region12: #{cnn_forward.3} parent=1 // pred_region
      _
    $region13: #{cnn_forward.3} parent=1 // pred_fallthru
      _
    // Predicated region
    $region14: #{cnn_forward.3} parent=1 // pred_check
      _
    $region15: #{cnn_forward.3} parent=1 // pred_check_branch
      %20 = sbr.rel (0) target = $region17
    $region16: #{cnn_forward.3} parent=1 // pred_region
      _
    $region17: #{cnn_forward.3} parent=1 // pred_fallthru
      _
    // Predicated region
    $region18: #{cnn_forward.3} parent=1 // pred_check
      _
    $region19: #{cnn_forward.3} parent=1 // pred_check_branch
      %22 = sbr.rel (0) target = $region21
    $region20: #{cnn_forward.3} parent=1 // pred_region
      _
    $region21: #{cnn_forward.3} parent=1 // pred_fallthru
      _
    // Predicated region
    $region22: #{cnn_forward.3} parent=1 // pred_check
      _
    $region23: #{cnn_forward.3} parent=1 // pred_check_branch
      %24 = sbr.rel (0) target = $region25
    $region24: #{cnn_forward.3} parent=1 // pred_region
      _
    $region25: #{cnn_forward.3} parent=1 // pred_fallthru
      _
    // Predicated region
    $region26: #{cnn_forward.3} parent=1 // pred_check
      _
    $region27: #{cnn_forward.3} parent=1 // pred_check_branch
      %27 = sbr.rel (0) target = $region29
    $region28: #{cnn_forward.3} parent=1 // pred_region
      loop: start=0, step=1, limit=1
      $region30: #{cnn_forward.3} parent=28 // loop_pre_header
        _
      $region31: #{cnn_forward.3} parent=28 // loop_header
        %s29 = sphi 0, %s33
        %p30 = scmp.ge.s32.totalorder %s29, 1
        %s34 = sphi %s3, %s3
        %s35 = sphi [#allocation2], [#allocation2]
      $region32: #{cnn_forward.3} parent=28 // loop_header_branch
        %32 = sbr.rel (%p30) target = $region36
      $region33: #{cnn_forward.3} parent=28 // loop_body
        %v36 = vld [vmem:[%s34] sm:$0xff]
        %37 = vst [vmem:[%s35] sm:$0xff] %v36
        %v38 = vld [vmem:[%s34 + $0x8] sm:$0xff]
        %39 = vst [vmem:[%s35 + $0x8] sm:$0xff] %v38
        %v40 = vld [vmem:[%s34 + $0x10] sm:$0xff]
        %41 = vst [vmem:[%s35 + $0x10] sm:$0xff] %v40
        %v42 = vld [vmem:[%s34 + $0x18] sm:$0xff]
        %43 = vst [vmem:[%s35 + $0x18] sm:$0xff] %v42
        %v44 = vld [vmem:[%s34 + $0x20] sm:$0xff]
        %45 = vst [vmem:[%s35 + $0x20] sm:$0xff] %v44
        %v46 = vld [vmem:[%s34 + $0x28] sm:$0xff]
        %47 = vst [vmem:[%s35 + $0x28] sm:$0xff] %v46
        %v48 = vld [vmem:[%s34 + $0x30] sm:$0xff]
        %49 = vst [vmem:[%s35 + $0x30] sm:$0xff] %v48
        %v50 = vld [vmem:[%s34 + $0x38] sm:$0xff]
        %51 = vst [vmem:[%s35 + $0x38] sm:$0xff] %v50
        %v52 = vld [vmem:[%s34 + $0x40] sm:$0xff]
        %53 = vst [vmem:[%s35 + $0x40] sm:$0xff] %v52
        %v54 = vld [vmem:[%s34 + $0x48] sm:$0xff]
        %55 = vst [vmem:[%s35 + $0x48] sm:$0xff] %v54
        %v56 = vld [vmem:[%s34 + $0x50] sm:$0xff]
        %57 = vst [vmem:[%s35 + $0x50] sm:$0xff] %v56
        %v58 = vld [vmem:[%s34 + $0x58] sm:$0xff]
        %59 = vst [vmem:[%s35 + $0x58] sm:$0xff] %v58
        %v60 = vld [vmem:[%s34 + $0x60] sm:$0xff]
        %61 = vst [vmem:[%s35 + $0x60] sm:$0xff] %v60
        %v62 = vld [vmem:[%s34 + $0x68] sm:$0xff]
        %63 = vst [vmem:[%s35 + $0x68] sm:$0xff] %v62
        %v64 = vld [vmem:[%s34 + $0x70] sm:$0xff]
        %65 = vst [vmem:[%s35 + $0x70] sm:$0xff] %v64
        %v66 = vld [vmem:[%s34 + $0x78] sm:$0xff]
        %67 = vst [vmem:[%s35 + $0x78] sm:$0xff] %v66
        %v68 = vld [vmem:[%s34 + $0x80] sm:$0xff]
        %69 = vst [vmem:[%s35 + $0x80] sm:$0xff] %v68
        %v70 = vld [vmem:[%s34 + $0x88] sm:$0xff]
        %71 = vst [vmem:[%s35 + $0x88] sm:$0xff] %v70
        %v72 = vld [vmem:[%s34 + $0x90] sm:$0xff]
        %73 = vst [vmem:[%s35 + $0x90] sm:$0xff] %v72
        %v74 = vld [vmem:[%s34 + $0x98] sm:$0xff]
        %75 = vst [vmem:[%s35 + $0x98] sm:$0xff] %v74
        %v76 = vld [vmem:[%s34 + $0xa0] sm:$0xff]
        %77 = vst [vmem:[%s35 + $0xa0] sm:$0xff] %v76
        %v78 = vld [vmem:[%s34 + $0xa8] sm:$0xff]
        %79 = vst [vmem:[%s35 + $0xa8] sm:$0xff] %v78
        %v80 = vld [vmem:[%s34 + $0xb0] sm:$0xff]
        %81 = vst [vmem:[%s35 + $0xb0] sm:$0xff] %v80
        %v82 = vld [vmem:[%s34 + $0xb8] sm:$0xff]
        %83 = vst [vmem:[%s35 + $0xb8] sm:$0xff] %v82
        %v84 = vld [vmem:[%s34 + $0xc0] sm:$0xff]
        %85 = vst [vmem:[%s35 + $0xc0] sm:$0xff] %v84
        %v86 = vld [vmem:[%s34 + $0xc8] sm:$0xff]
        %87 = vst [vmem:[%s35 + $0xc8] sm:$0xff] %v86
        %v88 = vld [vmem:[%s34 + $0xd0] sm:$0xff]
        %89 = vst [vmem:[%s35 + $0xd0] sm:$0xff] %v88
        %v90 = vld [vmem:[%s34 + $0xd8] sm:$0xff]
        %91 = vst [vmem:[%s35 + $0xd8] sm:$0xff] %v90
        %v92 = vld [vmem:[%s34 + $0xe0] sm:$0xff]
        %93 = vst [vmem:[%s35 + $0xe0] sm:$0xff] %v92
        %v94 = vld [vmem:[%s34 + $0xe8] sm:$0xff]
        %95 = vst [vmem:[%s35 + $0xe8] sm:$0xff] %v94
        %v96 = vld [vmem:[%s34 + $0xf0] sm:$0xff]
        %97 = vst [vmem:[%s35 + $0xf0] sm:$0xff] %v96
        %v98 = vld [vmem:[%s34 + $0xf8] sm:$0xff]
        %99 = vst [vmem:[%s35 + $0xf8] sm:$0xff] %v98
        %v100 = vld [vmem:[%s34 + $0x100] sm:$0xff]
        %101 = vst [vmem:[%s35 + $0x100] sm:$0xff] %v100
        %v102 = vld [vmem:[%s34 + $0x108] sm:$0xff]
        %103 = vst [vmem:[%s35 + $0x108] sm:$0xff] %v102
        %v104 = vld [vmem:[%s34 + $0x110] sm:$0xff]
        %105 = vst [vmem:[%s35 + $0x110] sm:$0xff] %v104
        %v106 = vld [vmem:[%s34 + $0x118] sm:$0xff]
        %107 = vst [vmem:[%s35 + $0x118] sm:$0xff] %v106
        %v108 = vld [vmem:[%s34 + $0x120] sm:$0xff]
        %109 = vst [vmem:[%s35 + $0x120] sm:$0xff] %v108
        %v110 = vld [vmem:[%s34 + $0x128] sm:$0xff]
        %111 = vst [vmem:[%s35 + $0x128] sm:$0xff] %v110
        %v112 = vld [vmem:[%s34 + $0x130] sm:$0xff]
        %113 = vst [vmem:[%s35 + $0x130] sm:$0xff] %v112
        %v114 = vld [vmem:[%s34 + $0x138] sm:$0xff]
        %115 = vst [vmem:[%s35 + $0x138] sm:$0xff] %v114
        %v116 = vld [vmem:[%s34 + $0x140] sm:$0xff]
        %117 = vst [vmem:[%s35 + $0x140] sm:$0xff] %v116
        %v118 = vld [vmem:[%s34 + $0x148] sm:$0xff]
        %119 = vst [vmem:[%s35 + $0x148] sm:$0xff] %v118
        %v120 = vld [vmem:[%s34 + $0x150] sm:$0xff]
        %121 = vst [vmem:[%s35 + $0x150] sm:$0xff] %v120
        %v122 = vld [vmem:[%s34 + $0x158] sm:$0xff]
        %123 = vst [vmem:[%s35 + $0x158] sm:$0xff] %v122
        %v124 = vld [vmem:[%s34 + $0x160] sm:$0xff]
        %125 = vst [vmem:[%s35 + $0x160] sm:$0xff] %v124
        %v126 = vld [vmem:[%s34 + $0x168] sm:$0xff]
        %127 = vst [vmem:[%s35 + $0x168] sm:$0xff] %v126
        %v128 = vld [vmem:[%s34 + $0x170] sm:$0xff]
        %129 = vst [vmem:[%s35 + $0x170] sm:$0xff] %v128
        %v130 = vld [vmem:[%s34 + $0x178] sm:$0xff]
        %131 = vst [vmem:[%s35 + $0x178] sm:$0xff] %v130
        %v132 = vld [vmem:[%s34 + $0x180] sm:$0xff]
        %133 = vst [vmem:[%s35 + $0x180] sm:$0xff] %v132
        %v134 = vld [vmem:[%s34 + $0x188] sm:$0xff]
        %135 = vst [vmem:[%s35 + $0x188] sm:$0xff] %v134
        %v136 = vld [vmem:[%s34 + $0x190] sm:$0xff]
        %137 = vst [vmem:[%s35 + $0x190] sm:$0xff] %v136
        %v138 = vld [vmem:[%s34 + $0x198] sm:$0xff]
        %139 = vst [vmem:[%s35 + $0x198] sm:$0xff] %v138
        %v140 = vld [vmem:[%s34 + $0x1a0] sm:$0xff]
        %141 = vst [vmem:[%s35 + $0x1a0] sm:$0xff] %v140
        %v142 = vld [vmem:[%s34 + $0x1a8] sm:$0xff]
        %143 = vst [vmem:[%s35 + $0x1a8] sm:$0xff] %v142
        %v144 = vld [vmem:[%s34 + $0x1b0] sm:$0xff]
        %145 = vst [vmem:[%s35 + $0x1b0] sm:$0xff] %v144
        %v146 = vld [vmem:[%s34 + $0x1b8] sm:$0xff]
        %147 = vst [vmem:[%s35 + $0x1b8] sm:$0xff] %v146
        %v148 = vld [vmem:[%s34 + $0x1c0] sm:$0xff]
        %149 = vst [vmem:[%s35 + $0x1c0] sm:$0xff] %v148
        %v150 = vld [vmem:[%s34 + $0x1c8] sm:$0xff]
        %151 = vst [vmem:[%s35 + $0x1c8] sm:$0xff] %v150
        %v152 = vld [vmem:[%s34 + $0x1d0] sm:$0xff]
        %153 = vst [vmem:[%s35 + $0x1d0] sm:$0xff] %v152
        %v154 = vld [vmem:[%s34 + $0x1d8] sm:$0xff]
        %155 = vst [vmem:[%s35 + $0x1d8] sm:$0xff] %v154
        %v156 = vld [vmem:[%s34 + $0x1e0] sm:$0xff]
        %157 = vst [vmem:[%s35 + $0x1e0] sm:$0xff] %v156
        %v158 = vld [vmem:[%s34 + $0x1e8] sm:$0xff]
        %159 = vst [vmem:[%s35 + $0x1e8] sm:$0xff] %v158
        %v160 = vld [vmem:[%s34 + $0x1f0] sm:$0xff]
        %161 = vst [vmem:[%s35 + $0x1f0] sm:$0xff] %v160
        %v162 = vld [vmem:[%s34 + $0x1f8] sm:$0xff]
        %163 = vst [vmem:[%s35 + $0x1f8] sm:$0xff] %v162
        %v164 = vld [vmem:[%s34 + $0x200] sm:$0xff]
        %165 = vst [vmem:[%s35 + $0x200] sm:$0xff] %v164
        %v166 = vld [vmem:[%s34 + $0x208] sm:$0xff]
        %167 = vst [vmem:[%s35 + $0x208] sm:$0xff] %v166
        %v168 = vld [vmem:[%s34 + $0x210] sm:$0xff]
        %169 = vst [vmem:[%s35 + $0x210] sm:$0xff] %v168
        %v170 = vld [vmem:[%s34 + $0x218] sm:$0xff]
        %171 = vst [vmem:[%s35 + $0x218] sm:$0xff] %v170
        %v172 = vld [vmem:[%s34 + $0x220] sm:$0xff]
        %173 = vst [vmem:[%s35 + $0x220] sm:$0xff] %v172
        %v174 = vld [vmem:[%s34 + $0x228] sm:$0xff]
        %175 = vst [vmem:[%s35 + $0x228] sm:$0xff] %v174
        %v176 = vld [vmem:[%s34 + $0x230] sm:$0xff]
        %177 = vst [vmem:[%s35 + $0x230] sm:$0xff] %v176
        %v178 = vld [vmem:[%s34 + $0x238] sm:$0xff]
        %179 = vst [vmem:[%s35 + $0x238] sm:$0xff] %v178
        %v180 = vld [vmem:[%s34 + $0x240] sm:$0xff]
        %181 = vst [vmem:[%s35 + $0x240] sm:$0xff] %v180
        %v182 = vld [vmem:[%s34 + $0x248] sm:$0xff]
        %183 = vst [vmem:[%s35 + $0x248] sm:$0xff] %v182
        %v184 = vld [vmem:[%s34 + $0x250] sm:$0xff]
        %185 = vst [vmem:[%s35 + $0x250] sm:$0xff] %v184
        %v186 = vld [vmem:[%s34 + $0x258] sm:$0xff]
        %187 = vst [vmem:[%s35 + $0x258] sm:$0xff] %v186
        %v188 = vld [vmem:[%s34 + $0x260] sm:$0xff]
        %189 = vst [vmem:[%s35 + $0x260] sm:$0xff] %v188
        %v190 = vld [vmem:[%s34 + $0x268] sm:$0xff]
        %191 = vst [vmem:[%s35 + $0x268] sm:$0xff] %v190
        %v192 = vld [vmem:[%s34 + $0x270] sm:$0xff]
        %193 = vst [vmem:[%s35 + $0x270] sm:$0xff] %v192
        %v194 = vld [vmem:[%s34 + $0x278] sm:$0xff]
        %195 = vst [vmem:[%s35 + $0x278] sm:$0xff] %v194
        %v196 = vld [vmem:[%s34 + $0x280] sm:$0xff]
        %197 = vst [vmem:[%s35 + $0x280] sm:$0xff] %v196
        %v198 = vld [vmem:[%s34 + $0x288] sm:$0xff]
        %199 = vst [vmem:[%s35 + $0x288] sm:$0xff] %v198
        %v200 = vld [vmem:[%s34 + $0x290] sm:$0xff]
        %201 = vst [vmem:[%s35 + $0x290] sm:$0xff] %v200
        %v202 = vld [vmem:[%s34 + $0x298] sm:$0xff]
        %203 = vst [vmem:[%s35 + $0x298] sm:$0xff] %v202
        %v204 = vld [vmem:[%s34 + $0x2a0] sm:$0xff]
        %205 = vst [vmem:[%s35 + $0x2a0] sm:$0xff] %v204
        %v206 = vld [vmem:[%s34 + $0x2a8] sm:$0xff]
        %207 = vst [vmem:[%s35 + $0x2a8] sm:$0xff] %v206
        %v208 = vld [vmem:[%s34 + $0x2b0] sm:$0xff]
        %209 = vst [vmem:[%s35 + $0x2b0] sm:$0xff] %v208
        %v210 = vld [vmem:[%s34 + $0x2b8] sm:$0xff]
        %211 = vst [vmem:[%s35 + $0x2b8] sm:$0xff] %v210
        %v212 = vld [vmem:[%s34 + $0x2c0] sm:$0xff]
        %213 = vst [vmem:[%s35 + $0x2c0] sm:$0xff] %v212
        %v214 = vld [vmem:[%s34 + $0x2c8] sm:$0xff]
        %215 = vst [vmem:[%s35 + $0x2c8] sm:$0xff] %v214
        %v216 = vld [vmem:[%s34 + $0x2d0] sm:$0xff]
        %217 = vst [vmem:[%s35 + $0x2d0] sm:$0xff] %v216
        %v218 = vld [vmem:[%s34 + $0x2d8] sm:$0xff]
        %219 = vst [vmem:[%s35 + $0x2d8] sm:$0xff] %v218
        %v220 = vld [vmem:[%s34 + $0x2e0] sm:$0xff]
        %221 = vst [vmem:[%s35 + $0x2e0] sm:$0xff] %v220
        %v222 = vld [vmem:[%s34 + $0x2e8] sm:$0xff]
        %223 = vst [vmem:[%s35 + $0x2e8] sm:$0xff] %v222
        %v224 = vld [vmem:[%s34 + $0x2f0] sm:$0xff]
        %225 = vst [vmem:[%s35 + $0x2f0] sm:$0xff] %v224
        %v226 = vld [vmem:[%s34 + $0x2f8] sm:$0xff]
        %227 = vst [vmem:[%s35 + $0x2f8] sm:$0xff] %v226
        %v228 = vld [vmem:[%s34 + $0x300] sm:$0xff]
        %229 = vst [vmem:[%s35 + $0x300] sm:$0xff] %v228
        %v230 = vld [vmem:[%s34 + $0x308] sm:$0xff]
        %231 = vst [vmem:[%s35 + $0x308] sm:$0xff] %v230
        %v232 = vld [vmem:[%s34 + $0x310] sm:$0xff]
        %233 = vst [vmem:[%s35 + $0x310] sm:$0xff] %v232
        %v234 = vld [vmem:[%s34 + $0x318] sm:$0xff]
        %235 = vst [vmem:[%s35 + $0x318] sm:$0xff] %v234
        %v236 = vld [vmem:[%s34 + $0x320] sm:$0xff]
        %237 = vst [vmem:[%s35 + $0x320] sm:$0xff] %v236
        %v238 = vld [vmem:[%s34 + $0x328] sm:$0xff]
        %239 = vst [vmem:[%s35 + $0x328] sm:$0xff] %v238
        %v240 = vld [vmem:[%s34 + $0x330] sm:$0xff]
        %241 = vst [vmem:[%s35 + $0x330] sm:$0xff] %v240
        %v242 = vld [vmem:[%s34 + $0x338] sm:$0xff]
        %243 = vst [vmem:[%s35 + $0x338] sm:$0xff] %v242
        %v244 = vld [vmem:[%s34 + $0x340] sm:$0xff]
        %245 = vst [vmem:[%s35 + $0x340] sm:$0xff] %v244
        %v246 = vld [vmem:[%s34 + $0x348] sm:$0xff]
        %247 = vst [vmem:[%s35 + $0x348] sm:$0xff] %v246
        %v248 = vld [vmem:[%s34 + $0x350] sm:$0xff]
        %249 = vst [vmem:[%s35 + $0x350] sm:$0xff] %v248
        %v250 = vld [vmem:[%s34 + $0x358] sm:$0xff]
        %251 = vst [vmem:[%s35 + $0x358] sm:$0xff] %v250
        %v252 = vld [vmem:[%s34 + $0x360] sm:$0xff]
        %253 = vst [vmem:[%s35 + $0x360] sm:$0xff] %v252
        %v254 = vld [vmem:[%s34 + $0x368] sm:$0xff]
        %255 = vst [vmem:[%s35 + $0x368] sm:$0xff] %v254
        %v256 = vld [vmem:[%s34 + $0x370] sm:$0xff]
        %257 = vst [vmem:[%s35 + $0x370] sm:$0xff] %v256
        %v258 = vld [vmem:[%s34 + $0x378] sm:$0xff]
        %259 = vst [vmem:[%s35 + $0x378] sm:$0xff] %v258
        %v260 = vld [vmem:[%s34 + $0x380] sm:$0xff]
        %261 = vst [vmem:[%s35 + $0x380] sm:$0xff] %v260
        %v262 = vld [vmem:[%s34 + $0x388] sm:$0xff]
        %263 = vst [vmem:[%s35 + $0x388] sm:$0xff] %v262
        %v264 = vld [vmem:[%s34 + $0x390] sm:$0xff]
        %265 = vst [vmem:[%s35 + $0x390] sm:$0xff] %v264
        %v266 = vld [vmem:[%s34 + $0x398] sm:$0xff]
        %267 = vst [vmem:[%s35 + $0x398] sm:$0xff] %v266
        %v268 = vld [vmem:[%s34 + $0x3a0] sm:$0xff]
        %269 = vst [vmem:[%s35 + $0x3a0] sm:$0xff] %v268
        %v270 = vld [vmem:[%s34 + $0x3a8] sm:$0xff]
        %271 = vst [vmem:[%s35 + $0x3a8] sm:$0xff] %v270
        %v272 = vld [vmem:[%s34 + $0x3b0] sm:$0xff]
        %273 = vst [vmem:[%s35 + $0x3b0] sm:$0xff] %v272
        %v274 = vld [vmem:[%s34 + $0x3b8] sm:$0xff]
        %275 = vst [vmem:[%s35 + $0x3b8] sm:$0xff] %v274
        %v276 = vld [vmem:[%s34 + $0x3c0] sm:$0xff]
        %277 = vst [vmem:[%s35 + $0x3c0] sm:$0xff] %v276
        %v278 = vld [vmem:[%s34 + $0x3c8] sm:$0xff]
        %279 = vst [vmem:[%s35 + $0x3c8] sm:$0xff] %v278
        %v280 = vld [vmem:[%s34 + $0x3d0] sm:$0xff]
        %281 = vst [vmem:[%s35 + $0x3d0] sm:$0xff] %v280
        %v282 = vld [vmem:[%s34 + $0x3d8] sm:$0xff]
        %283 = vst [vmem:[%s35 + $0x3d8] sm:$0xff] %v282
        %v284 = vld [vmem:[%s34 + $0x3e0] sm:$0xff]
        %285 = vst [vmem:[%s35 + $0x3e0] sm:$0xff] %v284
        %v286 = vld [vmem:[%s34 + $0x3e8] sm:$0xff]
        %287 = vst [vmem:[%s35 + $0x3e8] sm:$0xff] %v286
        %v288 = vld [vmem:[%s34 + $0x3f0] sm:$0xff]
        %289 = vst [vmem:[%s35 + $0x3f0] sm:$0xff] %v288
        %v290 = vld [vmem:[%s34 + $0x3f8] sm:$0xff]
        %291 = vst [vmem:[%s35 + $0x3f8] sm:$0xff] %v290
        %v292 = vld [vmem:[%s34 + $0x400] sm:$0xff]
        %293 = vst [vmem:[%s35 + $0x400] sm:$0xff] %v292
        %v294 = vld [vmem:[%s34 + $0x408] sm:$0xff]
        %295 = vst [vmem:[%s35 + $0x408] sm:$0xff] %v294
        %v296 = vld [vmem:[%s34 + $0x410] sm:$0xff]
        %297 = vst [vmem:[%s35 + $0x410] sm:$0xff] %v296
        %v298 = vld [vmem:[%s34 + $0x418] sm:$0xff]
        %299 = vst [vmem:[%s35 + $0x418] sm:$0xff] %v298
        %v300 = vld [vmem:[%s34 + $0x420] sm:$0xff]
        %301 = vst [vmem:[%s35 + $0x420] sm:$0xff] %v300
        %v302 = vld [vmem:[%s34 + $0x428] sm:$0xff]
        %303 = vst [vmem:[%s35 + $0x428] sm:$0xff] %v302
        %v304 = vld [vmem:[%s34 + $0x430] sm:$0xff]
        %305 = vst [vmem:[%s35 + $0x430] sm:$0xff] %v304
        %v306 = vld [vmem:[%s34 + $0x438] sm:$0xff]
        %307 = vst [vmem:[%s35 + $0x438] sm:$0xff] %v306
        %v308 = vld [vmem:[%s34 + $0x440] sm:$0xff]
        %309 = vst [vmem:[%s35 + $0x440] sm:$0xff] %v308
        %v310 = vld [vmem:[%s34 + $0x448] sm:$0xff]
        %311 = vst [vmem:[%s35 + $0x448] sm:$0xff] %v310
        %v312 = vld [vmem:[%s34 + $0x450] sm:$0xff]
        %313 = vst [vmem:[%s35 + $0x450] sm:$0xff] %v312
        %v314 = vld [vmem:[%s34 + $0x458] sm:$0xff]
        %315 = vst [vmem:[%s35 + $0x458] sm:$0xff] %v314
        %v316 = vld [vmem:[%s34 + $0x460] sm:$0xff]
        %317 = vst [vmem:[%s35 + $0x460] sm:$0xff] %v316
        %v318 = vld [vmem:[%s34 + $0x468] sm:$0xff]
        %319 = vst [vmem:[%s35 + $0x468] sm:$0xff] %v318
        %v320 = vld [vmem:[%s34 + $0x470] sm:$0xff]
        %321 = vst [vmem:[%s35 + $0x470] sm:$0xff] %v320
        %v322 = vld [vmem:[%s34 + $0x478] sm:$0xff]
        %323 = vst [vmem:[%s35 + $0x478] sm:$0xff] %v322
        %v324 = vld [vmem:[%s34 + $0x480] sm:$0xff]
        %325 = vst [vmem:[%s35 + $0x480] sm:$0xff] %v324
        %v326 = vld [vmem:[%s34 + $0x488] sm:$0xff]
        %327 = vst [vmem:[%s35 + $0x488] sm:$0xff] %v326
        %v328 = vld [vmem:[%s34 + $0x490] sm:$0xff]
        %329 = vst [vmem:[%s35 + $0x490] sm:$0xff] %v328
        %v330 = vld [vmem:[%s34 + $0x498] sm:$0xff]
        %331 = vst [vmem:[%s35 + $0x498] sm:$0xff] %v330
        %v332 = vld [vmem:[%s34 + $0x4a0] sm:$0xff]
        %333 = vst [vmem:[%s35 + $0x4a0] sm:$0xff] %v332
        %v334 = vld [vmem:[%s34 + $0x4a8] sm:$0xff]
        %335 = vst [vmem:[%s35 + $0x4a8] sm:$0xff] %v334
        %v336 = vld [vmem:[%s34 + $0x4b0] sm:$0xff]
        %337 = vst [vmem:[%s35 + $0x4b0] sm:$0xff] %v336
        %v338 = vld [vmem:[%s34 + $0x4b8] sm:$0xff]
        %339 = vst [vmem:[%s35 + $0x4b8] sm:$0xff] %v338
        %v340 = vld [vmem:[%s34 + $0x4c0] sm:$0xff]
        %341 = vst [vmem:[%s35 + $0x4c0] sm:$0xff] %v340
        %v342 = vld [vmem:[%s34 + $0x4c8] sm:$0xff]
        %343 = vst [vmem:[%s35 + $0x4c8] sm:$0xff] %v342
        %v344 = vld [vmem:[%s34 + $0x4d0] sm:$0xff]
        %345 = vst [vmem:[%s35 + $0x4d0] sm:$0xff] %v344
        %v346 = vld [vmem:[%s34 + $0x4d8] sm:$0xff]
        %347 = vst [vmem:[%s35 + $0x4d8] sm:$0xff] %v346
        %v348 = vld [vmem:[%s34 + $0x4e0] sm:$0xff]
        %349 = vst [vmem:[%s35 + $0x4e0] sm:$0xff] %v348
        %v350 = vld [vmem:[%s34 + $0x4e8] sm:$0xff]
        %351 = vst [vmem:[%s35 + $0x4e8] sm:$0xff] %v350
        %v352 = vld [vmem:[%s34 + $0x4f0] sm:$0xff]
        %353 = vst [vmem:[%s35 + $0x4f0] sm:$0xff] %v352
        %v354 = vld [vmem:[%s34 + $0x4f8] sm:$0xff]
        %355 = vst [vmem:[%s35 + $0x4f8] sm:$0xff] %v354
        %v356 = vld [vmem:[%s34 + $0x500] sm:$0xff]
        %357 = vst [vmem:[%s35 + $0x500] sm:$0xff] %v356
        %v358 = vld [vmem:[%s34 + $0x508] sm:$0xff]
        %359 = vst [vmem:[%s35 + $0x508] sm:$0xff] %v358
        %v360 = vld [vmem:[%s34 + $0x510] sm:$0xff]
        %361 = vst [vmem:[%s35 + $0x510] sm:$0xff] %v360
        %v362 = vld [vmem:[%s34 + $0x518] sm:$0xff]
        %363 = vst [vmem:[%s35 + $0x518] sm:$0xff] %v362
        %v364 = vld [vmem:[%s34 + $0x520] sm:$0xff]
        %365 = vst [vmem:[%s35 + $0x520] sm:$0xff] %v364
        %v366 = vld [vmem:[%s34 + $0x528] sm:$0xff]
        %367 = vst [vmem:[%s35 + $0x528] sm:$0xff] %v366
        %v368 = vld [vmem:[%s34 + $0x530] sm:$0xff]
        %369 = vst [vmem:[%s35 + $0x530] sm:$0xff] %v368
        %v370 = vld [vmem:[%s34 + $0x538] sm:$0xff]
        %371 = vst [vmem:[%s35 + $0x538] sm:$0xff] %v370
        %v372 = vld [vmem:[%s34 + $0x540] sm:$0xff]
        %373 = vst [vmem:[%s35 + $0x540] sm:$0xff] %v372
        %v374 = vld [vmem:[%s34 + $0x548] sm:$0xff]
        %375 = vst [vmem:[%s35 + $0x548] sm:$0xff] %v374
        %v376 = vld [vmem:[%s34 + $0x550] sm:$0xff]
        %377 = vst [vmem:[%s35 + $0x550] sm:$0xff] %v376
        %v378 = vld [vmem:[%s34 + $0x558] sm:$0xff]
        %379 = vst [vmem:[%s35 + $0x558] sm:$0xff] %v378
        %v380 = vld [vmem:[%s34 + $0x560] sm:$0xff]
        %381 = vst [vmem:[%s35 + $0x560] sm:$0xff] %v380
        %v382 = vld [vmem:[%s34 + $0x568] sm:$0xff]
        %383 = vst [vmem:[%s35 + $0x568] sm:$0xff] %v382
        %v384 = vld [vmem:[%s34 + $0x570] sm:$0xff]
        %385 = vst [vmem:[%s35 + $0x570] sm:$0xff] %v384
        %v386 = vld [vmem:[%s34 + $0x578] sm:$0xff]
        %387 = vst [vmem:[%s35 + $0x578] sm:$0xff] %v386
        %v388 = vld [vmem:[%s34 + $0x580] sm:$0xff]
        %389 = vst [vmem:[%s35 + $0x580] sm:$0xff] %v388
        %v390 = vld [vmem:[%s34 + $0x588] sm:$0xff]
        %391 = vst [vmem:[%s35 + $0x588] sm:$0xff] %v390
        %v392 = vld [vmem:[%s34 + $0x590] sm:$0xff]
        %393 = vst [vmem:[%s35 + $0x590] sm:$0xff] %v392
        %v394 = vld [vmem:[%s34 + $0x598] sm:$0xff]
        %395 = vst [vmem:[%s35 + $0x598] sm:$0xff] %v394
        %v396 = vld [vmem:[%s34 + $0x5a0] sm:$0xff]
        %397 = vst [vmem:[%s35 + $0x5a0] sm:$0xff] %v396
        %v398 = vld [vmem:[%s34 + $0x5a8] sm:$0xff]
        %399 = vst [vmem:[%s35 + $0x5a8] sm:$0xff] %v398
        %v400 = vld [vmem:[%s34 + $0x5b0] sm:$0xff]
        %401 = vst [vmem:[%s35 + $0x5b0] sm:$0xff] %v400
        %v402 = vld [vmem:[%s34 + $0x5b8] sm:$0xff]
        %403 = vst [vmem:[%s35 + $0x5b8] sm:$0xff] %v402
        %v404 = vld [vmem:[%s34 + $0x5c0] sm:$0xff]
        %405 = vst [vmem:[%s35 + $0x5c0] sm:$0xff] %v404
        %v406 = vld [vmem:[%s34 + $0x5c8] sm:$0xff]
        %407 = vst [vmem:[%s35 + $0x5c8] sm:$0xff] %v406
        %v408 = vld [vmem:[%s34 + $0x5d0] sm:$0xff]
        %409 = vst [vmem:[%s35 + $0x5d0] sm:$0xff] %v408
        %v410 = vld [vmem:[%s34 + $0x5d8] sm:$0xff]
        %411 = vst [vmem:[%s35 + $0x5d8] sm:$0xff] %v410
        %v412 = vld [vmem:[%s34 + $0x5e0] sm:$0xff]
        %413 = vst [vmem:[%s35 + $0x5e0] sm:$0xff] %v412
        %v414 = vld [vmem:[%s34 + $0x5e8] sm:$0xff]
        %415 = vst [vmem:[%s35 + $0x5e8] sm:$0xff] %v414
        %v416 = vld [vmem:[%s34 + $0x5f0] sm:$0xff]
        %417 = vst [vmem:[%s35 + $0x5f0] sm:$0xff] %v416
        %v418 = vld [vmem:[%s34 + $0x5f8] sm:$0xff]
        %419 = vst [vmem:[%s35 + $0x5f8] sm:$0xff] %v418
        %v420 = vld [vmem:[%s34 + $0x600] sm:$0xff]
        %421 = vst [vmem:[%s35 + $0x600] sm:$0xff] %v420
        %v422 = vld [vmem:[%s34 + $0x608] sm:$0xff]
        %423 = vst [vmem:[%s35 + $0x608] sm:$0xff] %v422
        %v424 = vld [vmem:[%s34 + $0x610] sm:$0xff]
        %425 = vst [vmem:[%s35 + $0x610] sm:$0xff] %v424
        %v426 = vld [vmem:[%s34 + $0x618] sm:$0xff]
        %427 = vst [vmem:[%s35 + $0x618] sm:$0xff] %v426
        %v428 = vld [vmem:[%s34 + $0x620] sm:$0xff]
        %429 = vst [vmem:[%s35 + $0x620] sm:$0xff] %v428
        %v430 = vld [vmem:[%s34 + $0x628] sm:$0xff]
        %431 = vst [vmem:[%s35 + $0x628] sm:$0xff] %v430
        %v432 = vld [vmem:[%s34 + $0x630] sm:$0xff]
        %433 = vst [vmem:[%s35 + $0x630] sm:$0xff] %v432
        %v434 = vld [vmem:[%s34 + $0x638] sm:$0xff]
        %435 = vst [vmem:[%s35 + $0x638] sm:$0xff] %v434
        %v436 = vld [vmem:[%s34 + $0x640] sm:$0xff]
        %437 = vst [vmem:[%s35 + $0x640] sm:$0xff] %v436
        %v438 = vld [vmem:[%s34 + $0x648] sm:$0xff]
        %439 = vst [vmem:[%s35 + $0x648] sm:$0xff] %v438
        %v440 = vld [vmem:[%s34 + $0x650] sm:$0xff]
        %441 = vst [vmem:[%s35 + $0x650] sm:$0xff] %v440
        %v442 = vld [vmem:[%s34 + $0x658] sm:$0xff]
        %443 = vst [vmem:[%s35 + $0x658] sm:$0xff] %v442
        %v444 = vld [vmem:[%s34 + $0x660] sm:$0xff]
        %445 = vst [vmem:[%s35 + $0x660] sm:$0xff] %v444
        %v446 = vld [vmem:[%s34 + $0x668] sm:$0xff]
        %447 = vst [vmem:[%s35 + $0x668] sm:$0xff] %v446
        %v448 = vld [vmem:[%s34 + $0x670] sm:$0xff]
        %449 = vst [vmem:[%s35 + $0x670] sm:$0xff] %v448
        %v450 = vld [vmem:[%s34 + $0x678] sm:$0xff]
        %451 = vst [vmem:[%s35 + $0x678] sm:$0xff] %v450
        %v452 = vld [vmem:[%s34 + $0x680] sm:$0xff]
        %453 = vst [vmem:[%s35 + $0x680] sm:$0xff] %v452
        %v454 = vld [vmem:[%s34 + $0x688] sm:$0xff]
        %455 = vst [vmem:[%s35 + $0x688] sm:$0xff] %v454
        %v456 = vld [vmem:[%s34 + $0x690] sm:$0xff]
        %457 = vst [vmem:[%s35 + $0x690] sm:$0xff] %v456
        %v458 = vld [vmem:[%s34 + $0x698] sm:$0xff]
        %459 = vst [vmem:[%s35 + $0x698] sm:$0xff] %v458
        %v460 = vld [vmem:[%s34 + $0x6a0] sm:$0xff]
        %461 = vst [vmem:[%s35 + $0x6a0] sm:$0xff] %v460
        %v462 = vld [vmem:[%s34 + $0x6a8] sm:$0xff]
        %463 = vst [vmem:[%s35 + $0x6a8] sm:$0xff] %v462
        %v464 = vld [vmem:[%s34 + $0x6b0] sm:$0xff]
        %465 = vst [vmem:[%s35 + $0x6b0] sm:$0xff] %v464
        %v466 = vld [vmem:[%s34 + $0x6b8] sm:$0xff]
        %467 = vst [vmem:[%s35 + $0x6b8] sm:$0xff] %v466
        %v468 = vld [vmem:[%s34 + $0x6c0] sm:$0xff]
        %469 = vst [vmem:[%s35 + $0x6c0] sm:$0xff] %v468
        %v470 = vld [vmem:[%s34 + $0x6c8] sm:$0xff]
        %471 = vst [vmem:[%s35 + $0x6c8] sm:$0xff] %v470
        %v472 = vld [vmem:[%s34 + $0x6d0] sm:$0xff]
        %473 = vst [vmem:[%s35 + $0x6d0] sm:$0xff] %v472
        %v474 = vld [vmem:[%s34 + $0x6d8] sm:$0xff]
        %475 = vst [vmem:[%s35 + $0x6d8] sm:$0xff] %v474
        %v476 = vld [vmem:[%s34 + $0x6e0] sm:$0xff]
        %477 = vst [vmem:[%s35 + $0x6e0] sm:$0xff] %v476
        %v478 = vld [vmem:[%s34 + $0x6e8] sm:$0xff]
        %479 = vst [vmem:[%s35 + $0x6e8] sm:$0xff] %v478
        %v480 = vld [vmem:[%s34 + $0x6f0] sm:$0xff]
        %481 = vst [vmem:[%s35 + $0x6f0] sm:$0xff] %v480
        %v482 = vld [vmem:[%s34 + $0x6f8] sm:$0xff]
        %483 = vst [vmem:[%s35 + $0x6f8] sm:$0xff] %v482
        %v484 = vld [vmem:[%s34 + $0x700] sm:$0xff]
        %485 = vst [vmem:[%s35 + $0x700] sm:$0xff] %v484
        %v486 = vld [vmem:[%s34 + $0x708] sm:$0xff]
        %487 = vst [vmem:[%s35 + $0x708] sm:$0xff] %v486
        %v488 = vld [vmem:[%s34 + $0x710] sm:$0xff]
        %489 = vst [vmem:[%s35 + $0x710] sm:$0xff] %v488
        %v490 = vld [vmem:[%s34 + $0x718] sm:$0xff]
        %491 = vst [vmem:[%s35 + $0x718] sm:$0xff] %v490
        %v492 = vld [vmem:[%s34 + $0x720] sm:$0xff]
        %493 = vst [vmem:[%s35 + $0x720] sm:$0xff] %v492
        %v494 = vld [vmem:[%s34 + $0x728] sm:$0xff]
        %495 = vst [vmem:[%s35 + $0x728] sm:$0xff] %v494
        %v496 = vld [vmem:[%s34 + $0x730] sm:$0xff]
        %497 = vst [vmem:[%s35 + $0x730] sm:$0xff] %v496
        %v498 = vld [vmem:[%s34 + $0x738] sm:$0xff]
        %499 = vst [vmem:[%s35 + $0x738] sm:$0xff] %v498
        %v500 = vld [vmem:[%s34 + $0x740] sm:$0xff]
        %501 = vst [vmem:[%s35 + $0x740] sm:$0xff] %v500
        %v502 = vld [vmem:[%s34 + $0x748] sm:$0xff]
        %503 = vst [vmem:[%s35 + $0x748] sm:$0xff] %v502
        %v504 = vld [vmem:[%s34 + $0x750] sm:$0xff]
        %505 = vst [vmem:[%s35 + $0x750] sm:$0xff] %v504
        %v506 = vld [vmem:[%s34 + $0x758] sm:$0xff]
        %507 = vst [vmem:[%s35 + $0x758] sm:$0xff] %v506
        %v508 = vld [vmem:[%s34 + $0x760] sm:$0xff]
        %509 = vst [vmem:[%s35 + $0x760] sm:$0xff] %v508
        %v510 = vld [vmem:[%s34 + $0x768] sm:$0xff]
        %511 = vst [vmem:[%s35 + $0x768] sm:$0xff] %v510
        %v512 = vld [vmem:[%s34 + $0x770] sm:$0xff]
        %513 = vst [vmem:[%s35 + $0x770] sm:$0xff] %v512
        %v514 = vld [vmem:[%s34 + $0x778] sm:$0xff]
        %515 = vst [vmem:[%s35 + $0x778] sm:$0xff] %v514
        %v516 = vld [vmem:[%s34 + $0x780] sm:$0xff]
        %517 = vst [vmem:[%s35 + $0x780] sm:$0xff] %v516
        %v518 = vld [vmem:[%s34 + $0x788] sm:$0xff]
        %519 = vst [vmem:[%s35 + $0x788] sm:$0xff] %v518
        %v520 = vld [vmem:[%s34 + $0x790] sm:$0xff]
        %521 = vst [vmem:[%s35 + $0x790] sm:$0xff] %v520
        %v522 = vld [vmem:[%s34 + $0x798] sm:$0xff]
        %523 = vst [vmem:[%s35 + $0x798] sm:$0xff] %v522
        %v524 = vld [vmem:[%s34 + $0x7a0] sm:$0xff]
        %525 = vst [vmem:[%s35 + $0x7a0] sm:$0xff] %v524
        %v526 = vld [vmem:[%s34 + $0x7a8] sm:$0xff]
        %527 = vst [vmem:[%s35 + $0x7a8] sm:$0xff] %v526
        %v528 = vld [vmem:[%s34 + $0x7b0] sm:$0xff]
        %529 = vst [vmem:[%s35 + $0x7b0] sm:$0xff] %v528
        %v530 = vld [vmem:[%s34 + $0x7b8] sm:$0xff]
        %531 = vst [vmem:[%s35 + $0x7b8] sm:$0xff] %v530
        %v532 = vld [vmem:[%s34 + $0x7c0] sm:$0xff]
        %533 = vst [vmem:[%s35 + $0x7c0] sm:$0xff] %v532
        %v534 = vld [vmem:[%s34 + $0x7c8] sm:$0xff]
        %535 = vst [vmem:[%s35 + $0x7c8] sm:$0xff] %v534
        %v536 = vld [vmem:[%s34 + $0x7d0] sm:$0xff]
        %537 = vst [vmem:[%s35 + $0x7d0] sm:$0xff] %v536
        %v538 = vld [vmem:[%s34 + $0x7d8] sm:$0xff]
        %539 = vst [vmem:[%s35 + $0x7d8] sm:$0xff] %v538
        %v540 = vld [vmem:[%s34 + $0x7e0] sm:$0xff]
        %541 = vst [vmem:[%s35 + $0x7e0] sm:$0xff] %v540
        %v542 = vld [vmem:[%s34 + $0x7e8] sm:$0xff]
        %543 = vst [vmem:[%s35 + $0x7e8] sm:$0xff] %v542
        %v544 = vld [vmem:[%s34 + $0x7f0] sm:$0xff]
        %545 = vst [vmem:[%s35 + $0x7f0] sm:$0xff] %v544
        %v546 = vld [vmem:[%s34 + $0x7f8] sm:$0xff]
        %547 = vst [vmem:[%s35 + $0x7f8] sm:$0xff] %v546
      $region34: #{cnn_forward.3} parent=28 // loop_footer
        %s33 = sadd.s32 1, %s29
      $region35: #{cnn_forward.3} parent=28 // loop_footer_branch
        %28 = sbr.rel target = $region31
      $region36: #{cnn_forward.3} parent=28 // loop_exit
        _
    $region29: #{cnn_forward.3} parent=1 // pred_fallthru
      _
    // Predicated region
    $region37: #{cnn_forward.3} parent=1 // pred_check
      _
    $region38: #{cnn_forward.3} parent=1 // pred_check_branch
      %549 = sbr.rel target = $region40
    $region39: #{cnn_forward.3} parent=1 // pred_region
      _
    $region40: #{cnn_forward.3} parent=1 // pred_fallthru
      _
    // Predicated region
    $region41: #{cnn_forward.3} parent=1 // pred_check
      _
    $region42: #{cnn_forward.3} parent=1 // pred_check_branch
      %552 = sbr.rel (0) target = $region44
    $region43: #{cnn_forward.3} parent=1 // pred_region
      %553 = vsyncadd [#allocation3], 32768
    $region44: #{cnn_forward.3} parent=1 // pred_fallthru
      _
    %v554 = vld [vmem:[%s0] sm:$0xff]
    %v555 = vld [vmem:[%s0 + $0x8] sm:$0xff]
    %v556 = vld [vmem:[%s0 + $0x10] sm:$0xff]
    %v557 = vld [vmem:[%s0 + $0x18] sm:$0xf]
    %v558 = vld [vmem:[%s0 + $0x1c] sm:$0xff]
    %v559 = vld [vmem:[%s0 + $0x24] sm:$0xff]
    %v560 = vld [vmem:[%s0 + $0x2c] sm:$0xff]
    %v561 = vld [vmem:[%s0 + $0x34] sm:$0xf]
    %v562 = vld [vmem:[%s0 + $0x38] sm:$0xff]
    %v563 = vld [vmem:[%s0 + $0x40] sm:$0xff]
    %v564 = vld [vmem:[%s0 + $0x48] sm:$0xff]
    %v565 = vld [vmem:[%s0 + $0x50] sm:$0xf]
    %v566 = vld [vmem:[%s0 + $0x54] sm:$0xff]
    %v567 = vld [vmem:[%s0 + $0x5c] sm:$0xff]
    %v568 = vld [vmem:[%s0 + $0x64] sm:$0xff]
    %v569 = vld [vmem:[%s0 + $0x6c] sm:$0xf]
    %v570 = vld [vmem:[%s0 + $0x70] sm:$0xff]
    %v571 = vld [vmem:[%s0 + $0x78] sm:$0xff]
    %v572 = vld [vmem:[%s0 + $0x80] sm:$0xff]
    %v573 = vld [vmem:[%s0 + $0x88] sm:$0xf]
    %v574 = vld [vmem:[%s0 + $0x8c] sm:$0xff]
    %v575 = vld [vmem:[%s0 + $0x94] sm:$0xff]
    %v576 = vld [vmem:[%s0 + $0x9c] sm:$0xff]
    %v577 = vld [vmem:[%s0 + $0xa4] sm:$0xf]
    %v578 = vld [vmem:[%s0 + $0xa8] sm:$0xff]
    %v579 = vld [vmem:[%s0 + $0xb0] sm:$0xff]
    %v580 = vld [vmem:[%s0 + $0xb8] sm:$0xff]
    %v581 = vld [vmem:[%s0 + $0xc0] sm:$0xf]
    %v582 = vld [vmem:[%s0 + $0xc4] sm:$0xff]
    %v583 = vld [vmem:[%s0 + $0xcc] sm:$0xff]
    %v584 = vld [vmem:[%s0 + $0xd4] sm:$0xff]
    %v585 = vld [vmem:[%s0 + $0xdc] sm:$0xf]
    %v586 = vld [vmem:[%s0 + $0xe0] sm:$0xff]
    %v587 = vld [vmem:[%s0 + $0xe8] sm:$0xff]
    %v588 = vld [vmem:[%s0 + $0xf0] sm:$0xff]
    %v589 = vld [vmem:[%s0 + $0xf8] sm:$0xf]
    %v590 = vld [vmem:[%s0 + $0xfc] sm:$0xff]
    %v591 = vld [vmem:[%s0 + $0x104] sm:$0xff]
    %v592 = vld [vmem:[%s0 + $0x10c] sm:$0xff]
    %v593 = vld [vmem:[%s0 + $0x114] sm:$0xf]
    %v594 = vld [vmem:[%s0 + $0x118] sm:$0xff]
    %v595 = vld [vmem:[%s0 + $0x120] sm:$0xff]
    %v596 = vld [vmem:[%s0 + $0x128] sm:$0xff]
    %v597 = vld [vmem:[%s0 + $0x130] sm:$0xf]
    %v598 = vld [vmem:[%s0 + $0x134] sm:$0xff]
    %v599 = vld [vmem:[%s0 + $0x13c] sm:$0xff]
    %v600 = vld [vmem:[%s0 + $0x144] sm:$0xff]
    %v601 = vld [vmem:[%s0 + $0x14c] sm:$0xf]
    %v602 = vld [vmem:[%s0 + $0x150] sm:$0xff]
    %v603 = vld [vmem:[%s0 + $0x158] sm:$0xff]
    %v604 = vld [vmem:[%s0 + $0x160] sm:$0xff]
    %v605 = vld [vmem:[%s0 + $0x168] sm:$0xf]
    %v606 = vld [vmem:[%s0 + $0x16c] sm:$0xff]
    %v607 = vld [vmem:[%s0 + $0x174] sm:$0xff]
    %v608 = vld [vmem:[%s0 + $0x17c] sm:$0xff]
    %v609 = vld [vmem:[%s0 + $0x184] sm:$0xf]
    %v610 = vld [vmem:[%s0 + $0x188] sm:$0xff]
    %v611 = vld [vmem:[%s0 + $0x190] sm:$0xff]
    %v612 = vld [vmem:[%s0 + $0x198] sm:$0xff]
    %v613 = vld [vmem:[%s0 + $0x1a0] sm:$0xf]
    %v614 = vld [vmem:[%s0 + $0x1a4] sm:$0xff]
    %v615 = vld [vmem:[%s0 + $0x1ac] sm:$0xff]
    %v616 = vld [vmem:[%s0 + $0x1b4] sm:$0xff]
    %v617 = vld [vmem:[%s0 + $0x1bc] sm:$0xf]
    %v618 = vld [vmem:[%s1] sm:$0xf]
    %v619 = vld [vmem:[%s1 + $0x4] sm:$0xf]
    %v620 = vld [vmem:[%s1 + $0x8] sm:$0xf]
    %v621 = vld [vmem:[%s1 + $0xc] sm:$0xf]
    %v622 = vld [vmem:[%s1 + $0x10] sm:$0xf]
    %v623 = vld [vmem:[%s1 + $0x14] sm:$0xf]
    %v624 = vld [vmem:[%s1 + $0x18] sm:$0xf]
    %v625 = vld [vmem:[%s1 + $0x1c] sm:$0xf]
    %v626 = vld [vmem:[%s1 + $0x20] sm:$0xf]
    %v627 = vld [vmem:[%s1 + $0x24] sm:$0xf]
    %v628 = vld [vmem:[%s1 + $0x28] sm:$0xf]
    %v629 = vld [vmem:[%s1 + $0x2c] sm:$0xf]
    %v630 = vld [vmem:[%s1 + $0x30] sm:$0xf]
    %v631 = vld [vmem:[%s1 + $0x34] sm:$0xf]
    %v632 = vld [vmem:[%s1 + $0x38] sm:$0xf]
    %v633 = vld [vmem:[%s1 + $0x3c] sm:$0xf]
    %v634 = vld [vmem:[%s1 + $0x40] sm:$0xf]
    %v635 = vld [vmem:[%s1 + $0x44] sm:$0xf]
    %v636 = vld [vmem:[%s1 + $0x48] sm:$0xf]
    %v637 = vld [vmem:[%s1 + $0x4c] sm:$0xf]
    %v638 = vld [vmem:[%s1 + $0x50] sm:$0xf]
    %v639 = vld [vmem:[%s1 + $0x54] sm:$0xf]
    %v640 = vld [vmem:[%s1 + $0x58] sm:$0xf]
    %v641 = vld [vmem:[%s1 + $0x5c] sm:$0xf]
    %v642 = vld [vmem:[%s1 + $0x60] sm:$0xf]
    %v643 = vld [vmem:[%s1 + $0x64] sm:$0xf]
    %v644 = vld [vmem:[%s1 + $0x68] sm:$0xf]
    %v645 = vld [vmem:[%s1 + $0x6c] sm:$0xf]
    %v646 = vld [vmem:[%s1 + $0x70] sm:$0xf]
    %v647 = vld [vmem:[%s1 + $0x74] sm:$0xf]
    %v648 = vld [vmem:[%s1 + $0x78] sm:$0xf]
    %v649 = vld [vmem:[%s1 + $0x7c] sm:$0xf]
    %v650 = vld [vmem:[%s1 + $0x80] sm:$0xf]
    %v651 = vld [vmem:[%s1 + $0x84] sm:$0xf]
    %v652 = vld [vmem:[%s1 + $0x88] sm:$0xf]
    %v653 = vld [vmem:[%s1 + $0x8c] sm:$0xf]
    %v654 = vld [vmem:[%s1 + $0x90] sm:$0xf]
    %v655 = vld [vmem:[%s1 + $0x94] sm:$0xf]
    %v656 = vld [vmem:[%s1 + $0x98] sm:$0xf]
    %v657 = vld [vmem:[%s1 + $0x9c] sm:$0xf]
    %v658 = vld [vmem:[%s1 + $0xa0] sm:$0xf]
    %v659 = vld [vmem:[%s1 + $0xa4] sm:$0xf]
    %v660 = vld [vmem:[%s1 + $0xa8] sm:$0xf]
    %v661 = vld [vmem:[%s1 + $0xac] sm:$0xf]
    %v662 = vld [vmem:[%s1 + $0xb0] sm:$0xf]
    %v663 = vld [vmem:[%s1 + $0xb4] sm:$0xf]
    %v664 = vld [vmem:[%s1 + $0xb8] sm:$0xf]
    %v665 = vld [vmem:[%s1 + $0xbc] sm:$0xf]
    %v666 = vld [vmem:[%s1 + $0xc0] sm:$0xf]
    %v667 = vld [vmem:[%s1 + $0xc4] sm:$0xf]
    %v668 = vld [vmem:[%s1 + $0xc8] sm:$0xf]
    %v669 = vld [vmem:[%s1 + $0xcc] sm:$0xf]
    %v670 = vld [vmem:[%s1 + $0xd0] sm:$0xf]
    %v671 = vld [vmem:[%s1 + $0xd4] sm:$0xf]
    %v672 = vld [vmem:[%s1 + $0xd8] sm:$0xf]
    %v673 = vld [vmem:[%s1 + $0xdc] sm:$0xf]
    %v674 = vld [vmem:[%s1 + $0xe0] sm:$0xf]
    %v675 = vld [vmem:[%s1 + $0xe4] sm:$0xf]
    %v676 = vld [vmem:[%s1 + $0xe8] sm:$0xf]
    %v677 = vld [vmem:[%s1 + $0xec] sm:$0xf]
    %v678 = vld [vmem:[%s1 + $0xf0] sm:$0xf]
    %v679 = vld [vmem:[%s1 + $0xf4] sm:$0xf]
    %v680 = vld [vmem:[%s1 + $0xf8] sm:$0xf]
    %v681 = vld [vmem:[%s1 + $0xfc] sm:$0xf]
    %v682 = vld [vmem:[%s1 + $0x100] sm:$0xf]
    %v683 = vld [vmem:[%s1 + $0x104] sm:$0xf]
    %v684 = vld [vmem:[%s1 + $0x108] sm:$0xf]
    %v685 = vld [vmem:[%s1 + $0x10c] sm:$0xf]
    %v686 = vld [vmem:[%s1 + $0x110] sm:$0xf]
    %v687 = vld [vmem:[%s1 + $0x114] sm:$0xf]
    %v688 = vld [vmem:[%s1 + $0x118] sm:$0xf]
    %v689 = vld [vmem:[%s1 + $0x11c] sm:$0xf]
    %v690 = vld [vmem:[%s1 + $0x120] sm:$0xf]
    %v691 = vld [vmem:[%s1 + $0x124] sm:$0xf]
    %v692 = vld [vmem:[%s1 + $0x128] sm:$0xf]
    %v693 = vld [vmem:[%s1 + $0x12c] sm:$0xf]
    %v694 = vld [vmem:[%s1 + $0x130] sm:$0xf]
    %v695 = vld [vmem:[%s1 + $0x134] sm:$0xf]
    %v696 = vld [vmem:[%s1 + $0x138] sm:$0xf]
    %v697 = vld [vmem:[%s1 + $0x13c] sm:$0xf]
    %v698 = vld [vmem:[%s1 + $0x140] sm:$0xf]
    %v699 = vld [vmem:[%s1 + $0x144] sm:$0xf]
    %v700 = vld [vmem:[%s1 + $0x148] sm:$0xf]
    %v701 = vld [vmem:[%s1 + $0x14c] sm:$0xf]
    %v702 = vld [vmem:[%s1 + $0x150] sm:$0xf]
    %v703 = vld [vmem:[%s1 + $0x154] sm:$0xf]
    %v704 = vld [vmem:[%s1 + $0x158] sm:$0xf]
    %v705 = vld [vmem:[%s1 + $0x15c] sm:$0xf]
    %v706 = vld [vmem:[%s1 + $0x160] sm:$0xf]
    %v707 = vld [vmem:[%s1 + $0x164] sm:$0xf]
    %v708 = vld [vmem:[%s1 + $0x168] sm:$0xf]
    %v709 = vld [vmem:[%s1 + $0x16c] sm:$0xf]
    %v710 = vld [vmem:[%s1 + $0x170] sm:$0xf]
    %v711 = vld [vmem:[%s1 + $0x174] sm:$0xf]
    %v712 = vld [vmem:[%s1 + $0x178] sm:$0xf]
    %v713 = vld [vmem:[%s1 + $0x17c] sm:$0xf]
    %v714 = vld [vmem:[%s1 + $0x180] sm:$0xf]
    %v715 = vld [vmem:[%s1 + $0x184] sm:$0xf]
    %v716 = vld [vmem:[%s1 + $0x188] sm:$0xf]
    %v717 = vld [vmem:[%s1 + $0x18c] sm:$0xf]
    %v782 = vunpack.c.l.b16 %v554
    %v783 = vunpack.c.h.b16 %v554
    %v784 = vunpack.c.l.b16 %v555
    %v785 = vunpack.c.h.b16 %v555
    %v786 = vunpack.c.l.b16 %v556
    %v787 = vunpack.c.h.b16 %v556
    %v788 = vunpack.c.l.b16 %v557
    %v789 = vunpack.c.l.b16 %v558
    %v790 = vunpack.c.h.b16 %v558
    %v791 = vunpack.c.l.b16 %v559
    %v792 = vunpack.c.h.b16 %v559
    %v793 = vunpack.c.l.b16 %v560
    %v794 = vunpack.c.h.b16 %v560
    %v795 = vunpack.c.l.b16 %v561
    %v796 = vunpack.c.l.b16 %v562
    %v797 = vunpack.c.h.b16 %v562
    %v798 = vunpack.c.l.b16 %v563
    %v799 = vunpack.c.h.b16 %v563
    %v800 = vunpack.c.l.b16 %v564
    %v801 = vunpack.c.h.b16 %v564
    %v802 = vunpack.c.l.b16 %v565
    %v803 = vunpack.c.l.b16 %v566
    %v804 = vunpack.c.h.b16 %v566
    %v805 = vunpack.c.l.b16 %v567
    %v806 = vunpack.c.h.b16 %v567
    %v807 = vunpack.c.l.b16 %v568
    %v808 = vunpack.c.h.b16 %v568
    %v809 = vunpack.c.l.b16 %v569
    %v810 = vunpack.c.l.b16 %v570
    %v811 = vunpack.c.h.b16 %v570
    %v812 = vunpack.c.l.b16 %v571
    %v813 = vunpack.c.h.b16 %v571
    %v814 = vunpack.c.l.b16 %v572
    %v815 = vunpack.c.h.b16 %v572
    %v816 = vunpack.c.l.b16 %v573
    %v817 = vunpack.c.l.b16 %v574
    %v818 = vunpack.c.h.b16 %v574
    %v819 = vunpack.c.l.b16 %v575
    %v820 = vunpack.c.h.b16 %v575
    %v821 = vunpack.c.l.b16 %v576
    %v822 = vunpack.c.h.b16 %v576
    %v823 = vunpack.c.l.b16 %v577
    %v824 = vunpack.c.l.b16 %v578
    %v825 = vunpack.c.h.b16 %v578
    %v826 = vunpack.c.l.b16 %v579
    %v827 = vunpack.c.h.b16 %v579
    %v828 = vunpack.c.l.b16 %v580
    %v829 = vunpack.c.h.b16 %v580
    %v830 = vunpack.c.l.b16 %v581
    %v831 = vunpack.c.l.b16 %v582
    %v832 = vunpack.c.h.b16 %v582
    %v833 = vunpack.c.l.b16 %v583
    %v834 = vunpack.c.h.b16 %v583
    %v835 = vunpack.c.l.b16 %v584
    %v836 = vunpack.c.h.b16 %v584
    %v837 = vunpack.c.l.b16 %v585
    %v838 = vunpack.c.l.b16 %v586
    %v839 = vunpack.c.h.b16 %v586
    %v840 = vunpack.c.l.b16 %v587
    %v841 = vunpack.c.h.b16 %v587
    %v842 = vunpack.c.l.b16 %v588
    %v843 = vunpack.c.h.b16 %v588
    %v844 = vunpack.c.l.b16 %v589
    %v845 = vunpack.c.l.b16 %v590
    %v846 = vunpack.c.h.b16 %v590
    %v847 = vunpack.c.l.b16 %v591
    %v848 = vunpack.c.h.b16 %v591
    %v849 = vunpack.c.l.b16 %v592
    %v850 = vunpack.c.h.b16 %v592
    %v851 = vunpack.c.l.b16 %v593
    %v852 = vunpack.c.l.b16 %v594
    %v853 = vunpack.c.h.b16 %v594
    %v854 = vunpack.c.l.b16 %v595
    %v855 = vunpack.c.h.b16 %v595
    %v856 = vunpack.c.l.b16 %v596
    %v857 = vunpack.c.h.b16 %v596
    %v858 = vunpack.c.l.b16 %v597
    %v859 = vunpack.c.l.b16 %v598
    %v860 = vunpack.c.h.b16 %v598
    %v861 = vunpack.c.l.b16 %v599
    %v862 = vunpack.c.h.b16 %v599
    %v863 = vunpack.c.l.b16 %v600
    %v864 = vunpack.c.h.b16 %v600
    %v865 = vunpack.c.l.b16 %v601
    %v866 = vunpack.c.l.b16 %v602
    %v867 = vunpack.c.h.b16 %v602
    %v868 = vunpack.c.l.b16 %v603
    %v869 = vunpack.c.h.b16 %v603
    %v870 = vunpack.c.l.b16 %v604
    %v871 = vunpack.c.h.b16 %v604
    %v872 = vunpack.c.l.b16 %v605
    %v873 = vunpack.c.l.b16 %v606
    %v874 = vunpack.c.h.b16 %v606
    %v875 = vunpack.c.l.b16 %v607
    %v876 = vunpack.c.h.b16 %v607
    %v877 = vunpack.c.l.b16 %v608
    %v878 = vunpack.c.h.b16 %v608
    %v879 = vunpack.c.l.b16 %v609
    %v880 = vunpack.c.l.b16 %v610
    %v881 = vunpack.c.h.b16 %v610
    %v882 = vunpack.c.l.b16 %v611
    %v883 = vunpack.c.h.b16 %v611
    %v884 = vunpack.c.l.b16 %v612
    %v885 = vunpack.c.h.b16 %v612
    %v886 = vunpack.c.l.b16 %v613
    %v887 = vunpack.c.l.b16 %v614
    %v888 = vunpack.c.h.b16 %v614
    %v889 = vunpack.c.l.b16 %v615
    %v890 = vunpack.c.h.b16 %v615
    %v891 = vunpack.c.l.b16 %v616
    %v892 = vunpack.c.h.b16 %v616
    %v893 = vunpack.c.l.b16 %v617
    %v894 = vpack.c.b16 %v789, %v782
    %v895 = vpack.c.b16 %v790, %v783
    %v896 = vpack.c.b16 %v791, %v784
    %v897 = vpack.c.b16 %v792, %v785
    %v898 = vpack.c.b16 %v793, %v786
    %v899 = vpack.c.b16 %v794, %v787
    %v900 = vpack.c.b16 %v795, %v788
    %v901 = vpack.c.b16 %v803, %v796
    %v902 = vpack.c.b16 %v804, %v797
    %v903 = vpack.c.b16 %v805, %v798
    %v904 = vpack.c.b16 %v806, %v799
    %v905 = vpack.c.b16 %v807, %v800
    %v906 = vpack.c.b16 %v808, %v801
    %v907 = vpack.c.b16 %v809, %v802
    %v908 = vpack.c.b16 %v817, %v810
    %v909 = vpack.c.b16 %v818, %v811
    %v910 = vpack.c.b16 %v819, %v812
    %v911 = vpack.c.b16 %v820, %v813
    %v912 = vpack.c.b16 %v821, %v814
    %v913 = vpack.c.b16 %v822, %v815
    %v914 = vpack.c.b16 %v823, %v816
    %v915 = vpack.c.b16 %v831, %v824
    %v916 = vpack.c.b16 %v832, %v825
    %v917 = vpack.c.b16 %v833, %v826
    %v918 = vpack.c.b16 %v834, %v827
    %v919 = vpack.c.b16 %v835, %v828
    %v920 = vpack.c.b16 %v836, %v829
    %v921 = vpack.c.b16 %v837, %v830
    %v922 = vpack.c.b16 %v845, %v838
    %v923 = vpack.c.b16 %v846, %v839
    %v924 = vpack.c.b16 %v847, %v840
    %v925 = vpack.c.b16 %v848, %v841
    %v926 = vpack.c.b16 %v849, %v842
    %v927 = vpack.c.b16 %v850, %v843
    %v928 = vpack.c.b16 %v851, %v844
    %v929 = vpack.c.b16 %v859, %v852
    %v930 = vpack.c.b16 %v860, %v853
    %v931 = vpack.c.b16 %v861, %v854
    %v932 = vpack.c.b16 %v862, %v855
    %v933 = vpack.c.b16 %v863, %v856
    %v934 = vpack.c.b16 %v864, %v857
    %v935 = vpack.c.b16 %v865, %v858
    %v936 = vpack.c.b16 %v873, %v866
    %v937 = vpack.c.b16 %v874, %v867
    %v938 = vpack.c.b16 %v875, %v868
    %v939 = vpack.c.b16 %v876, %v869
    %v940 = vpack.c.b16 %v877, %v870
    %v941 = vpack.c.b16 %v878, %v871
    %v942 = vpack.c.b16 %v879, %v872
    %v943 = vpack.c.b16 %v887, %v880
    %v944 = vpack.c.b16 %v888, %v881
    %v945 = vpack.c.b16 %v889, %v882
    %v946 = vpack.c.b16 %v890, %v883
    %v947 = vpack.c.b16 %v891, %v884
    %v948 = vpack.c.b16 %v892, %v885
    %v949 = vpack.c.b16 %v893, %v886
    %v1098 = vunpack.c.l.b16 %v618
    %v1099 = vunpack.c.l.b16 %v619
    %v1100 = vunpack.c.l.b16 %v620
    %v1101 = vunpack.c.l.b16 %v621
    %v1102 = vunpack.c.l.b16 %v622
    %v1103 = vunpack.c.l.b16 %v623
    %v1104 = vunpack.c.l.b16 %v624
    %v1105 = vunpack.c.l.b16 %v625
    %v1106 = vunpack.c.l.b16 %v626
    %v1107 = vunpack.c.l.b16 %v627
    %v1108 = vunpack.c.l.b16 %v628
    %v1109 = vunpack.c.l.b16 %v629
    %v1110 = vunpack.c.l.b16 %v630
    %v1111 = vunpack.c.l.b16 %v631
    %v1112 = vunpack.c.l.b16 %v632
    %v1113 = vunpack.c.l.b16 %v633
    %v1114 = vunpack.c.l.b16 %v634
    %v1115 = vunpack.c.l.b16 %v635
    %v1116 = vunpack.c.l.b16 %v636
    %v1117 = vunpack.c.l.b16 %v637
    %v1118 = vunpack.c.l.b16 %v638
    %v1119 = vunpack.c.l.b16 %v639
    %v1120 = vunpack.c.l.b16 %v640
    %v1121 = vunpack.c.l.b16 %v641
    %v1122 = vunpack.c.l.b16 %v642
    %v1123 = vunpack.c.l.b16 %v643
    %v1124 = vunpack.c.l.b16 %v644
    %v1125 = vunpack.c.l.b16 %v645
    %v1126 = vunpack.c.l.b16 %v646
    %v1127 = vunpack.c.l.b16 %v647
    %v1128 = vunpack.c.l.b16 %v648
    %v1129 = vunpack.c.l.b16 %v649
    %v1130 = vunpack.c.l.b16 %v650
    %v1131 = vunpack.c.l.b16 %v651
    %v1132 = vunpack.c.l.b16 %v652
    %v1133 = vunpack.c.l.b16 %v653
    %v1134 = vunpack.c.l.b16 %v654
    %v1135 = vunpack.c.l.b16 %v655
    %v1136 = vunpack.c.l.b16 %v656
    %v1137 = vunpack.c.l.b16 %v657
    %v1138 = vunpack.c.l.b16 %v658
    %v1139 = vunpack.c.l.b16 %v659
    %v1140 = vunpack.c.l.b16 %v660
    %v1141 = vunpack.c.l.b16 %v661
    %v1142 = vunpack.c.l.b16 %v662
    %v1143 = vunpack.c.l.b16 %v663
    %v1144 = vunpack.c.l.b16 %v664
    %v1145 = vunpack.c.l.b16 %v665
    %v1146 = vunpack.c.l.b16 %v666
    %v1147 = vunpack.c.l.b16 %v667
    %v1148 = vunpack.c.l.b16 %v668
    %v1149 = vunpack.c.l.b16 %v669
    %v1150 = vunpack.c.l.b16 %v670
    %v1151 = vunpack.c.l.b16 %v671
    %v1152 = vunpack.c.l.b16 %v672
    %v1153 = vunpack.c.l.b16 %v673
    %v1154 = vunpack.c.l.b16 %v674
    %v1155 = vunpack.c.l.b16 %v675
    %v1156 = vunpack.c.l.b16 %v676
    %v1157 = vunpack.c.l.b16 %v677
    %v1158 = vunpack.c.l.b16 %v678
    %v1159 = vunpack.c.l.b16 %v679
    %v1160 = vunpack.c.l.b16 %v680
    %v1161 = vunpack.c.l.b16 %v681
    %v1162 = vunpack.c.l.b16 %v682
    %v1163 = vunpack.c.l.b16 %v683
    %v1164 = vunpack.c.l.b16 %v684
    %v1165 = vunpack.c.l.b16 %v685
    %v1166 = vunpack.c.l.b16 %v686
    %v1167 = vunpack.c.l.b16 %v687
    %v1168 = vunpack.c.l.b16 %v688
    %v1169 = vunpack.c.l.b16 %v689
    %v1170 = vunpack.c.l.b16 %v690
    %v1171 = vunpack.c.l.b16 %v691
    %v1172 = vunpack.c.l.b16 %v692
    %v1173 = vunpack.c.l.b16 %v693
    %v1174 = vunpack.c.l.b16 %v694
    %v1175 = vunpack.c.l.b16 %v695
    %v1176 = vunpack.c.l.b16 %v696
    %v1177 = vunpack.c.l.b16 %v697
    %v1178 = vunpack.c.l.b16 %v698
    %v1179 = vunpack.c.l.b16 %v699
    %v1180 = vunpack.c.l.b16 %v700
    %v1181 = vunpack.c.l.b16 %v701
    %v1182 = vunpack.c.l.b16 %v702
    %v1183 = vunpack.c.l.b16 %v703
    %v1184 = vunpack.c.l.b16 %v704
    %v1185 = vunpack.c.l.b16 %v705
    %v1186 = vunpack.c.l.b16 %v706
    %v1187 = vunpack.c.l.b16 %v707
    %v1188 = vunpack.c.l.b16 %v708
    %v1189 = vunpack.c.l.b16 %v709
    %v1190 = vunpack.c.l.b16 %v710
    %v1191 = vunpack.c.l.b16 %v711
    %v1192 = vunpack.c.l.b16 %v712
    %v1193 = vunpack.c.l.b16 %v713
    %v1194 = vunpack.c.l.b16 %v714
    %v1195 = vunpack.c.l.b16 %v715
    %v1196 = vunpack.c.l.b16 %v716
    %v1197 = vunpack.c.l.b16 %v717
    %v1198 = vpack.c.b16 %v1099, %v1098
    %v1199 = vpack.c.b16 %v1101, %v1100
    %v1200 = vpack.c.b16 %v1103, %v1102
    %v1201 = vpack.c.b16 %v1105, %v1104
    %v1202 = vpack.c.b16 %v1107, %v1106
    %v1203 = vpack.c.b16 %v1109, %v1108
    %v1204 = vpack.c.b16 %v1111, %v1110
    %v1205 = vpack.c.b16 %v1113, %v1112
    %v1206 = vpack.c.b16 %v1115, %v1114
    %v1207 = vpack.c.b16 %v1117, %v1116
    %v1208 = vpack.c.b16 %v1119, %v1118
    %v1209 = vpack.c.b16 %v1121, %v1120
    %v1210 = vpack.c.b16 %v1123, %v1122
    %v1211 = vpack.c.b16 %v1125, %v1124
    %v1212 = vpack.c.b16 %v1127, %v1126
    %v1213 = vpack.c.b16 %v1129, %v1128
    %v1214 = vpack.c.b16 %v1131, %v1130
    %v1215 = vpack.c.b16 %v1133, %v1132
    %v1216 = vpack.c.b16 %v1135, %v1134
    %v1217 = vpack.c.b16 %v1137, %v1136
    %v1218 = vpack.c.b16 %v1139, %v1138
    %v1219 = vpack.c.b16 %v1141, %v1140
    %v1220 = vpack.c.b16 %v1143, %v1142
    %v1221 = vpack.c.b16 %v1145, %v1144
    %v1222 = vpack.c.b16 %v1147, %v1146
    %v1223 = vpack.c.b16 %v1149, %v1148
    %v1224 = vpack.c.b16 %v1151, %v1150
    %v1225 = vpack.c.b16 %v1153, %v1152
    %v1226 = vpack.c.b16 %v1155, %v1154
    %v1227 = vpack.c.b16 %v1157, %v1156
    %v1228 = vpack.c.b16 %v1159, %v1158
    %v1229 = vpack.c.b16 %v1161, %v1160
    %v1230 = vpack.c.b16 %v1163, %v1162
    %v1231 = vpack.c.b16 %v1165, %v1164
    %v1232 = vpack.c.b16 %v1167, %v1166
    %v1233 = vpack.c.b16 %v1169, %v1168
    %v1234 = vpack.c.b16 %v1171, %v1170
    %v1235 = vpack.c.b16 %v1173, %v1172
    %v1236 = vpack.c.b16 %v1175, %v1174
    %v1237 = vpack.c.b16 %v1177, %v1176
    %v1238 = vpack.c.b16 %v1179, %v1178
    %v1239 = vpack.c.b16 %v1181, %v1180
    %v1240 = vpack.c.b16 %v1183, %v1182
    %v1241 = vpack.c.b16 %v1185, %v1184
    %v1242 = vpack.c.b16 %v1187, %v1186
    %v1243 = vpack.c.b16 %v1189, %v1188
    %v1244 = vpack.c.b16 %v1191, %v1190
    %v1245 = vpack.c.b16 %v1193, %v1192
    %v1246 = vpack.c.b16 %v1195, %v1194
    %v1247 = vpack.c.b16 %v1197, %v1196
    %vm1298 = vcmask 261120
    %v1300 = vsel %vm1298, %v900, 0
    %v1303 = vsel %vm1298, %v907, 0
    %v1306 = vsel %vm1298, %v914, 0
    %v1309 = vsel %vm1298, %v921, 0
    %v1312 = vsel %vm1298, %v928, 0
    %v1315 = vsel %vm1298, %v935, 0
    %v1318 = vsel %vm1298, %v942, 0
    %v1321 = vsel %vm1298, %v949, 0
    %1323 = vmatpush.bf16.msra.mxu0 %v1205
    %1324 = vmatpush.bf16.msra.mxu0 %v1204
    %1325 = vmatpush.bf16.msra.mxu0 %v1203
    %1326 = vmatpush.bf16.msra.mxu0 %v1202
    %1327 = vmatpush.bf16.msra.mxu0 %v1201
    %1328 = vmatpush.bf16.msra.mxu0 %v1200
    %1329 = vmatpush.bf16.msra.mxu0 %v1199
    %1330 = vmatpush.bf16.msra.mxu0 %v1198
    %1331 = vmatmul.bf16.gmra.mxu0 %v894
    %v1332 = vpop.f32.mrf.mxu0
    %v1333 = vadd.f32 0.0, %v1332
    %v1334 = vpop.f32.mrf.mxu0
    %v1335 = vadd.f32 0.0, %v1334
    %1336 = vmatmul.bf16.gmra.mxu0 %v901
    %v1337 = vpop.f32.mrf.mxu0
    %v1338 = vadd.f32 0.0, %v1337
    %v1339 = vpop.f32.mrf.mxu0
    %v1340 = vadd.f32 0.0, %v1339
    %1341 = vmatmul.bf16.gmra.mxu0 %v908
    %v1342 = vpop.f32.mrf.mxu0
    %v1343 = vadd.f32 0.0, %v1342
    %v1344 = vpop.f32.mrf.mxu0
    %v1345 = vadd.f32 0.0, %v1344
    %1346 = vmatmul.bf16.gmra.mxu0 %v915
    %v1347 = vpop.f32.mrf.mxu0
    %v1348 = vadd.f32 0.0, %v1347
    %v1349 = vpop.f32.mrf.mxu0
    %v1350 = vadd.f32 0.0, %v1349
    %1351 = vmatmul.bf16.gmra.mxu0 %v922
    %v1352 = vpop.f32.mrf.mxu0
    %v1353 = vadd.f32 0.0, %v1352
    %v1354 = vpop.f32.mrf.mxu0
    %v1355 = vadd.f32 0.0, %v1354
    %1356 = vmatmul.bf16.gmra.mxu0 %v929
    %v1357 = vpop.f32.mrf.mxu0
    %v1358 = vadd.f32 0.0, %v1357
    %v1359 = vpop.f32.mrf.mxu0
    %v1360 = vadd.f32 0.0, %v1359
    %1361 = vmatmul.bf16.gmra.mxu0 %v936
    %v1362 = vpop.f32.mrf.mxu0
    %v1363 = vadd.f32 0.0, %v1362
    %v1364 = vpop.f32.mrf.mxu0
    %v1365 = vadd.f32 0.0, %v1364
    %1366 = vmatmul.bf16.gmra.mxu0 %v943
    %v1367 = vpop.f32.mrf.mxu0
    %v1368 = vadd.f32 0.0, %v1367
    %v1369 = vpop.f32.mrf.mxu0
    %v1370 = vadd.f32 0.0, %v1369
    %1371 = vdwg.mxu0
    %1372 = vmatpush.bf16.msra.mxu0 %v1213
    %1373 = vmatpush.bf16.msra.mxu0 %v1212
    %1374 = vmatpush.bf16.msra.mxu0 %v1211
    %1375 = vmatpush.bf16.msra.mxu0 %v1210
    %1376 = vmatpush.bf16.msra.mxu0 %v1209
    %1377 = vmatpush.bf16.msra.mxu0 %v1208
    %1378 = vmatpush.bf16.msra.mxu0 %v1207
    %1379 = vmatpush.bf16.msra.mxu0 %v1206
    %1380 = vmatmul.bf16.gmra.mxu0 %v895
    %v1381 = vpop.f32.mrf.mxu0
    %v1382 = vadd.f32 %v1333, %v1381
    %v1383 = vpop.f32.mrf.mxu0
    %v1384 = vadd.f32 %v1335, %v1383
    %1385 = vmatmul.bf16.gmra.mxu0 %v902
    %v1386 = vpop.f32.mrf.mxu0
    %v1387 = vadd.f32 %v1338, %v1386
    %v1388 = vpop.f32.mrf.mxu0
    %v1389 = vadd.f32 %v1340, %v1388
    %1390 = vmatmul.bf16.gmra.mxu0 %v909
    %v1391 = vpop.f32.mrf.mxu0
    %v1392 = vadd.f32 %v1343, %v1391
    %v1393 = vpop.f32.mrf.mxu0
    %v1394 = vadd.f32 %v1345, %v1393
    %1395 = vmatmul.bf16.gmra.mxu0 %v916
    %v1396 = vpop.f32.mrf.mxu0
    %v1397 = vadd.f32 %v1348, %v1396
    %v1398 = vpop.f32.mrf.mxu0
    %v1399 = vadd.f32 %v1350, %v1398
    %1400 = vmatmul.bf16.gmra.mxu0 %v923
    %v1401 = vpop.f32.mrf.mxu0
    %v1402 = vadd.f32 %v1353, %v1401
    %v1403 = vpop.f32.mrf.mxu0
    %v1404 = vadd.f32 %v1355, %v1403
    %1405 = vmatmul.bf16.gmra.mxu0 %v930
    %v1406 = vpop.f32.mrf.mxu0
    %v1407 = vadd.f32 %v1358, %v1406
    %v1408 = vpop.f32.mrf.mxu0
    %v1409 = vadd.f32 %v1360, %v1408
    %1410 = vmatmul.bf16.gmra.mxu0 %v937
    %v1411 = vpop.f32.mrf.mxu0
    %v1412 = vadd.f32 %v1363, %v1411
    %v1413 = vpop.f32.mrf.mxu0
    %v1414 = vadd.f32 %v1365, %v1413
    %1415 = vmatmul.bf16.gmra.mxu0 %v944
    %v1416 = vpop.f32.mrf.mxu0
    %v1417 = vadd.f32 %v1368, %v1416
    %v1418 = vpop.f32.mrf.mxu0
    %v1419 = vadd.f32 %v1370, %v1418
    %1420 = vdwg.mxu0
    %1421 = vmatpush.bf16.msra.mxu0 %v1221
    %1422 = vmatpush.bf16.msra.mxu0 %v1220
    %1423 = vmatpush.bf16.msra.mxu0 %v1219
    %1424 = vmatpush.bf16.msra.mxu0 %v1218
    %1425 = vmatpush.bf16.msra.mxu0 %v1217
    %1426 = vmatpush.bf16.msra.mxu0 %v1216
    %1427 = vmatpush.bf16.msra.mxu0 %v1215
    %1428 = vmatpush.bf16.msra.mxu0 %v1214
    %1429 = vmatmul.bf16.gmra.mxu0 %v896
    %v1430 = vpop.f32.mrf.mxu0
    %v1431 = vadd.f32 %v1382, %v1430
    %v1432 = vpop.f32.mrf.mxu0
    %v1433 = vadd.f32 %v1384, %v1432
    %1434 = vmatmul.bf16.gmra.mxu0 %v903
    %v1435 = vpop.f32.mrf.mxu0
    %v1436 = vadd.f32 %v1387, %v1435
    %v1437 = vpop.f32.mrf.mxu0
    %v1438 = vadd.f32 %v1389, %v1437
    %1439 = vmatmul.bf16.gmra.mxu0 %v910
    %v1440 = vpop.f32.mrf.mxu0
    %v1441 = vadd.f32 %v1392, %v1440
    %v1442 = vpop.f32.mrf.mxu0
    %v1443 = vadd.f32 %v1394, %v1442
    %1444 = vmatmul.bf16.gmra.mxu0 %v917
    %v1445 = vpop.f32.mrf.mxu0
    %v1446 = vadd.f32 %v1397, %v1445
    %v1447 = vpop.f32.mrf.mxu0
    %v1448 = vadd.f32 %v1399, %v1447
    %1449 = vmatmul.bf16.gmra.mxu0 %v924
    %v1450 = vpop.f32.mrf.mxu0
    %v1451 = vadd.f32 %v1402, %v1450
    %v1452 = vpop.f32.mrf.mxu0
    %v1453 = vadd.f32 %v1404, %v1452
    %1454 = vmatmul.bf16.gmra.mxu0 %v931
    %v1455 = vpop.f32.mrf.mxu0
    %v1456 = vadd.f32 %v1407, %v1455
    %v1457 = vpop.f32.mrf.mxu0
    %v1458 = vadd.f32 %v1409, %v1457
    %1459 = vmatmul.bf16.gmra.mxu0 %v938
    %v1460 = vpop.f32.mrf.mxu0
    %v1461 = vadd.f32 %v1412, %v1460
    %v1462 = vpop.f32.mrf.mxu0
    %v1463 = vadd.f32 %v1414, %v1462
    %1464 = vmatmul.bf16.gmra.mxu0 %v945
    %v1465 = vpop.f32.mrf.mxu0
    %v1466 = vadd.f32 %v1417, %v1465
    %v1467 = vpop.f32.mrf.mxu0
    %v1468 = vadd.f32 %v1419, %v1467
    %1469 = vdwg.mxu0
    %1470 = vmatpush.bf16.msra.mxu0 %v1229
    %1471 = vmatpush.bf16.msra.mxu0 %v1228
    %1472 = vmatpush.bf16.msra.mxu0 %v1227
    %1473 = vmatpush.bf16.msra.mxu0 %v1226
    %1474 = vmatpush.bf16.msra.mxu0 %v1225
    %1475 = vmatpush.bf16.msra.mxu0 %v1224
    %1476 = vmatpush.bf16.msra.mxu0 %v1223
    %1477 = vmatpush.bf16.msra.mxu0 %v1222
    %1478 = vmatmul.bf16.gmra.mxu0 %v897
    %v1479 = vpop.f32.mrf.mxu0
    %v1480 = vadd.f32 %v1431, %v1479
    %v1481 = vpop.f32.mrf.mxu0
    %v1482 = vadd.f32 %v1433, %v1481
    %1483 = vmatmul.bf16.gmra.mxu0 %v904
    %v1484 = vpop.f32.mrf.mxu0
    %v1485 = vadd.f32 %v1436, %v1484
    %v1486 = vpop.f32.mrf.mxu0
    %v1487 = vadd.f32 %v1438, %v1486
    %1488 = vmatmul.bf16.gmra.mxu0 %v911
    %v1489 = vpop.f32.mrf.mxu0
    %v1490 = vadd.f32 %v1441, %v1489
    %v1491 = vpop.f32.mrf.mxu0
    %v1492 = vadd.f32 %v1443, %v1491
    %1493 = vmatmul.bf16.gmra.mxu0 %v918
    %v1494 = vpop.f32.mrf.mxu0
    %v1495 = vadd.f32 %v1446, %v1494
    %v1496 = vpop.f32.mrf.mxu0
    %v1497 = vadd.f32 %v1448, %v1496
    %1498 = vmatmul.bf16.gmra.mxu0 %v925
    %v1499 = vpop.f32.mrf.mxu0
    %v1500 = vadd.f32 %v1451, %v1499
    %v1501 = vpop.f32.mrf.mxu0
    %v1502 = vadd.f32 %v1453, %v1501
    %1503 = vmatmul.bf16.gmra.mxu0 %v932
    %v1504 = vpop.f32.mrf.mxu0
    %v1505 = vadd.f32 %v1456, %v1504
    %v1506 = vpop.f32.mrf.mxu0
    %v1507 = vadd.f32 %v1458, %v1506
    %1508 = vmatmul.bf16.gmra.mxu0 %v939
    %v1509 = vpop.f32.mrf.mxu0
    %v1510 = vadd.f32 %v1461, %v1509
    %v1511 = vpop.f32.mrf.mxu0
    %v1512 = vadd.f32 %v1463, %v1511
    %1513 = vmatmul.bf16.gmra.mxu0 %v946
    %v1514 = vpop.f32.mrf.mxu0
    %v1515 = vadd.f32 %v1466, %v1514
    %v1516 = vpop.f32.mrf.mxu0
    %v1517 = vadd.f32 %v1468, %v1516
    %1518 = vdwg.mxu0
    %1519 = vmatpush.bf16.msra.mxu0 %v1237
    %1520 = vmatpush.bf16.msra.mxu0 %v1236
    %1521 = vmatpush.bf16.msra.mxu0 %v1235
    %1522 = vmatpush.bf16.msra.mxu0 %v1234
    %1523 = vmatpush.bf16.msra.mxu0 %v1233
    %1524 = vmatpush.bf16.msra.mxu0 %v1232
    %1525 = vmatpush.bf16.msra.mxu0 %v1231
    %1526 = vmatpush.bf16.msra.mxu0 %v1230
    %1527 = vmatmul.bf16.gmra.mxu0 %v898
    %v1528 = vpop.f32.mrf.mxu0
    %v1529 = vadd.f32 %v1480, %v1528
    %v1530 = vpop.f32.mrf.mxu0
    %v1531 = vadd.f32 %v1482, %v1530
    %1532 = vmatmul.bf16.gmra.mxu0 %v905
    %v1533 = vpop.f32.mrf.mxu0
    %v1534 = vadd.f32 %v1485, %v1533
    %v1535 = vpop.f32.mrf.mxu0
    %v1536 = vadd.f32 %v1487, %v1535
    %1537 = vmatmul.bf16.gmra.mxu0 %v912
    %v1538 = vpop.f32.mrf.mxu0
    %v1539 = vadd.f32 %v1490, %v1538
    %v1540 = vpop.f32.mrf.mxu0
    %v1541 = vadd.f32 %v1492, %v1540
    %1542 = vmatmul.bf16.gmra.mxu0 %v919
    %v1543 = vpop.f32.mrf.mxu0
    %v1544 = vadd.f32 %v1495, %v1543
    %v1545 = vpop.f32.mrf.mxu0
    %v1546 = vadd.f32 %v1497, %v1545
    %1547 = vmatmul.bf16.gmra.mxu0 %v926
    %v1548 = vpop.f32.mrf.mxu0
    %v1549 = vadd.f32 %v1500, %v1548
    %v1550 = vpop.f32.mrf.mxu0
    %v1551 = vadd.f32 %v1502, %v1550
    %1552 = vmatmul.bf16.gmra.mxu0 %v933
    %v1553 = vpop.f32.mrf.mxu0
    %v1554 = vadd.f32 %v1505, %v1553
    %v1555 = vpop.f32.mrf.mxu0
    %v1556 = vadd.f32 %v1507, %v1555
    %1557 = vmatmul.bf16.gmra.mxu0 %v940
    %v1558 = vpop.f32.mrf.mxu0
    %v1559 = vadd.f32 %v1510, %v1558
    %v1560 = vpop.f32.mrf.mxu0
    %v1561 = vadd.f32 %v1512, %v1560
    %1562 = vmatmul.bf16.gmra.mxu0 %v947
    %v1563 = vpop.f32.mrf.mxu0
    %v1564 = vadd.f32 %v1515, %v1563
    %v1565 = vpop.f32.mrf.mxu0
    %v1566 = vadd.f32 %v1517, %v1565
    %1567 = vdwg.mxu0
    %1568 = vmatpush.bf16.msra.mxu0 %v1245
    %1569 = vmatpush.bf16.msra.mxu0 %v1244
    %1570 = vmatpush.bf16.msra.mxu0 %v1243
    %1571 = vmatpush.bf16.msra.mxu0 %v1242
    %1572 = vmatpush.bf16.msra.mxu0 %v1241
    %1573 = vmatpush.bf16.msra.mxu0 %v1240
    %1574 = vmatpush.bf16.msra.mxu0 %v1239
    %1575 = vmatpush.bf16.msra.mxu0 %v1238
    %1576 = vmatmul.bf16.gmra.mxu0 %v899
    %v1577 = vpop.f32.mrf.mxu0
    %v1578 = vadd.f32 %v1529, %v1577
    %v1579 = vpop.f32.mrf.mxu0
    %v1580 = vadd.f32 %v1531, %v1579
    %1581 = vmatmul.bf16.gmra.mxu0 %v906
    %v1582 = vpop.f32.mrf.mxu0
    %v1583 = vadd.f32 %v1534, %v1582
    %v1584 = vpop.f32.mrf.mxu0
    %v1585 = vadd.f32 %v1536, %v1584
    %1586 = vmatmul.bf16.gmra.mxu0 %v913
    %v1587 = vpop.f32.mrf.mxu0
    %v1588 = vadd.f32 %v1539, %v1587
    %v1589 = vpop.f32.mrf.mxu0
    %v1590 = vadd.f32 %v1541, %v1589
    %1591 = vmatmul.bf16.gmra.mxu0 %v920
    %v1592 = vpop.f32.mrf.mxu0
    %v1593 = vadd.f32 %v1544, %v1592
    %v1594 = vpop.f32.mrf.mxu0
    %v1595 = vadd.f32 %v1546, %v1594
    %1596 = vmatmul.bf16.gmra.mxu0 %v927
    %v1597 = vpop.f32.mrf.mxu0
    %v1598 = vadd.f32 %v1549, %v1597
    %v1599 = vpop.f32.mrf.mxu0
    %v1600 = vadd.f32 %v1551, %v1599
    %1601 = vmatmul.bf16.gmra.mxu0 %v934
    %v1602 = vpop.f32.mrf.mxu0
    %v1603 = vadd.f32 %v1554, %v1602
    %v1604 = vpop.f32.mrf.mxu0
    %v1605 = vadd.f32 %v1556, %v1604
    %1606 = vmatmul.bf16.gmra.mxu0 %v941
    %v1607 = vpop.f32.mrf.mxu0
    %v1608 = vadd.f32 %v1559, %v1607
    %v1609 = vpop.f32.mrf.mxu0
    %v1610 = vadd.f32 %v1561, %v1609
    %1611 = vmatmul.bf16.gmra.mxu0 %v948
    %v1612 = vpop.f32.mrf.mxu0
    %v1613 = vadd.f32 %v1564, %v1612
    %v1614 = vpop.f32.mrf.mxu0
    %v1615 = vadd.f32 %v1566, %v1614
    %1616 = vdwg.mxu0
    %1617 = vmatpush.bf16.msra.mxu0 0
    %1618 = vmatpush.bf16.msra.mxu0 0
    %1619 = vmatpush.bf16.msra.mxu0 0
    %1620 = vmatpush.bf16.msra.mxu0 0
    %1621 = vmatpush.bf16.msra.mxu0 0
    %1622 = vmatpush.bf16.msra.mxu0 0
    %1623 = vmatpush.bf16.msra.mxu0 %v1247
    %1624 = vmatpush.bf16.msra.mxu0 %v1246
    %1625 = vmatmul.bf16.gmra.mxu0 %v1300
    %v1626 = vpop.f32.mrf.mxu0
    %v1627 = vadd.f32 %v1578, %v1626
    %v1628 = vpop.f32.mrf.mxu0
    %v1629 = vadd.f32 %v1580, %v1628
    %1630 = vmatmul.bf16.gmra.mxu0 %v1303
    %v1631 = vpop.f32.mrf.mxu0
    %v1632 = vadd.f32 %v1583, %v1631
    %v1633 = vpop.f32.mrf.mxu0
    %v1634 = vadd.f32 %v1585, %v1633
    %1635 = vmatmul.bf16.gmra.mxu0 %v1306
    %v1636 = vpop.f32.mrf.mxu0
    %v1637 = vadd.f32 %v1588, %v1636
    %v1638 = vpop.f32.mrf.mxu0
    %v1639 = vadd.f32 %v1590, %v1638
    %1640 = vmatmul.bf16.gmra.mxu0 %v1309
    %v1641 = vpop.f32.mrf.mxu0
    %v1642 = vadd.f32 %v1593, %v1641
    %v1643 = vpop.f32.mrf.mxu0
    %v1644 = vadd.f32 %v1595, %v1643
    %1645 = vmatmul.bf16.gmra.mxu0 %v1312
    %v1646 = vpop.f32.mrf.mxu0
    %v1647 = vadd.f32 %v1598, %v1646
    %v1648 = vpop.f32.mrf.mxu0
    %v1649 = vadd.f32 %v1600, %v1648
    %1650 = vmatmul.bf16.gmra.mxu0 %v1315
    %v1651 = vpop.f32.mrf.mxu0
    %v1652 = vadd.f32 %v1603, %v1651
    %v1653 = vpop.f32.mrf.mxu0
    %v1654 = vadd.f32 %v1605, %v1653
    %1655 = vmatmul.bf16.gmra.mxu0 %v1318
    %v1656 = vpop.f32.mrf.mxu0
    %v1657 = vadd.f32 %v1608, %v1656
    %v1658 = vpop.f32.mrf.mxu0
    %v1659 = vadd.f32 %v1610, %v1658
    %1660 = vmatmul.bf16.gmra.mxu0 %v1321
    %v1661 = vpop.f32.mrf.mxu0
    %v1662 = vadd.f32 %v1613, %v1661
    %v1663 = vpop.f32.mrf.mxu0
    %v1664 = vadd.f32 %v1615, %v1663
    %1665 = vdwg.mxu0
    %v1666 = vmax.f32 %v1627, %v1637
    %v1667 = vmax.f32 %v1629, %v1639
    %v1668 = vmax.f32 %v1632, %v1642
    %v1669 = vmax.f32 %v1634, %v1644
    %v1670 = vmax.f32 %v1647, %v1657
    %v1671 = vmax.f32 %v1649, %v1659
    %v1672 = vmax.f32 %v1652, %v1662
    %v1673 = vmax.f32 %v1654, %v1664
    %v1674 = vmax.f32 %v1666, %v1670
    %v1675 = vmax.f32 %v1667, %v1671
    %v1676 = vmax.f32 %v1668, %v1672
    %v1677 = vmax.f32 %v1669, %v1673
    %v1678 = vld [vmem:[%s2] sm:$0x1]
    %v1680 = vperm.slane %v1678, 0
    %v1682 = vadd.f32 %v1674, %v1680
    %v1683 = vadd.f32 %v1675, %v1680
    %v1684 = vadd.f32 %v1676, %v1680
    %v1685 = vadd.f32 %v1677, %v1680
    %v1686 = vmax.f32 %v1682, 0.0
    %v1687 = vmax.f32 %v1683, 0.0
    %v1688 = vmax.f32 %v1684, 0.0
    %v1689 = vmax.f32 %v1685, 0.0
    %v1690 = vpack.c.bf16 %v1686, %v1686
    %v1691 = vpack.c.bf16 %v1687, %v1687
    %v1692 = vpack.c.bf16 %v1688, %v1688
    %v1693 = vpack.c.bf16 %v1689, %v1689
    %s1694 = smul.u32 4, 16
    %s1695 = smul.u32 %s1694, 8
    %s1696 = smul.u32 %s1695, 4
    %s1697 = sshll.u32 %s1696, 4
    %1698 = dma.done [#allocation3], %s1697
    %v1699 = vld [vmem:[#allocation2] sm:$0xff]
    %v1700 = vld [vmem:[#allocation2 + $0x8] sm:$0xff]
    %v1701 = vld [vmem:[#allocation2 + $0x10] sm:$0xff]
    %v1702 = vld [vmem:[#allocation2 + $0x18] sm:$0xff]
    %v1703 = vld [vmem:[#allocation2 + $0x20] sm:$0xff]
    %v1704 = vld [vmem:[#allocation2 + $0x28] sm:$0xff]
    %v1705 = vld [vmem:[#allocation2 + $0x30] sm:$0xff]
    %v1706 = vld [vmem:[#allocation2 + $0x38] sm:$0xff]
    %v1707 = vld [vmem:[#allocation2 + $0x40] sm:$0xff]
    %v1708 = vld [vmem:[#allocation2 + $0x48] sm:$0xff]
    %v1709 = vld [vmem:[#allocation2 + $0x50] sm:$0xff]
    %v1710 = vld [vmem:[#allocation2 + $0x58] sm:$0xff]
    %v1711 = vld [vmem:[#allocation2 + $0x60] sm:$0xff]
    %v1712 = vld [vmem:[#allocation2 + $0x68] sm:$0xff]
    %v1713 = vld [vmem:[#allocation2 + $0x70] sm:$0xff]
    %v1714 = vld [vmem:[#allocation2 + $0x78] sm:$0xff]
    %s1715 = scalar_lea.vmem [#allocation2], 128
    %v1716 = vld [vmem:[%s1715] sm:$0xff]
    %v1717 = vld [vmem:[%s1715 + $0x8] sm:$0xff]
    %v1718 = vld [vmem:[%s1715 + $0x10] sm:$0xff]
    %v1719 = vld [vmem:[%s1715 + $0x18] sm:$0xff]
    %v1720 = vld [vmem:[%s1715 + $0x20] sm:$0xff]
    %v1721 = vld [vmem:[%s1715 + $0x28] sm:$0xff]
    %v1722 = vld [vmem:[%s1715 + $0x30] sm:$0xff]
    %v1723 = vld [vmem:[%s1715 + $0x38] sm:$0xff]
    %v1724 = vld [vmem:[%s1715 + $0x40] sm:$0xff]
    %v1725 = vld [vmem:[%s1715 + $0x48] sm:$0xff]
    %v1726 = vld [vmem:[%s1715 + $0x50] sm:$0xff]
    %v1727 = vld [vmem:[%s1715 + $0x58] sm:$0xff]
    %v1728 = vld [vmem:[%s1715 + $0x60] sm:$0xff]
    %v1729 = vld [vmem:[%s1715 + $0x68] sm:$0xff]
    %v1730 = vld [vmem:[%s1715 + $0x70] sm:$0xff]
    %v1731 = vld [vmem:[%s1715 + $0x78] sm:$0xff]
    %v1733 = vunpack.c.l.b16 %v1690
    %v1734 = vpack.c.b16 %v1733, %v1733
    %v1735 = vrot.slane %v1734, 1
    %v1752 = vunpack.c.l.b16 %v1716
    %v1753 = vunpack.c.h.b16 %v1716
    %v1754 = vunpack.c.l.b16 %v1717
    %v1755 = vunpack.c.h.b16 %v1717
    %v1756 = vunpack.c.l.b16 %v1718
    %v1757 = vunpack.c.h.b16 %v1718
    %v1758 = vunpack.c.l.b16 %v1719
    %v1759 = vunpack.c.h.b16 %v1719
    %v1760 = vunpack.c.l.b16 %v1720
    %v1761 = vunpack.c.h.b16 %v1720
    %v1762 = vunpack.c.l.b16 %v1721
    %v1763 = vunpack.c.h.b16 %v1721
    %v1764 = vunpack.c.l.b16 %v1722
    %v1765 = vunpack.c.h.b16 %v1722
    %v1766 = vunpack.c.l.b16 %v1723
    %v1767 = vunpack.c.h.b16 %v1723
    %v1768 = vunpack.c.l.b16 %v1724
    %v1769 = vunpack.c.h.b16 %v1724
    %v1770 = vunpack.c.l.b16 %v1725
    %v1771 = vunpack.c.h.b16 %v1725
    %v1772 = vunpack.c.l.b16 %v1726
    %v1773 = vunpack.c.h.b16 %v1726
    %v1774 = vunpack.c.l.b16 %v1727
    %v1775 = vunpack.c.h.b16 %v1727
    %v1776 = vunpack.c.l.b16 %v1728
    %v1777 = vunpack.c.h.b16 %v1728
    %v1778 = vunpack.c.l.b16 %v1729
    %v1779 = vunpack.c.h.b16 %v1729
    %v1780 = vunpack.c.l.b16 %v1730
    %v1781 = vunpack.c.h.b16 %v1730
    %v1782 = vunpack.c.l.b16 %v1731
    %v1783 = vunpack.c.h.b16 %v1731
    %v1784 = vpack.c.b16 %v1756, %v1752
    %v1785 = vpack.c.b16 %v1757, %v1753
    %v1786 = vpack.c.b16 %v1758, %v1754
    %v1787 = vpack.c.b16 %v1759, %v1755
    %v1788 = vpack.c.b16 %v1764, %v1760
    %v1789 = vpack.c.b16 %v1765, %v1761
    %v1790 = vpack.c.b16 %v1766, %v1762
    %v1791 = vpack.c.b16 %v1767, %v1763
    %v1792 = vpack.c.b16 %v1772, %v1768
    %v1793 = vpack.c.b16 %v1773, %v1769
    %v1794 = vpack.c.b16 %v1774, %v1770
    %v1795 = vpack.c.b16 %v1775, %v1771
    %v1796 = vpack.c.b16 %v1780, %v1776
    %v1797 = vpack.c.b16 %v1781, %v1777
    %v1798 = vpack.c.b16 %v1782, %v1778
    %v1799 = vpack.c.b16 %v1783, %v1779
    %vm1816 = vcmask 523264
    %v1818 = vsel %vm1816, %v1735, 0
    %1820 = vmatpush.bf16.msra.mxu0 0
    %1821 = vmatpush.bf16.msra.mxu0 0
    %1822 = vmatpush.bf16.msra.mxu0 0
    %1823 = vmatpush.bf16.msra.mxu0 0
    %1824 = vmatpush.bf16.msra.mxu0 %v1796
    %1825 = vmatpush.bf16.msra.mxu0 %v1792
    %1826 = vmatpush.bf16.msra.mxu0 %v1788
    %1827 = vmatpush.bf16.msra.mxu0 %v1784
    %1828 = vmatmul.bf16.gmra.mxu0 %v1818
    %v1829 = vpop.f32.mrf.mxu0
    %v1830 = vadd.f32 0.0, %v1829
    %v1831 = vpop.f32.mrf.mxu0
    %1832 = vdwg.mxu0
    %1833 = vmatpush.bf16.msra.mxu0 0
    %1834 = vmatpush.bf16.msra.mxu0 0
    %1835 = vmatpush.bf16.msra.mxu0 0
    %1836 = vmatpush.bf16.msra.mxu0 0
    %1837 = vmatpush.bf16.msra.mxu0 %v1797
    %1838 = vmatpush.bf16.msra.mxu0 %v1793
    %1839 = vmatpush.bf16.msra.mxu0 %v1789
    %1840 = vmatpush.bf16.msra.mxu0 %v1785
    %1841 = vmatmul.bf16.gmra.mxu0 %v1818
    %v1842 = vpop.f32.mrf.mxu0
    %v1843 = vadd.f32 0.0, %v1842
    %v1844 = vpop.f32.mrf.mxu0
    %1845 = vdwg.mxu0
    %1846 = vmatpush.bf16.msra.mxu0 0
    %1847 = vmatpush.bf16.msra.mxu0 0
    %1848 = vmatpush.bf16.msra.mxu0 0
    %1849 = vmatpush.bf16.msra.mxu0 0
    %1850 = vmatpush.bf16.msra.mxu0 %v1798
    %1851 = vmatpush.bf16.msra.mxu0 %v1794
    %1852 = vmatpush.bf16.msra.mxu0 %v1790
    %1853 = vmatpush.bf16.msra.mxu0 %v1786
    %1854 = vmatmul.bf16.gmra.mxu0 %v1818
    %v1855 = vpop.f32.mrf.mxu0
    %v1856 = vadd.f32 0.0, %v1855
    %v1857 = vpop.f32.mrf.mxu0
    %1858 = vdwg.mxu0
    %1859 = vmatpush.bf16.msra.mxu0 0
    %1860 = vmatpush.bf16.msra.mxu0 0
    %1861 = vmatpush.bf16.msra.mxu0 0
    %1862 = vmatpush.bf16.msra.mxu0 0
    %1863 = vmatpush.bf16.msra.mxu0 %v1799
    %1864 = vmatpush.bf16.msra.mxu0 %v1795
    %1865 = vmatpush.bf16.msra.mxu0 %v1791
    %1866 = vmatpush.bf16.msra.mxu0 %v1787
    %1867 = vmatmul.bf16.gmra.mxu0 %v1818
    %v1868 = vpop.f32.mrf.mxu0
    %v1869 = vadd.f32 0.0, %v1868
    %v1870 = vpop.f32.mrf.mxu0
    %1871 = vdwg.mxu0
    %v1888 = vunpack.c.l.b16 %v1699
    %v1889 = vunpack.c.h.b16 %v1699
    %v1890 = vunpack.c.l.b16 %v1700
    %v1891 = vunpack.c.h.b16 %v1700
    %v1892 = vunpack.c.l.b16 %v1701
    %v1893 = vunpack.c.h.b16 %v1701
    %v1894 = vunpack.c.l.b16 %v1702
    %v1895 = vunpack.c.h.b16 %v1702
    %v1896 = vunpack.c.l.b16 %v1703
    %v1897 = vunpack.c.h.b16 %v1703
    %v1898 = vunpack.c.l.b16 %v1704
    %v1899 = vunpack.c.h.b16 %v1704
    %v1900 = vunpack.c.l.b16 %v1705
    %v1901 = vunpack.c.h.b16 %v1705
    %v1902 = vunpack.c.l.b16 %v1706
    %v1903 = vunpack.c.h.b16 %v1706
    %v1904 = vunpack.c.l.b16 %v1707
    %v1905 = vunpack.c.h.b16 %v1707
    %v1906 = vunpack.c.l.b16 %v1708
    %v1907 = vunpack.c.h.b16 %v1708
    %v1908 = vunpack.c.l.b16 %v1709
    %v1909 = vunpack.c.h.b16 %v1709
    %v1910 = vunpack.c.l.b16 %v1710
    %v1911 = vunpack.c.h.b16 %v1710
    %v1912 = vunpack.c.l.b16 %v1711
    %v1913 = vunpack.c.h.b16 %v1711
    %v1914 = vunpack.c.l.b16 %v1712
    %v1915 = vunpack.c.h.b16 %v1712
    %v1916 = vunpack.c.l.b16 %v1713
    %v1917 = vunpack.c.h.b16 %v1713
    %v1918 = vunpack.c.l.b16 %v1714
    %v1919 = vunpack.c.h.b16 %v1714
    %v1920 = vpack.c.b16 %v1892, %v1888
    %v1921 = vpack.c.b16 %v1893, %v1889
    %v1922 = vpack.c.b16 %v1894, %v1890
    %v1923 = vpack.c.b16 %v1895, %v1891
    %v1924 = vpack.c.b16 %v1900, %v1896
    %v1925 = vpack.c.b16 %v1901, %v1897
    %v1926 = vpack.c.b16 %v1902, %v1898
    %v1927 = vpack.c.b16 %v1903, %v1899
    %v1928 = vpack.c.b16 %v1908, %v1904
    %v1929 = vpack.c.b16 %v1909, %v1905
    %v1930 = vpack.c.b16 %v1910, %v1906
    %v1931 = vpack.c.b16 %v1911, %v1907
    %v1932 = vpack.c.b16 %v1916, %v1912
    %v1933 = vpack.c.b16 %v1917, %v1913
    %v1934 = vpack.c.b16 %v1918, %v1914
    %v1935 = vpack.c.b16 %v1919, %v1915
    %v1953 = vsel %vm1816, %v1690, 0
    %1955 = vmatpush.bf16.msra.mxu0 0
    %1956 = vmatpush.bf16.msra.mxu0 0
    %1957 = vmatpush.bf16.msra.mxu0 0
    %1958 = vmatpush.bf16.msra.mxu0 0
    %1959 = vmatpush.bf16.msra.mxu0 %v1932
    %1960 = vmatpush.bf16.msra.mxu0 %v1928
    %1961 = vmatpush.bf16.msra.mxu0 %v1924
    %1962 = vmatpush.bf16.msra.mxu0 %v1920
    %1963 = vmatmul.bf16.gmra.mxu0 %v1953
    %v1964 = vpop.f32.mrf.mxu0
    %v1965 = vadd.f32 %v1830, %v1964
    %v1966 = vpop.f32.mrf.mxu0
    %1967 = vdwg.mxu0
    %1968 = vmatpush.bf16.msra.mxu0 0
    %1969 = vmatpush.bf16.msra.mxu0 0
    %1970 = vmatpush.bf16.msra.mxu0 0
    %1971 = vmatpush.bf16.msra.mxu0 0
    %1972 = vmatpush.bf16.msra.mxu0 %v1933
    %1973 = vmatpush.bf16.msra.mxu0 %v1929
    %1974 = vmatpush.bf16.msra.mxu0 %v1925
    %1975 = vmatpush.bf16.msra.mxu0 %v1921
    %1976 = vmatmul.bf16.gmra.mxu0 %v1953
    %v1977 = vpop.f32.mrf.mxu0
    %v1978 = vadd.f32 %v1843, %v1977
    %v1979 = vpop.f32.mrf.mxu0
    %1980 = vdwg.mxu0
    %1981 = vmatpush.bf16.msra.mxu0 0
    %1982 = vmatpush.bf16.msra.mxu0 0
    %1983 = vmatpush.bf16.msra.mxu0 0
    %1984 = vmatpush.bf16.msra.mxu0 0
    %1985 = vmatpush.bf16.msra.mxu0 %v1934
    %1986 = vmatpush.bf16.msra.mxu0 %v1930
    %1987 = vmatpush.bf16.msra.mxu0 %v1926
    %1988 = vmatpush.bf16.msra.mxu0 %v1922
    %1989 = vmatmul.bf16.gmra.mxu0 %v1953
    %v1990 = vpop.f32.mrf.mxu0
    %v1991 = vadd.f32 %v1856, %v1990
    %v1992 = vpop.f32.mrf.mxu0
    %1993 = vdwg.mxu0
    %1994 = vmatpush.bf16.msra.mxu0 0
    %1995 = vmatpush.bf16.msra.mxu0 0
    %1996 = vmatpush.bf16.msra.mxu0 0
    %1997 = vmatpush.bf16.msra.mxu0 0
    %1998 = vmatpush.bf16.msra.mxu0 %v1935
    %1999 = vmatpush.bf16.msra.mxu0 %v1931
    %2000 = vmatpush.bf16.msra.mxu0 %v1927
    %2001 = vmatpush.bf16.msra.mxu0 %v1923
    %2002 = vmatmul.bf16.gmra.mxu0 %v1953
    %v2003 = vpop.f32.mrf.mxu0
    %v2004 = vadd.f32 %v1869, %v2003
    %v2005 = vpop.f32.mrf.mxu0
    %2006 = vdwg.mxu0
    %s2007 = scalar_lea.vmem [#allocation2], 256
    %v2008 = vld [vmem:[%s2007] sm:$0xff]
    %v2009 = vld [vmem:[%s2007 + $0x8] sm:$0xff]
    %v2010 = vld [vmem:[%s2007 + $0x10] sm:$0xff]
    %v2011 = vld [vmem:[%s2007 + $0x18] sm:$0xff]
    %v2012 = vld [vmem:[%s2007 + $0x20] sm:$0xff]
    %v2013 = vld [vmem:[%s2007 + $0x28] sm:$0xff]
    %v2014 = vld [vmem:[%s2007 + $0x30] sm:$0xff]
    %v2015 = vld [vmem:[%s2007 + $0x38] sm:$0xff]
    %v2016 = vld [vmem:[%s2007 + $0x40] sm:$0xff]
    %v2017 = vld [vmem:[%s2007 + $0x48] sm:$0xff]
    %v2018 = vld [vmem:[%s2007 + $0x50] sm:$0xff]
    %v2019 = vld [vmem:[%s2007 + $0x58] sm:$0xff]
    %v2020 = vld [vmem:[%s2007 + $0x60] sm:$0xff]
    %v2021 = vld [vmem:[%s2007 + $0x68] sm:$0xff]
    %v2022 = vld [vmem:[%s2007 + $0x70] sm:$0xff]
    %v2023 = vld [vmem:[%s2007 + $0x78] sm:$0xff]
    %v2024 = vrot.slane %v1734, 2
    %v2041 = vunpack.c.l.b16 %v2008
    %v2042 = vunpack.c.h.b16 %v2008
    %v2043 = vunpack.c.l.b16 %v2009
    %v2044 = vunpack.c.h.b16 %v2009
    %v2045 = vunpack.c.l.b16 %v2010
    %v2046 = vunpack.c.h.b16 %v2010
    %v2047 = vunpack.c.l.b16 %v2011
    %v2048 = vunpack.c.h.b16 %v2011
    %v2049 = vunpack.c.l.b16 %v2012
    %v2050 = vunpack.c.h.b16 %v2012
    %v2051 = vunpack.c.l.b16 %v2013
    %v2052 = vunpack.c.h.b16 %v2013
    %v2053 = vunpack.c.l.b16 %v2014
    %v2054 = vunpack.c.h.b16 %v2014
    %v2055 = vunpack.c.l.b16 %v2015
    %v2056 = vunpack.c.h.b16 %v2015
    %v2057 = vunpack.c.l.b16 %v2016
    %v2058 = vunpack.c.h.b16 %v2016
    %v2059 = vunpack.c.l.b16 %v2017
    %v2060 = vunpack.c.h.b16 %v2017
    %v2061 = vunpack.c.l.b16 %v2018
    %v2062 = vunpack.c.h.b16 %v2018
    %v2063 = vunpack.c.l.b16 %v2019
    %v2064 = vunpack.c.h.b16 %v2019
    %v2065 = vunpack.c.l.b16 %v2020
    %v2066 = vunpack.c.h.b16 %v2020
    %v2067 = vunpack.c.l.b16 %v2021
    %v2068 = vunpack.c.h.b16 %v2021
    %v2069 = vunpack.c.l.b16 %v2022
    %v2070 = vunpack.c.h.b16 %v2022
    %v2071 = vunpack.c.l.b16 %v2023
    %v2072 = vunpack.c.h.b16 %v2023
    %v2073 = vpack.c.b16 %v2045, %v2041
    %v2074 = vpack.c.b16 %v2046, %v2042
    %v2075 = vpack.c.b16 %v2047, %v2043
    %v2076 = vpack.c.b16 %v2048, %v2044
    %v2077 = vpack.c.b16 %v2053, %v2049
    %v2078 = vpack.c.b16 %v2054, %v2050
    %v2079 = vpack.c.b16 %v2055, %v2051
    %v2080 = vpack.c.b16 %v2056, %v2052
    %v2081 = vpack.c.b16 %v2061, %v2057
    %v2082 = vpack.c.b16 %v2062, %v2058
    %v2083 = vpack.c.b16 %v2063, %v2059
    %v2084 = vpack.c.b16 %v2064, %v2060
    %v2085 = vpack.c.b16 %v2069, %v2065
    %v2086 = vpack.c.b16 %v2070, %v2066
    %v2087 = vpack.c.b16 %v2071, %v2067
    %v2088 = vpack.c.b16 %v2072, %v2068
    %v2106 = vsel %vm1816, %v2024, 0
    %2108 = vmatpush.bf16.msra.mxu0 0
    %2109 = vmatpush.bf16.msra.mxu0 0
    %2110 = vmatpush.bf16.msra.mxu0 0
    %2111 = vmatpush.bf16.msra.mxu0 0
    %2112 = vmatpush.bf16.msra.mxu0 %v2085
    %2113 = vmatpush.bf16.msra.mxu0 %v2081
    %2114 = vmatpush.bf16.msra.mxu0 %v2077
    %2115 = vmatpush.bf16.msra.mxu0 %v2073
    %2116 = vmatmul.bf16.gmra.mxu0 %v2106
    %v2117 = vpop.f32.mrf.mxu0
    %v2118 = vadd.f32 0.0, %v2117
    %v2119 = vpop.f32.mrf.mxu0
    %2120 = vdwg.mxu0
    %2121 = vmatpush.bf16.msra.mxu0 0
    %2122 = vmatpush.bf16.msra.mxu0 0
    %2123 = vmatpush.bf16.msra.mxu0 0
    %2124 = vmatpush.bf16.msra.mxu0 0
    %2125 = vmatpush.bf16.msra.mxu0 %v2086
    %2126 = vmatpush.bf16.msra.mxu0 %v2082
    %2127 = vmatpush.bf16.msra.mxu0 %v2078
    %2128 = vmatpush.bf16.msra.mxu0 %v2074
    %2129 = vmatmul.bf16.gmra.mxu0 %v2106
    %v2130 = vpop.f32.mrf.mxu0
    %v2131 = vadd.f32 0.0, %v2130
    %v2132 = vpop.f32.mrf.mxu0
    %2133 = vdwg.mxu0
    %2134 = vmatpush.bf16.msra.mxu0 0
    %2135 = vmatpush.bf16.msra.mxu0 0
    %2136 = vmatpush.bf16.msra.mxu0 0
    %2137 = vmatpush.bf16.msra.mxu0 0
    %2138 = vmatpush.bf16.msra.mxu0 %v2087
    %2139 = vmatpush.bf16.msra.mxu0 %v2083
    %2140 = vmatpush.bf16.msra.mxu0 %v2079
    %2141 = vmatpush.bf16.msra.mxu0 %v2075
    %2142 = vmatmul.bf16.gmra.mxu0 %v2106
    %v2143 = vpop.f32.mrf.mxu0
    %v2144 = vadd.f32 0.0, %v2143
    %v2145 = vpop.f32.mrf.mxu0
    %2146 = vdwg.mxu0
    %2147 = vmatpush.bf16.msra.mxu0 0
    %2148 = vmatpush.bf16.msra.mxu0 0
    %2149 = vmatpush.bf16.msra.mxu0 0
    %2150 = vmatpush.bf16.msra.mxu0 0
    %2151 = vmatpush.bf16.msra.mxu0 %v2088
    %2152 = vmatpush.bf16.msra.mxu0 %v2084
    %2153 = vmatpush.bf16.msra.mxu0 %v2080
    %2154 = vmatpush.bf16.msra.mxu0 %v2076
    %2155 = vmatmul.bf16.gmra.mxu0 %v2106
    %v2156 = vpop.f32.mrf.mxu0
    %v2157 = vadd.f32 0.0, %v2156
    %v2158 = vpop.f32.mrf.mxu0
    %2159 = vdwg.mxu0
    %v2160 = vadd.f32 %v1965, %v2118
    %v2161 = vadd.f32 %v1978, %v2131
    %v2162 = vadd.f32 %v1991, %v2144
    %v2163 = vadd.f32 %v2004, %v2157
    %s2164 = scalar_lea.vmem [#allocation2], 384
    %v2165 = vld [vmem:[%s2164] sm:$0xff]
    %v2166 = vld [vmem:[%s2164 + $0x8] sm:$0xff]
    %v2167 = vld [vmem:[%s2164 + $0x10] sm:$0xff]
    %v2168 = vld [vmem:[%s2164 + $0x18] sm:$0xff]
    %v2169 = vld [vmem:[%s2164 + $0x20] sm:$0xff]
    %v2170 = vld [vmem:[%s2164 + $0x28] sm:$0xff]
    %v2171 = vld [vmem:[%s2164 + $0x30] sm:$0xff]
    %v2172 = vld [vmem:[%s2164 + $0x38] sm:$0xff]
    %v2173 = vld [vmem:[%s2164 + $0x40] sm:$0xff]
    %v2174 = vld [vmem:[%s2164 + $0x48] sm:$0xff]
    %v2175 = vld [vmem:[%s2164 + $0x50] sm:$0xff]
    %v2176 = vld [vmem:[%s2164 + $0x58] sm:$0xff]
    %v2177 = vld [vmem:[%s2164 + $0x60] sm:$0xff]
    %v2178 = vld [vmem:[%s2164 + $0x68] sm:$0xff]
    %v2179 = vld [vmem:[%s2164 + $0x70] sm:$0xff]
    %v2180 = vld [vmem:[%s2164 + $0x78] sm:$0xff]
    %v2181 = vrot.slane %v1734, 3
    %v2198 = vunpack.c.l.b16 %v2165
    %v2199 = vunpack.c.h.b16 %v2165
    %v2200 = vunpack.c.l.b16 %v2166
    %v2201 = vunpack.c.h.b16 %v2166
    %v2202 = vunpack.c.l.b16 %v2167
    %v2203 = vunpack.c.h.b16 %v2167
    %v2204 = vunpack.c.l.b16 %v2168
    %v2205 = vunpack.c.h.b16 %v2168
    %v2206 = vunpack.c.l.b16 %v2169
    %v2207 = vunpack.c.h.b16 %v2169
    %v2208 = vunpack.c.l.b16 %v2170
    %v2209 = vunpack.c.h.b16 %v2170
    %v2210 = vunpack.c.l.b16 %v2171
    %v2211 = vunpack.c.h.b16 %v2171
    %v2212 = vunpack.c.l.b16 %v2172
    %v2213 = vunpack.c.h.b16 %v2172
    %v2214 = vunpack.c.l.b16 %v2173
    %v2215 = vunpack.c.h.b16 %v2173
    %v2216 = vunpack.c.l.b16 %v2174
    %v2217 = vunpack.c.h.b16 %v2174
    %v2218 = vunpack.c.l.b16 %v2175
    %v2219 = vunpack.c.h.b16 %v2175
    %v2220 = vunpack.c.l.b16 %v2176
    %v2221 = vunpack.c.h.b16 %v2176
    %v2222 = vunpack.c.l.b16 %v2177
    %v2223 = vunpack.c.h.b16 %v2177
    %v2224 = vunpack.c.l.b16 %v2178
    %v2225 = vunpack.c.h.b16 %v2178
    %v2226 = vunpack.c.l.b16 %v2179
    %v2227 = vunpack.c.h.b16 %v2179
    %v2228 = vunpack.c.l.b16 %v2180
    %v2229 = vunpack.c.h.b16 %v2180
    %v2230 = vpack.c.b16 %v2202, %v2198
    %v2231 = vpack.c.b16 %v2203, %v2199
    %v2232 = vpack.c.b16 %v2204, %v2200
    %v2233 = vpack.c.b16 %v2205, %v2201
    %v2234 = vpack.c.b16 %v2210, %v2206
    %v2235 = vpack.c.b16 %v2211, %v2207
    %v2236 = vpack.c.b16 %v2212, %v2208
    %v2237 = vpack.c.b16 %v2213, %v2209
    %v2238 = vpack.c.b16 %v2218, %v2214
    %v2239 = vpack.c.b16 %v2219, %v2215
    %v2240 = vpack.c.b16 %v2220, %v2216
    %v2241 = vpack.c.b16 %v2221, %v2217
    %v2242 = vpack.c.b16 %v2226, %v2222
    %v2243 = vpack.c.b16 %v2227, %v2223
    %v2244 = vpack.c.b16 %v2228, %v2224
    %v2245 = vpack.c.b16 %v2229, %v2225
    %v2263 = vsel %vm1816, %v2181, 0
    %2265 = vmatpush.bf16.msra.mxu0 0
    %2266 = vmatpush.bf16.msra.mxu0 0
    %2267 = vmatpush.bf16.msra.mxu0 0
    %2268 = vmatpush.bf16.msra.mxu0 0
    %2269 = vmatpush.bf16.msra.mxu0 %v2242
    %2270 = vmatpush.bf16.msra.mxu0 %v2238
    %2271 = vmatpush.bf16.msra.mxu0 %v2234
    %2272 = vmatpush.bf16.msra.mxu0 %v2230
    %2273 = vmatmul.bf16.gmra.mxu0 %v2263
    %v2274 = vpop.f32.mrf.mxu0
    %v2275 = vadd.f32 0.0, %v2274
    %v2276 = vpop.f32.mrf.mxu0
    %2277 = vdwg.mxu0
    %2278 = vmatpush.bf16.msra.mxu0 0
    %2279 = vmatpush.bf16.msra.mxu0 0
    %2280 = vmatpush.bf16.msra.mxu0 0
    %2281 = vmatpush.bf16.msra.mxu0 0
    %2282 = vmatpush.bf16.msra.mxu0 %v2243
    %2283 = vmatpush.bf16.msra.mxu0 %v2239
    %2284 = vmatpush.bf16.msra.mxu0 %v2235
    %2285 = vmatpush.bf16.msra.mxu0 %v2231
    %2286 = vmatmul.bf16.gmra.mxu0 %v2263
    %v2287 = vpop.f32.mrf.mxu0
    %v2288 = vadd.f32 0.0, %v2287
    %v2289 = vpop.f32.mrf.mxu0
    %2290 = vdwg.mxu0
    %2291 = vmatpush.bf16.msra.mxu0 0
    %2292 = vmatpush.bf16.msra.mxu0 0
    %2293 = vmatpush.bf16.msra.mxu0 0
    %2294 = vmatpush.bf16.msra.mxu0 0
    %2295 = vmatpush.bf16.msra.mxu0 %v2244
    %2296 = vmatpush.bf16.msra.mxu0 %v2240
    %2297 = vmatpush.bf16.msra.mxu0 %v2236
    %2298 = vmatpush.bf16.msra.mxu0 %v2232
    %2299 = vmatmul.bf16.gmra.mxu0 %v2263
    %v2300 = vpop.f32.mrf.mxu0
    %v2301 = vadd.f32 0.0, %v2300
    %v2302 = vpop.f32.mrf.mxu0
    %2303 = vdwg.mxu0
    %2304 = vmatpush.bf16.msra.mxu0 0
    %2305 = vmatpush.bf16.msra.mxu0 0
    %2306 = vmatpush.bf16.msra.mxu0 0
    %2307 = vmatpush.bf16.msra.mxu0 0
    %2308 = vmatpush.bf16.msra.mxu0 %v2245
    %2309 = vmatpush.bf16.msra.mxu0 %v2241
    %2310 = vmatpush.bf16.msra.mxu0 %v2237
    %2311 = vmatpush.bf16.msra.mxu0 %v2233
    %2312 = vmatmul.bf16.gmra.mxu0 %v2263
    %v2313 = vpop.f32.mrf.mxu0
    %v2314 = vadd.f32 0.0, %v2313
    %v2315 = vpop.f32.mrf.mxu0
    %2316 = vdwg.mxu0
    %v2317 = vadd.f32 %v2160, %v2275
    %v2318 = vadd.f32 %v2161, %v2288
    %v2319 = vadd.f32 %v2162, %v2301
    %v2320 = vadd.f32 %v2163, %v2314
    %s2321 = scalar_lea.vmem [#allocation2], 512
    %v2322 = vld [vmem:[%s2321] sm:$0xff]
    %v2323 = vld [vmem:[%s2321 + $0x8] sm:$0xff]
    %v2324 = vld [vmem:[%s2321 + $0x10] sm:$0xff]
    %v2325 = vld [vmem:[%s2321 + $0x18] sm:$0xff]
    %v2326 = vld [vmem:[%s2321 + $0x20] sm:$0xff]
    %v2327 = vld [vmem:[%s2321 + $0x28] sm:$0xff]
    %v2328 = vld [vmem:[%s2321 + $0x30] sm:$0xff]
    %v2329 = vld [vmem:[%s2321 + $0x38] sm:$0xff]
    %v2330 = vld [vmem:[%s2321 + $0x40] sm:$0xff]
    %v2331 = vld [vmem:[%s2321 + $0x48] sm:$0xff]
    %v2332 = vld [vmem:[%s2321 + $0x50] sm:$0xff]
    %v2333 = vld [vmem:[%s2321 + $0x58] sm:$0xff]
    %v2334 = vld [vmem:[%s2321 + $0x60] sm:$0xff]
    %v2335 = vld [vmem:[%s2321 + $0x68] sm:$0xff]
    %v2336 = vld [vmem:[%s2321 + $0x70] sm:$0xff]
    %v2337 = vld [vmem:[%s2321 + $0x78] sm:$0xff]
    %v2354 = vunpack.c.l.b16 %v2322
    %v2355 = vunpack.c.h.b16 %v2322
    %v2356 = vunpack.c.l.b16 %v2323
    %v2357 = vunpack.c.h.b16 %v2323
    %v2358 = vunpack.c.l.b16 %v2324
    %v2359 = vunpack.c.h.b16 %v2324
    %v2360 = vunpack.c.l.b16 %v2325
    %v2361 = vunpack.c.h.b16 %v2325
    %v2362 = vunpack.c.l.b16 %v2326
    %v2363 = vunpack.c.h.b16 %v2326
    %v2364 = vunpack.c.l.b16 %v2327
    %v2365 = vunpack.c.h.b16 %v2327
    %v2366 = vunpack.c.l.b16 %v2328
    %v2367 = vunpack.c.h.b16 %v2328
    %v2368 = vunpack.c.l.b16 %v2329
    %v2369 = vunpack.c.h.b16 %v2329
    %v2370 = vunpack.c.l.b16 %v2330
    %v2371 = vunpack.c.h.b16 %v2330
    %v2372 = vunpack.c.l.b16 %v2331
    %v2373 = vunpack.c.h.b16 %v2331
    %v2374 = vunpack.c.l.b16 %v2332
    %v2375 = vunpack.c.h.b16 %v2332
    %v2376 = vunpack.c.l.b16 %v2333
    %v2377 = vunpack.c.h.b16 %v2333
    %v2378 = vunpack.c.l.b16 %v2334
    %v2379 = vunpack.c.h.b16 %v2334
    %v2380 = vunpack.c.l.b16 %v2335
    %v2381 = vunpack.c.h.b16 %v2335
    %v2382 = vunpack.c.l.b16 %v2336
    %v2383 = vunpack.c.h.b16 %v2336
    %v2384 = vunpack.c.l.b16 %v2337
    %v2385 = vunpack.c.h.b16 %v2337
    %v2386 = vpack.c.b16 %v2358, %v2354
    %v2387 = vpack.c.b16 %v2359, %v2355
    %v2388 = vpack.c.b16 %v2360, %v2356
    %v2389 = vpack.c.b16 %v2361, %v2357
    %v2390 = vpack.c.b16 %v2366, %v2362
    %v2391 = vpack.c.b16 %v2367, %v2363
    %v2392 = vpack.c.b16 %v2368, %v2364
    %v2393 = vpack.c.b16 %v2369, %v2365
    %v2394 = vpack.c.b16 %v2374, %v2370
    %v2395 = vpack.c.b16 %v2375, %v2371
    %v2396 = vpack.c.b16 %v2376, %v2372
    %v2397 = vpack.c.b16 %v2377, %v2373
    %v2398 = vpack.c.b16 %v2382, %v2378
    %v2399 = vpack.c.b16 %v2383, %v2379
    %v2400 = vpack.c.b16 %v2384, %v2380
    %v2401 = vpack.c.b16 %v2385, %v2381
    %v2419 = vsel %vm1816, %v1691, 0
    %2421 = vmatpush.bf16.msra.mxu0 0
    %2422 = vmatpush.bf16.msra.mxu0 0
    %2423 = vmatpush.bf16.msra.mxu0 0
    %2424 = vmatpush.bf16.msra.mxu0 0
    %2425 = vmatpush.bf16.msra.mxu0 %v2398
    %2426 = vmatpush.bf16.msra.mxu0 %v2394
    %2427 = vmatpush.bf16.msra.mxu0 %v2390
    %2428 = vmatpush.bf16.msra.mxu0 %v2386
    %2429 = vmatmul.bf16.gmra.mxu0 %v2419
    %v2430 = vpop.f32.mrf.mxu0
    %v2431 = vadd.f32 0.0, %v2430
    %v2432 = vpop.f32.mrf.mxu0
    %2433 = vdwg.mxu0
    %2434 = vmatpush.bf16.msra.mxu0 0
    %2435 = vmatpush.bf16.msra.mxu0 0
    %2436 = vmatpush.bf16.msra.mxu0 0
    %2437 = vmatpush.bf16.msra.mxu0 0
    %2438 = vmatpush.bf16.msra.mxu0 %v2399
    %2439 = vmatpush.bf16.msra.mxu0 %v2395
    %2440 = vmatpush.bf16.msra.mxu0 %v2391
    %2441 = vmatpush.bf16.msra.mxu0 %v2387
    %2442 = vmatmul.bf16.gmra.mxu0 %v2419
    %v2443 = vpop.f32.mrf.mxu0
    %v2444 = vadd.f32 0.0, %v2443
    %v2445 = vpop.f32.mrf.mxu0
    %2446 = vdwg.mxu0
    %2447 = vmatpush.bf16.msra.mxu0 0
    %2448 = vmatpush.bf16.msra.mxu0 0
    %2449 = vmatpush.bf16.msra.mxu0 0
    %2450 = vmatpush.bf16.msra.mxu0 0
    %2451 = vmatpush.bf16.msra.mxu0 %v2400
    %2452 = vmatpush.bf16.msra.mxu0 %v2396
    %2453 = vmatpush.bf16.msra.mxu0 %v2392
    %2454 = vmatpush.bf16.msra.mxu0 %v2388
    %2455 = vmatmul.bf16.gmra.mxu0 %v2419
    %v2456 = vpop.f32.mrf.mxu0
    %v2457 = vadd.f32 0.0, %v2456
    %v2458 = vpop.f32.mrf.mxu0
    %2459 = vdwg.mxu0
    %2460 = vmatpush.bf16.msra.mxu0 0
    %2461 = vmatpush.bf16.msra.mxu0 0
    %2462 = vmatpush.bf16.msra.mxu0 0
    %2463 = vmatpush.bf16.msra.mxu0 0
    %2464 = vmatpush.bf16.msra.mxu0 %v2401
    %2465 = vmatpush.bf16.msra.mxu0 %v2397
    %2466 = vmatpush.bf16.msra.mxu0 %v2393
    %2467 = vmatpush.bf16.msra.mxu0 %v2389
    %2468 = vmatmul.bf16.gmra.mxu0 %v2419
    %v2469 = vpop.f32.mrf.mxu0
    %v2470 = vadd.f32 0.0, %v2469
    %v2471 = vpop.f32.mrf.mxu0
    %2472 = vdwg.mxu0
    %v2473 = vadd.f32 %v2317, %v2431
    %v2474 = vadd.f32 %v2318, %v2444
    %v2475 = vadd.f32 %v2319, %v2457
    %v2476 = vadd.f32 %v2320, %v2470
    %s2477 = scalar_lea.vmem [#allocation2], 640
    %v2478 = vld [vmem:[%s2477] sm:$0xff]
    %v2479 = vld [vmem:[%s2477 + $0x8] sm:$0xff]
    %v2480 = vld [vmem:[%s2477 + $0x10] sm:$0xff]
    %v2481 = vld [vmem:[%s2477 + $0x18] sm:$0xff]
    %v2482 = vld [vmem:[%s2477 + $0x20] sm:$0xff]
    %v2483 = vld [vmem:[%s2477 + $0x28] sm:$0xff]
    %v2484 = vld [vmem:[%s2477 + $0x30] sm:$0xff]
    %v2485 = vld [vmem:[%s2477 + $0x38] sm:$0xff]
    %v2486 = vld [vmem:[%s2477 + $0x40] sm:$0xff]
    %v2487 = vld [vmem:[%s2477 + $0x48] sm:$0xff]
    %v2488 = vld [vmem:[%s2477 + $0x50] sm:$0xff]
    %v2489 = vld [vmem:[%s2477 + $0x58] sm:$0xff]
    %v2490 = vld [vmem:[%s2477 + $0x60] sm:$0xff]
    %v2491 = vld [vmem:[%s2477 + $0x68] sm:$0xff]
    %v2492 = vld [vmem:[%s2477 + $0x70] sm:$0xff]
    %v2493 = vld [vmem:[%s2477 + $0x78] sm:$0xff]
    %v2495 = vunpack.c.l.b16 %v1691
    %v2496 = vpack.c.b16 %v2495, %v2495
    %v2497 = vrot.slane %v2496, 1
    %v2514 = vunpack.c.l.b16 %v2478
    %v2515 = vunpack.c.h.b16 %v2478
    %v2516 = vunpack.c.l.b16 %v2479
    %v2517 = vunpack.c.h.b16 %v2479
    %v2518 = vunpack.c.l.b16 %v2480
    %v2519 = vunpack.c.h.b16 %v2480
    %v2520 = vunpack.c.l.b16 %v2481
    %v2521 = vunpack.c.h.b16 %v2481
    %v2522 = vunpack.c.l.b16 %v2482
    %v2523 = vunpack.c.h.b16 %v2482
    %v2524 = vunpack.c.l.b16 %v2483
    %v2525 = vunpack.c.h.b16 %v2483
    %v2526 = vunpack.c.l.b16 %v2484
    %v2527 = vunpack.c.h.b16 %v2484
    %v2528 = vunpack.c.l.b16 %v2485
    %v2529 = vunpack.c.h.b16 %v2485
    %v2530 = vunpack.c.l.b16 %v2486
    %v2531 = vunpack.c.h.b16 %v2486
    %v2532 = vunpack.c.l.b16 %v2487
    %v2533 = vunpack.c.h.b16 %v2487
    %v2534 = vunpack.c.l.b16 %v2488
    %v2535 = vunpack.c.h.b16 %v2488
    %v2536 = vunpack.c.l.b16 %v2489
    %v2537 = vunpack.c.h.b16 %v2489
    %v2538 = vunpack.c.l.b16 %v2490
    %v2539 = vunpack.c.h.b16 %v2490
    %v2540 = vunpack.c.l.b16 %v2491
    %v2541 = vunpack.c.h.b16 %v2491
    %v2542 = vunpack.c.l.b16 %v2492
    %v2543 = vunpack.c.h.b16 %v2492
    %v2544 = vunpack.c.l.b16 %v2493
    %v2545 = vunpack.c.h.b16 %v2493
    %v2546 = vpack.c.b16 %v2518, %v2514
    %v2547 = vpack.c.b16 %v2519, %v2515
    %v2548 = vpack.c.b16 %v2520, %v2516
    %v2549 = vpack.c.b16 %v2521, %v2517
    %v2550 = vpack.c.b16 %v2526, %v2522
    %v2551 = vpack.c.b16 %v2527, %v2523
    %v2552 = vpack.c.b16 %v2528, %v2524
    %v2553 = vpack.c.b16 %v2529, %v2525
    %v2554 = vpack.c.b16 %v2534, %v2530
    %v2555 = vpack.c.b16 %v2535, %v2531
    %v2556 = vpack.c.b16 %v2536, %v2532
    %v2557 = vpack.c.b16 %v2537, %v2533
    %v2558 = vpack.c.b16 %v2542, %v2538
    %v2559 = vpack.c.b16 %v2543, %v2539
    %v2560 = vpack.c.b16 %v2544, %v2540
    %v2561 = vpack.c.b16 %v2545, %v2541
    %v2579 = vsel %vm1816, %v2497, 0
    %2581 = vmatpush.bf16.msra.mxu0 0
    %2582 = vmatpush.bf16.msra.mxu0 0
    %2583 = vmatpush.bf16.msra.mxu0 0
    %2584 = vmatpush.bf16.msra.mxu0 0
    %2585 = vmatpush.bf16.msra.mxu0 %v2558
    %2586 = vmatpush.bf16.msra.mxu0 %v2554
    %2587 = vmatpush.bf16.msra.mxu0 %v2550
    %2588 = vmatpush.bf16.msra.mxu0 %v2546
    %2589 = vmatmul.bf16.gmra.mxu0 %v2579
    %v2590 = vpop.f32.mrf.mxu0
    %v2591 = vadd.f32 0.0, %v2590
    %v2592 = vpop.f32.mrf.mxu0
    %2593 = vdwg.mxu0
    %2594 = vmatpush.bf16.msra.mxu0 0
    %2595 = vmatpush.bf16.msra.mxu0 0
    %2596 = vmatpush.bf16.msra.mxu0 0
    %2597 = vmatpush.bf16.msra.mxu0 0
    %2598 = vmatpush.bf16.msra.mxu0 %v2559
    %2599 = vmatpush.bf16.msra.mxu0 %v2555
    %2600 = vmatpush.bf16.msra.mxu0 %v2551
    %2601 = vmatpush.bf16.msra.mxu0 %v2547
    %2602 = vmatmul.bf16.gmra.mxu0 %v2579
    %v2603 = vpop.f32.mrf.mxu0
    %v2604 = vadd.f32 0.0, %v2603
    %v2605 = vpop.f32.mrf.mxu0
    %2606 = vdwg.mxu0
    %2607 = vmatpush.bf16.msra.mxu0 0
    %2608 = vmatpush.bf16.msra.mxu0 0
    %2609 = vmatpush.bf16.msra.mxu0 0
    %2610 = vmatpush.bf16.msra.mxu0 0
    %2611 = vmatpush.bf16.msra.mxu0 %v2560
    %2612 = vmatpush.bf16.msra.mxu0 %v2556
    %2613 = vmatpush.bf16.msra.mxu0 %v2552
    %2614 = vmatpush.bf16.msra.mxu0 %v2548
    %2615 = vmatmul.bf16.gmra.mxu0 %v2579
    %v2616 = vpop.f32.mrf.mxu0
    %v2617 = vadd.f32 0.0, %v2616
    %v2618 = vpop.f32.mrf.mxu0
    %2619 = vdwg.mxu0
    %2620 = vmatpush.bf16.msra.mxu0 0
    %2621 = vmatpush.bf16.msra.mxu0 0
    %2622 = vmatpush.bf16.msra.mxu0 0
    %2623 = vmatpush.bf16.msra.mxu0 0
    %2624 = vmatpush.bf16.msra.mxu0 %v2561
    %2625 = vmatpush.bf16.msra.mxu0 %v2557
    %2626 = vmatpush.bf16.msra.mxu0 %v2553
    %2627 = vmatpush.bf16.msra.mxu0 %v2549
    %2628 = vmatmul.bf16.gmra.mxu0 %v2579
    %v2629 = vpop.f32.mrf.mxu0
    %v2630 = vadd.f32 0.0, %v2629
    %v2631 = vpop.f32.mrf.mxu0
    %2632 = vdwg.mxu0
    %v2633 = vadd.f32 %v2473, %v2591
    %v2634 = vadd.f32 %v2474, %v2604
    %v2635 = vadd.f32 %v2475, %v2617
    %v2636 = vadd.f32 %v2476, %v2630
    %s2637 = scalar_lea.vmem [#allocation2], 768
    %v2638 = vld [vmem:[%s2637] sm:$0xff]
    %v2639 = vld [vmem:[%s2637 + $0x8] sm:$0xff]
    %v2640 = vld [vmem:[%s2637 + $0x10] sm:$0xff]
    %v2641 = vld [vmem:[%s2637 + $0x18] sm:$0xff]
    %v2642 = vld [vmem:[%s2637 + $0x20] sm:$0xff]
    %v2643 = vld [vmem:[%s2637 + $0x28] sm:$0xff]
    %v2644 = vld [vmem:[%s2637 + $0x30] sm:$0xff]
    %v2645 = vld [vmem:[%s2637 + $0x38] sm:$0xff]
    %v2646 = vld [vmem:[%s2637 + $0x40] sm:$0xff]
    %v2647 = vld [vmem:[%s2637 + $0x48] sm:$0xff]
    %v2648 = vld [vmem:[%s2637 + $0x50] sm:$0xff]
    %v2649 = vld [vmem:[%s2637 + $0x58] sm:$0xff]
    %v2650 = vld [vmem:[%s2637 + $0x60] sm:$0xff]
    %v2651 = vld [vmem:[%s2637 + $0x68] sm:$0xff]
    %v2652 = vld [vmem:[%s2637 + $0x70] sm:$0xff]
    %v2653 = vld [vmem:[%s2637 + $0x78] sm:$0xff]
    %v2654 = vrot.slane %v2496, 2
    %v2671 = vunpack.c.l.b16 %v2638
    %v2672 = vunpack.c.h.b16 %v2638
    %v2673 = vunpack.c.l.b16 %v2639
    %v2674 = vunpack.c.h.b16 %v2639
    %v2675 = vunpack.c.l.b16 %v2640
    %v2676 = vunpack.c.h.b16 %v2640
    %v2677 = vunpack.c.l.b16 %v2641
    %v2678 = vunpack.c.h.b16 %v2641
    %v2679 = vunpack.c.l.b16 %v2642
    %v2680 = vunpack.c.h.b16 %v2642
    %v2681 = vunpack.c.l.b16 %v2643
    %v2682 = vunpack.c.h.b16 %v2643
    %v2683 = vunpack.c.l.b16 %v2644
    %v2684 = vunpack.c.h.b16 %v2644
    %v2685 = vunpack.c.l.b16 %v2645
    %v2686 = vunpack.c.h.b16 %v2645
    %v2687 = vunpack.c.l.b16 %v2646
    %v2688 = vunpack.c.h.b16 %v2646
    %v2689 = vunpack.c.l.b16 %v2647
    %v2690 = vunpack.c.h.b16 %v2647
    %v2691 = vunpack.c.l.b16 %v2648
    %v2692 = vunpack.c.h.b16 %v2648
    %v2693 = vunpack.c.l.b16 %v2649
    %v2694 = vunpack.c.h.b16 %v2649
    %v2695 = vunpack.c.l.b16 %v2650
    %v2696 = vunpack.c.h.b16 %v2650
    %v2697 = vunpack.c.l.b16 %v2651
    %v2698 = vunpack.c.h.b16 %v2651
    %v2699 = vunpack.c.l.b16 %v2652
    %v2700 = vunpack.c.h.b16 %v2652
    %v2701 = vunpack.c.l.b16 %v2653
    %v2702 = vunpack.c.h.b16 %v2653
    %v2703 = vpack.c.b16 %v2675, %v2671
    %v2704 = vpack.c.b16 %v2676, %v2672
    %v2705 = vpack.c.b16 %v2677, %v2673
    %v2706 = vpack.c.b16 %v2678, %v2674
    %v2707 = vpack.c.b16 %v2683, %v2679
    %v2708 = vpack.c.b16 %v2684, %v2680
    %v2709 = vpack.c.b16 %v2685, %v2681
    %v2710 = vpack.c.b16 %v2686, %v2682
    %v2711 = vpack.c.b16 %v2691, %v2687
    %v2712 = vpack.c.b16 %v2692, %v2688
    %v2713 = vpack.c.b16 %v2693, %v2689
    %v2714 = vpack.c.b16 %v2694, %v2690
    %v2715 = vpack.c.b16 %v2699, %v2695
    %v2716 = vpack.c.b16 %v2700, %v2696
    %v2717 = vpack.c.b16 %v2701, %v2697
    %v2718 = vpack.c.b16 %v2702, %v2698
    %v2736 = vsel %vm1816, %v2654, 0
    %2738 = vmatpush.bf16.msra.mxu0 0
    %2739 = vmatpush.bf16.msra.mxu0 0
    %2740 = vmatpush.bf16.msra.mxu0 0
    %2741 = vmatpush.bf16.msra.mxu0 0
    %2742 = vmatpush.bf16.msra.mxu0 %v2715
    %2743 = vmatpush.bf16.msra.mxu0 %v2711
    %2744 = vmatpush.bf16.msra.mxu0 %v2707
    %2745 = vmatpush.bf16.msra.mxu0 %v2703
    %2746 = vmatmul.bf16.gmra.mxu0 %v2736
    %v2747 = vpop.f32.mrf.mxu0
    %v2748 = vadd.f32 0.0, %v2747
    %v2749 = vpop.f32.mrf.mxu0
    %2750 = vdwg.mxu0
    %2751 = vmatpush.bf16.msra.mxu0 0
    %2752 = vmatpush.bf16.msra.mxu0 0
    %2753 = vmatpush.bf16.msra.mxu0 0
    %2754 = vmatpush.bf16.msra.mxu0 0
    %2755 = vmatpush.bf16.msra.mxu0 %v2716
    %2756 = vmatpush.bf16.msra.mxu0 %v2712
    %2757 = vmatpush.bf16.msra.mxu0 %v2708
    %2758 = vmatpush.bf16.msra.mxu0 %v2704
    %2759 = vmatmul.bf16.gmra.mxu0 %v2736
    %v2760 = vpop.f32.mrf.mxu0
    %v2761 = vadd.f32 0.0, %v2760
    %v2762 = vpop.f32.mrf.mxu0
    %2763 = vdwg.mxu0
    %2764 = vmatpush.bf16.msra.mxu0 0
    %2765 = vmatpush.bf16.msra.mxu0 0
    %2766 = vmatpush.bf16.msra.mxu0 0
    %2767 = vmatpush.bf16.msra.mxu0 0
    %2768 = vmatpush.bf16.msra.mxu0 %v2717
    %2769 = vmatpush.bf16.msra.mxu0 %v2713
    %2770 = vmatpush.bf16.msra.mxu0 %v2709
    %2771 = vmatpush.bf16.msra.mxu0 %v2705
    %2772 = vmatmul.bf16.gmra.mxu0 %v2736
    %v2773 = vpop.f32.mrf.mxu0
    %v2774 = vadd.f32 0.0, %v2773
    %v2775 = vpop.f32.mrf.mxu0
    %2776 = vdwg.mxu0
    %2777 = vmatpush.bf16.msra.mxu0 0
    %2778 = vmatpush.bf16.msra.mxu0 0
    %2779 = vmatpush.bf16.msra.mxu0 0
    %2780 = vmatpush.bf16.msra.mxu0 0
    %2781 = vmatpush.bf16.msra.mxu0 %v2718
    %2782 = vmatpush.bf16.msra.mxu0 %v2714
    %2783 = vmatpush.bf16.msra.mxu0 %v2710
    %2784 = vmatpush.bf16.msra.mxu0 %v2706
    %2785 = vmatmul.bf16.gmra.mxu0 %v2736
    %v2786 = vpop.f32.mrf.mxu0
    %v2787 = vadd.f32 0.0, %v2786
    %v2788 = vpop.f32.mrf.mxu0
    %2789 = vdwg.mxu0
    %v2790 = vadd.f32 %v2633, %v2748
    %v2791 = vadd.f32 %v2634, %v2761
    %v2792 = vadd.f32 %v2635, %v2774
    %v2793 = vadd.f32 %v2636, %v2787
    %s2794 = scalar_lea.vmem [#allocation2], 896
    %v2795 = vld [vmem:[%s2794] sm:$0xff]
    %v2796 = vld [vmem:[%s2794 + $0x8] sm:$0xff]
    %v2797 = vld [vmem:[%s2794 + $0x10] sm:$0xff]
    %v2798 = vld [vmem:[%s2794 + $0x18] sm:$0xff]
    %v2799 = vld [vmem:[%s2794 + $0x20] sm:$0xff]
    %v2800 = vld [vmem:[%s2794 + $0x28] sm:$0xff]
    %v2801 = vld [vmem:[%s2794 + $0x30] sm:$0xff]
    %v2802 = vld [vmem:[%s2794 + $0x38] sm:$0xff]
    %v2803 = vld [vmem:[%s2794 + $0x40] sm:$0xff]
    %v2804 = vld [vmem:[%s2794 + $0x48] sm:$0xff]
    %v2805 = vld [vmem:[%s2794 + $0x50] sm:$0xff]
    %v2806 = vld [vmem:[%s2794 + $0x58] sm:$0xff]
    %v2807 = vld [vmem:[%s2794 + $0x60] sm:$0xff]
    %v2808 = vld [vmem:[%s2794 + $0x68] sm:$0xff]
    %v2809 = vld [vmem:[%s2794 + $0x70] sm:$0xff]
    %v2810 = vld [vmem:[%s2794 + $0x78] sm:$0xff]
    %v2811 = vrot.slane %v2496, 3
    %v2828 = vunpack.c.l.b16 %v2795
    %v2829 = vunpack.c.h.b16 %v2795
    %v2830 = vunpack.c.l.b16 %v2796
    %v2831 = vunpack.c.h.b16 %v2796
    %v2832 = vunpack.c.l.b16 %v2797
    %v2833 = vunpack.c.h.b16 %v2797
    %v2834 = vunpack.c.l.b16 %v2798
    %v2835 = vunpack.c.h.b16 %v2798
    %v2836 = vunpack.c.l.b16 %v2799
    %v2837 = vunpack.c.h.b16 %v2799
    %v2838 = vunpack.c.l.b16 %v2800
    %v2839 = vunpack.c.h.b16 %v2800
    %v2840 = vunpack.c.l.b16 %v2801
    %v2841 = vunpack.c.h.b16 %v2801
    %v2842 = vunpack.c.l.b16 %v2802
    %v2843 = vunpack.c.h.b16 %v2802
    %v2844 = vunpack.c.l.b16 %v2803
    %v2845 = vunpack.c.h.b16 %v2803
    %v2846 = vunpack.c.l.b16 %v2804
    %v2847 = vunpack.c.h.b16 %v2804
    %v2848 = vunpack.c.l.b16 %v2805
    %v2849 = vunpack.c.h.b16 %v2805
    %v2850 = vunpack.c.l.b16 %v2806
    %v2851 = vunpack.c.h.b16 %v2806
    %v2852 = vunpack.c.l.b16 %v2807
    %v2853 = vunpack.c.h.b16 %v2807
    %v2854 = vunpack.c.l.b16 %v2808
    %v2855 = vunpack.c.h.b16 %v2808
    %v2856 = vunpack.c.l.b16 %v2809
    %v2857 = vunpack.c.h.b16 %v2809
    %v2858 = vunpack.c.l.b16 %v2810
    %v2859 = vunpack.c.h.b16 %v2810
    %v2860 = vpack.c.b16 %v2832, %v2828
    %v2861 = vpack.c.b16 %v2833, %v2829
    %v2862 = vpack.c.b16 %v2834, %v2830
    %v2863 = vpack.c.b16 %v2835, %v2831
    %v2864 = vpack.c.b16 %v2840, %v2836
    %v2865 = vpack.c.b16 %v2841, %v2837
    %v2866 = vpack.c.b16 %v2842, %v2838
    %v2867 = vpack.c.b16 %v2843, %v2839
    %v2868 = vpack.c.b16 %v2848, %v2844
    %v2869 = vpack.c.b16 %v2849, %v2845
    %v2870 = vpack.c.b16 %v2850, %v2846
    %v2871 = vpack.c.b16 %v2851, %v2847
    %v2872 = vpack.c.b16 %v2856, %v2852
    %v2873 = vpack.c.b16 %v2857, %v2853
    %v2874 = vpack.c.b16 %v2858, %v2854
    %v2875 = vpack.c.b16 %v2859, %v2855
    %v2893 = vsel %vm1816, %v2811, 0
    %2895 = vmatpush.bf16.msra.mxu0 0
    %2896 = vmatpush.bf16.msra.mxu0 0
    %2897 = vmatpush.bf16.msra.mxu0 0
    %2898 = vmatpush.bf16.msra.mxu0 0
    %2899 = vmatpush.bf16.msra.mxu0 %v2872
    %2900 = vmatpush.bf16.msra.mxu0 %v2868
    %2901 = vmatpush.bf16.msra.mxu0 %v2864
    %2902 = vmatpush.bf16.msra.mxu0 %v2860
    %2903 = vmatmul.bf16.gmra.mxu0 %v2893
    %v2904 = vpop.f32.mrf.mxu0
    %v2905 = vadd.f32 0.0, %v2904
    %v2906 = vpop.f32.mrf.mxu0
    %2907 = vdwg.mxu0
    %2908 = vmatpush.bf16.msra.mxu0 0
    %2909 = vmatpush.bf16.msra.mxu0 0
    %2910 = vmatpush.bf16.msra.mxu0 0
    %2911 = vmatpush.bf16.msra.mxu0 0
    %2912 = vmatpush.bf16.msra.mxu0 %v2873
    %2913 = vmatpush.bf16.msra.mxu0 %v2869
    %2914 = vmatpush.bf16.msra.mxu0 %v2865
    %2915 = vmatpush.bf16.msra.mxu0 %v2861
    %2916 = vmatmul.bf16.gmra.mxu0 %v2893
    %v2917 = vpop.f32.mrf.mxu0
    %v2918 = vadd.f32 0.0, %v2917
    %v2919 = vpop.f32.mrf.mxu0
    %2920 = vdwg.mxu0
    %2921 = vmatpush.bf16.msra.mxu0 0
    %2922 = vmatpush.bf16.msra.mxu0 0
    %2923 = vmatpush.bf16.msra.mxu0 0
    %2924 = vmatpush.bf16.msra.mxu0 0
    %2925 = vmatpush.bf16.msra.mxu0 %v2874
    %2926 = vmatpush.bf16.msra.mxu0 %v2870
    %2927 = vmatpush.bf16.msra.mxu0 %v2866
    %2928 = vmatpush.bf16.msra.mxu0 %v2862
    %2929 = vmatmul.bf16.gmra.mxu0 %v2893
    %v2930 = vpop.f32.mrf.mxu0
    %v2931 = vadd.f32 0.0, %v2930
    %v2932 = vpop.f32.mrf.mxu0
    %2933 = vdwg.mxu0
    %2934 = vmatpush.bf16.msra.mxu0 0
    %2935 = vmatpush.bf16.msra.mxu0 0
    %2936 = vmatpush.bf16.msra.mxu0 0
    %2937 = vmatpush.bf16.msra.mxu0 0
    %2938 = vmatpush.bf16.msra.mxu0 %v2875
    %2939 = vmatpush.bf16.msra.mxu0 %v2871
    %2940 = vmatpush.bf16.msra.mxu0 %v2867
    %2941 = vmatpush.bf16.msra.mxu0 %v2863
    %2942 = vmatmul.bf16.gmra.mxu0 %v2893
    %v2943 = vpop.f32.mrf.mxu0
    %v2944 = vadd.f32 0.0, %v2943
    %v2945 = vpop.f32.mrf.mxu0
    %2946 = vdwg.mxu0
    %v2947 = vadd.f32 %v2790, %v2905
    %v2948 = vadd.f32 %v2791, %v2918
    %v2949 = vadd.f32 %v2792, %v2931
    %v2950 = vadd.f32 %v2793, %v2944
    %s2951 = scalar_lea.vmem [#allocation2], 1024
    %v2952 = vld [vmem:[%s2951] sm:$0xff]
    %v2953 = vld [vmem:[%s2951 + $0x8] sm:$0xff]
    %v2954 = vld [vmem:[%s2951 + $0x10] sm:$0xff]
    %v2955 = vld [vmem:[%s2951 + $0x18] sm:$0xff]
    %v2956 = vld [vmem:[%s2951 + $0x20] sm:$0xff]
    %v2957 = vld [vmem:[%s2951 + $0x28] sm:$0xff]
    %v2958 = vld [vmem:[%s2951 + $0x30] sm:$0xff]
    %v2959 = vld [vmem:[%s2951 + $0x38] sm:$0xff]
    %v2960 = vld [vmem:[%s2951 + $0x40] sm:$0xff]
    %v2961 = vld [vmem:[%s2951 + $0x48] sm:$0xff]
    %v2962 = vld [vmem:[%s2951 + $0x50] sm:$0xff]
    %v2963 = vld [vmem:[%s2951 + $0x58] sm:$0xff]
    %v2964 = vld [vmem:[%s2951 + $0x60] sm:$0xff]
    %v2965 = vld [vmem:[%s2951 + $0x68] sm:$0xff]
    %v2966 = vld [vmem:[%s2951 + $0x70] sm:$0xff]
    %v2967 = vld [vmem:[%s2951 + $0x78] sm:$0xff]
    %v2984 = vunpack.c.l.b16 %v2952
    %v2985 = vunpack.c.h.b16 %v2952
    %v2986 = vunpack.c.l.b16 %v2953
    %v2987 = vunpack.c.h.b16 %v2953
    %v2988 = vunpack.c.l.b16 %v2954
    %v2989 = vunpack.c.h.b16 %v2954
    %v2990 = vunpack.c.l.b16 %v2955
    %v2991 = vunpack.c.h.b16 %v2955
    %v2992 = vunpack.c.l.b16 %v2956
    %v2993 = vunpack.c.h.b16 %v2956
    %v2994 = vunpack.c.l.b16 %v2957
    %v2995 = vunpack.c.h.b16 %v2957
    %v2996 = vunpack.c.l.b16 %v2958
    %v2997 = vunpack.c.h.b16 %v2958
    %v2998 = vunpack.c.l.b16 %v2959
    %v2999 = vunpack.c.h.b16 %v2959
    %v3000 = vunpack.c.l.b16 %v2960
    %v3001 = vunpack.c.h.b16 %v2960
    %v3002 = vunpack.c.l.b16 %v2961
    %v3003 = vunpack.c.h.b16 %v2961
    %v3004 = vunpack.c.l.b16 %v2962
    %v3005 = vunpack.c.h.b16 %v2962
    %v3006 = vunpack.c.l.b16 %v2963
    %v3007 = vunpack.c.h.b16 %v2963
    %v3008 = vunpack.c.l.b16 %v2964
    %v3009 = vunpack.c.h.b16 %v2964
    %v3010 = vunpack.c.l.b16 %v2965
    %v3011 = vunpack.c.h.b16 %v2965
    %v3012 = vunpack.c.l.b16 %v2966
    %v3013 = vunpack.c.h.b16 %v2966
    %v3014 = vunpack.c.l.b16 %v2967
    %v3015 = vunpack.c.h.b16 %v2967
    %v3016 = vpack.c.b16 %v2988, %v2984
    %v3017 = vpack.c.b16 %v2989, %v2985
    %v3018 = vpack.c.b16 %v2990, %v2986
    %v3019 = vpack.c.b16 %v2991, %v2987
    %v3020 = vpack.c.b16 %v2996, %v2992
    %v3021 = vpack.c.b16 %v2997, %v2993
    %v3022 = vpack.c.b16 %v2998, %v2994
    %v3023 = vpack.c.b16 %v2999, %v2995
    %v3024 = vpack.c.b16 %v3004, %v3000
    %v3025 = vpack.c.b16 %v3005, %v3001
    %v3026 = vpack.c.b16 %v3006, %v3002
    %v3027 = vpack.c.b16 %v3007, %v3003
    %v3028 = vpack.c.b16 %v3012, %v3008
    %v3029 = vpack.c.b16 %v3013, %v3009
    %v3030 = vpack.c.b16 %v3014, %v3010
    %v3031 = vpack.c.b16 %v3015, %v3011
    %v3049 = vsel %vm1816, %v1692, 0
    %3051 = vmatpush.bf16.msra.mxu0 0
    %3052 = vmatpush.bf16.msra.mxu0 0
    %3053 = vmatpush.bf16.msra.mxu0 0
    %3054 = vmatpush.bf16.msra.mxu0 0
    %3055 = vmatpush.bf16.msra.mxu0 %v3028
    %3056 = vmatpush.bf16.msra.mxu0 %v3024
    %3057 = vmatpush.bf16.msra.mxu0 %v3020
    %3058 = vmatpush.bf16.msra.mxu0 %v3016
    %3059 = vmatmul.bf16.gmra.mxu0 %v3049
    %v3060 = vpop.f32.mrf.mxu0
    %v3061 = vadd.f32 0.0, %v3060
    %v3062 = vpop.f32.mrf.mxu0
    %3063 = vdwg.mxu0
    %3064 = vmatpush.bf16.msra.mxu0 0
    %3065 = vmatpush.bf16.msra.mxu0 0
    %3066 = vmatpush.bf16.msra.mxu0 0
    %3067 = vmatpush.bf16.msra.mxu0 0
    %3068 = vmatpush.bf16.msra.mxu0 %v3029
    %3069 = vmatpush.bf16.msra.mxu0 %v3025
    %3070 = vmatpush.bf16.msra.mxu0 %v3021
    %3071 = vmatpush.bf16.msra.mxu0 %v3017
    %3072 = vmatmul.bf16.gmra.mxu0 %v3049
    %v3073 = vpop.f32.mrf.mxu0
    %v3074 = vadd.f32 0.0, %v3073
    %v3075 = vpop.f32.mrf.mxu0
    %3076 = vdwg.mxu0
    %3077 = vmatpush.bf16.msra.mxu0 0
    %3078 = vmatpush.bf16.msra.mxu0 0
    %3079 = vmatpush.bf16.msra.mxu0 0
    %3080 = vmatpush.bf16.msra.mxu0 0
    %3081 = vmatpush.bf16.msra.mxu0 %v3030
    %3082 = vmatpush.bf16.msra.mxu0 %v3026
    %3083 = vmatpush.bf16.msra.mxu0 %v3022
    %3084 = vmatpush.bf16.msra.mxu0 %v3018
    %3085 = vmatmul.bf16.gmra.mxu0 %v3049
    %v3086 = vpop.f32.mrf.mxu0
    %v3087 = vadd.f32 0.0, %v3086
    %v3088 = vpop.f32.mrf.mxu0
    %3089 = vdwg.mxu0
    %3090 = vmatpush.bf16.msra.mxu0 0
    %3091 = vmatpush.bf16.msra.mxu0 0
    %3092 = vmatpush.bf16.msra.mxu0 0
    %3093 = vmatpush.bf16.msra.mxu0 0
    %3094 = vmatpush.bf16.msra.mxu0 %v3031
    %3095 = vmatpush.bf16.msra.mxu0 %v3027
    %3096 = vmatpush.bf16.msra.mxu0 %v3023
    %3097 = vmatpush.bf16.msra.mxu0 %v3019
    %3098 = vmatmul.bf16.gmra.mxu0 %v3049
    %v3099 = vpop.f32.mrf.mxu0
    %v3100 = vadd.f32 0.0, %v3099
    %v3101 = vpop.f32.mrf.mxu0
    %3102 = vdwg.mxu0
    %v3103 = vadd.f32 %v2947, %v3061
    %v3104 = vadd.f32 %v2948, %v3074
    %v3105 = vadd.f32 %v2949, %v3087
    %v3106 = vadd.f32 %v2950, %v3100
    %s3107 = scalar_lea.vmem [#allocation2], 1152
    %v3108 = vld [vmem:[%s3107] sm:$0xff]
    %v3109 = vld [vmem:[%s3107 + $0x8] sm:$0xff]
    %v3110 = vld [vmem:[%s3107 + $0x10] sm:$0xff]
    %v3111 = vld [vmem:[%s3107 + $0x18] sm:$0xff]
    %v3112 = vld [vmem:[%s3107 + $0x20] sm:$0xff]
    %v3113 = vld [vmem:[%s3107 + $0x28] sm:$0xff]
    %v3114 = vld [vmem:[%s3107 + $0x30] sm:$0xff]
    %v3115 = vld [vmem:[%s3107 + $0x38] sm:$0xff]
    %v3116 = vld [vmem:[%s3107 + $0x40] sm:$0xff]
    %v3117 = vld [vmem:[%s3107 + $0x48] sm:$0xff]
    %v3118 = vld [vmem:[%s3107 + $0x50] sm:$0xff]
    %v3119 = vld [vmem:[%s3107 + $0x58] sm:$0xff]
    %v3120 = vld [vmem:[%s3107 + $0x60] sm:$0xff]
    %v3121 = vld [vmem:[%s3107 + $0x68] sm:$0xff]
    %v3122 = vld [vmem:[%s3107 + $0x70] sm:$0xff]
    %v3123 = vld [vmem:[%s3107 + $0x78] sm:$0xff]
    %v3125 = vunpack.c.l.b16 %v1692
    %v3126 = vpack.c.b16 %v3125, %v3125
    %v3127 = vrot.slane %v3126, 1
    %v3144 = vunpack.c.l.b16 %v3108
    %v3145 = vunpack.c.h.b16 %v3108
    %v3146 = vunpack.c.l.b16 %v3109
    %v3147 = vunpack.c.h.b16 %v3109
    %v3148 = vunpack.c.l.b16 %v3110
    %v3149 = vunpack.c.h.b16 %v3110
    %v3150 = vunpack.c.l.b16 %v3111
    %v3151 = vunpack.c.h.b16 %v3111
    %v3152 = vunpack.c.l.b16 %v3112
    %v3153 = vunpack.c.h.b16 %v3112
    %v3154 = vunpack.c.l.b16 %v3113
    %v3155 = vunpack.c.h.b16 %v3113
    %v3156 = vunpack.c.l.b16 %v3114
    %v3157 = vunpack.c.h.b16 %v3114
    %v3158 = vunpack.c.l.b16 %v3115
    %v3159 = vunpack.c.h.b16 %v3115
    %v3160 = vunpack.c.l.b16 %v3116
    %v3161 = vunpack.c.h.b16 %v3116
    %v3162 = vunpack.c.l.b16 %v3117
    %v3163 = vunpack.c.h.b16 %v3117
    %v3164 = vunpack.c.l.b16 %v3118
    %v3165 = vunpack.c.h.b16 %v3118
    %v3166 = vunpack.c.l.b16 %v3119
    %v3167 = vunpack.c.h.b16 %v3119
    %v3168 = vunpack.c.l.b16 %v3120
    %v3169 = vunpack.c.h.b16 %v3120
    %v3170 = vunpack.c.l.b16 %v3121
    %v3171 = vunpack.c.h.b16 %v3121
    %v3172 = vunpack.c.l.b16 %v3122
    %v3173 = vunpack.c.h.b16 %v3122
    %v3174 = vunpack.c.l.b16 %v3123
    %v3175 = vunpack.c.h.b16 %v3123
    %v3176 = vpack.c.b16 %v3148, %v3144
    %v3177 = vpack.c.b16 %v3149, %v3145
    %v3178 = vpack.c.b16 %v3150, %v3146
    %v3179 = vpack.c.b16 %v3151, %v3147
    %v3180 = vpack.c.b16 %v3156, %v3152
    %v3181 = vpack.c.b16 %v3157, %v3153
    %v3182 = vpack.c.b16 %v3158, %v3154
    %v3183 = vpack.c.b16 %v3159, %v3155
    %v3184 = vpack.c.b16 %v3164, %v3160
    %v3185 = vpack.c.b16 %v3165, %v3161
    %v3186 = vpack.c.b16 %v3166, %v3162
    %v3187 = vpack.c.b16 %v3167, %v3163
    %v3188 = vpack.c.b16 %v3172, %v3168
    %v3189 = vpack.c.b16 %v3173, %v3169
    %v3190 = vpack.c.b16 %v3174, %v3170
    %v3191 = vpack.c.b16 %v3175, %v3171
    %v3209 = vsel %vm1816, %v3127, 0
    %3211 = vmatpush.bf16.msra.mxu0 0
    %3212 = vmatpush.bf16.msra.mxu0 0
    %3213 = vmatpush.bf16.msra.mxu0 0
    %3214 = vmatpush.bf16.msra.mxu0 0
    %3215 = vmatpush.bf16.msra.mxu0 %v3188
    %3216 = vmatpush.bf16.msra.mxu0 %v3184
    %3217 = vmatpush.bf16.msra.mxu0 %v3180
    %3218 = vmatpush.bf16.msra.mxu0 %v3176
    %3219 = vmatmul.bf16.gmra.mxu0 %v3209
    %v3220 = vpop.f32.mrf.mxu0
    %v3221 = vadd.f32 0.0, %v3220
    %v3222 = vpop.f32.mrf.mxu0
    %3223 = vdwg.mxu0
    %3224 = vmatpush.bf16.msra.mxu0 0
    %3225 = vmatpush.bf16.msra.mxu0 0
    %3226 = vmatpush.bf16.msra.mxu0 0
    %3227 = vmatpush.bf16.msra.mxu0 0
    %3228 = vmatpush.bf16.msra.mxu0 %v3189
    %3229 = vmatpush.bf16.msra.mxu0 %v3185
    %3230 = vmatpush.bf16.msra.mxu0 %v3181
    %3231 = vmatpush.bf16.msra.mxu0 %v3177
    %3232 = vmatmul.bf16.gmra.mxu0 %v3209
    %v3233 = vpop.f32.mrf.mxu0
    %v3234 = vadd.f32 0.0, %v3233
    %v3235 = vpop.f32.mrf.mxu0
    %3236 = vdwg.mxu0
    %3237 = vmatpush.bf16.msra.mxu0 0
    %3238 = vmatpush.bf16.msra.mxu0 0
    %3239 = vmatpush.bf16.msra.mxu0 0
    %3240 = vmatpush.bf16.msra.mxu0 0
    %3241 = vmatpush.bf16.msra.mxu0 %v3190
    %3242 = vmatpush.bf16.msra.mxu0 %v3186
    %3243 = vmatpush.bf16.msra.mxu0 %v3182
    %3244 = vmatpush.bf16.msra.mxu0 %v3178
    %3245 = vmatmul.bf16.gmra.mxu0 %v3209
    %v3246 = vpop.f32.mrf.mxu0
    %v3247 = vadd.f32 0.0, %v3246
    %v3248 = vpop.f32.mrf.mxu0
    %3249 = vdwg.mxu0
    %3250 = vmatpush.bf16.msra.mxu0 0
    %3251 = vmatpush.bf16.msra.mxu0 0
    %3252 = vmatpush.bf16.msra.mxu0 0
    %3253 = vmatpush.bf16.msra.mxu0 0
    %3254 = vmatpush.bf16.msra.mxu0 %v3191
    %3255 = vmatpush.bf16.msra.mxu0 %v3187
    %3256 = vmatpush.bf16.msra.mxu0 %v3183
    %3257 = vmatpush.bf16.msra.mxu0 %v3179
    %3258 = vmatmul.bf16.gmra.mxu0 %v3209
    %v3259 = vpop.f32.mrf.mxu0
    %v3260 = vadd.f32 0.0, %v3259
    %v3261 = vpop.f32.mrf.mxu0
    %3262 = vdwg.mxu0
    %v3263 = vadd.f32 %v3103, %v3221
    %v3264 = vadd.f32 %v3104, %v3234
    %v3265 = vadd.f32 %v3105, %v3247
    %v3266 = vadd.f32 %v3106, %v3260
    %s3267 = scalar_lea.vmem [#allocation2], 1280
    %v3268 = vld [vmem:[%s3267] sm:$0xff]
    %v3269 = vld [vmem:[%s3267 + $0x8] sm:$0xff]
    %v3270 = vld [vmem:[%s3267 + $0x10] sm:$0xff]
    %v3271 = vld [vmem:[%s3267 + $0x18] sm:$0xff]
    %v3272 = vld [vmem:[%s3267 + $0x20] sm:$0xff]
    %v3273 = vld [vmem:[%s3267 + $0x28] sm:$0xff]
    %v3274 = vld [vmem:[%s3267 + $0x30] sm:$0xff]
    %v3275 = vld [vmem:[%s3267 + $0x38] sm:$0xff]
    %v3276 = vld [vmem:[%s3267 + $0x40] sm:$0xff]
    %v3277 = vld [vmem:[%s3267 + $0x48] sm:$0xff]
    %v3278 = vld [vmem:[%s3267 + $0x50] sm:$0xff]
    %v3279 = vld [vmem:[%s3267 + $0x58] sm:$0xff]
    %v3280 = vld [vmem:[%s3267 + $0x60] sm:$0xff]
    %v3281 = vld [vmem:[%s3267 + $0x68] sm:$0xff]
    %v3282 = vld [vmem:[%s3267 + $0x70] sm:$0xff]
    %v3283 = vld [vmem:[%s3267 + $0x78] sm:$0xff]
    %v3284 = vrot.slane %v3126, 2
    %v3301 = vunpack.c.l.b16 %v3268
    %v3302 = vunpack.c.h.b16 %v3268
    %v3303 = vunpack.c.l.b16 %v3269
    %v3304 = vunpack.c.h.b16 %v3269
    %v3305 = vunpack.c.l.b16 %v3270
    %v3306 = vunpack.c.h.b16 %v3270
    %v3307 = vunpack.c.l.b16 %v3271
    %v3308 = vunpack.c.h.b16 %v3271
    %v3309 = vunpack.c.l.b16 %v3272
    %v3310 = vunpack.c.h.b16 %v3272
    %v3311 = vunpack.c.l.b16 %v3273
    %v3312 = vunpack.c.h.b16 %v3273
    %v3313 = vunpack.c.l.b16 %v3274
    %v3314 = vunpack.c.h.b16 %v3274
    %v3315 = vunpack.c.l.b16 %v3275
    %v3316 = vunpack.c.h.b16 %v3275
    %v3317 = vunpack.c.l.b16 %v3276
    %v3318 = vunpack.c.h.b16 %v3276
    %v3319 = vunpack.c.l.b16 %v3277
    %v3320 = vunpack.c.h.b16 %v3277
    %v3321 = vunpack.c.l.b16 %v3278
    %v3322 = vunpack.c.h.b16 %v3278
    %v3323 = vunpack.c.l.b16 %v3279
    %v3324 = vunpack.c.h.b16 %v3279
    %v3325 = vunpack.c.l.b16 %v3280
    %v3326 = vunpack.c.h.b16 %v3280
    %v3327 = vunpack.c.l.b16 %v3281
    %v3328 = vunpack.c.h.b16 %v3281
    %v3329 = vunpack.c.l.b16 %v3282
    %v3330 = vunpack.c.h.b16 %v3282
    %v3331 = vunpack.c.l.b16 %v3283
    %v3332 = vunpack.c.h.b16 %v3283
    %v3333 = vpack.c.b16 %v3305, %v3301
    %v3334 = vpack.c.b16 %v3306, %v3302
    %v3335 = vpack.c.b16 %v3307, %v3303
    %v3336 = vpack.c.b16 %v3308, %v3304
    %v3337 = vpack.c.b16 %v3313, %v3309
    %v3338 = vpack.c.b16 %v3314, %v3310
    %v3339 = vpack.c.b16 %v3315, %v3311
    %v3340 = vpack.c.b16 %v3316, %v3312
    %v3341 = vpack.c.b16 %v3321, %v3317
    %v3342 = vpack.c.b16 %v3322, %v3318
    %v3343 = vpack.c.b16 %v3323, %v3319
    %v3344 = vpack.c.b16 %v3324, %v3320
    %v3345 = vpack.c.b16 %v3329, %v3325
    %v3346 = vpack.c.b16 %v3330, %v3326
    %v3347 = vpack.c.b16 %v3331, %v3327
    %v3348 = vpack.c.b16 %v3332, %v3328
    %v3366 = vsel %vm1816, %v3284, 0
    %3368 = vmatpush.bf16.msra.mxu0 0
    %3369 = vmatpush.bf16.msra.mxu0 0
    %3370 = vmatpush.bf16.msra.mxu0 0
    %3371 = vmatpush.bf16.msra.mxu0 0
    %3372 = vmatpush.bf16.msra.mxu0 %v3345
    %3373 = vmatpush.bf16.msra.mxu0 %v3341
    %3374 = vmatpush.bf16.msra.mxu0 %v3337
    %3375 = vmatpush.bf16.msra.mxu0 %v3333
    %3376 = vmatmul.bf16.gmra.mxu0 %v3366
    %v3377 = vpop.f32.mrf.mxu0
    %v3378 = vadd.f32 0.0, %v3377
    %v3379 = vpop.f32.mrf.mxu0
    %3380 = vdwg.mxu0
    %3381 = vmatpush.bf16.msra.mxu0 0
    %3382 = vmatpush.bf16.msra.mxu0 0
    %3383 = vmatpush.bf16.msra.mxu0 0
    %3384 = vmatpush.bf16.msra.mxu0 0
    %3385 = vmatpush.bf16.msra.mxu0 %v3346
    %3386 = vmatpush.bf16.msra.mxu0 %v3342
    %3387 = vmatpush.bf16.msra.mxu0 %v3338
    %3388 = vmatpush.bf16.msra.mxu0 %v3334
    %3389 = vmatmul.bf16.gmra.mxu0 %v3366
    %v3390 = vpop.f32.mrf.mxu0
    %v3391 = vadd.f32 0.0, %v3390
    %v3392 = vpop.f32.mrf.mxu0
    %3393 = vdwg.mxu0
    %3394 = vmatpush.bf16.msra.mxu0 0
    %3395 = vmatpush.bf16.msra.mxu0 0
    %3396 = vmatpush.bf16.msra.mxu0 0
    %3397 = vmatpush.bf16.msra.mxu0 0
    %3398 = vmatpush.bf16.msra.mxu0 %v3347
    %3399 = vmatpush.bf16.msra.mxu0 %v3343
    %3400 = vmatpush.bf16.msra.mxu0 %v3339
    %3401 = vmatpush.bf16.msra.mxu0 %v3335
    %3402 = vmatmul.bf16.gmra.mxu0 %v3366
    %v3403 = vpop.f32.mrf.mxu0
    %v3404 = vadd.f32 0.0, %v3403
    %v3405 = vpop.f32.mrf.mxu0
    %3406 = vdwg.mxu0
    %3407 = vmatpush.bf16.msra.mxu0 0
    %3408 = vmatpush.bf16.msra.mxu0 0
    %3409 = vmatpush.bf16.msra.mxu0 0
    %3410 = vmatpush.bf16.msra.mxu0 0
    %3411 = vmatpush.bf16.msra.mxu0 %v3348
    %3412 = vmatpush.bf16.msra.mxu0 %v3344
    %3413 = vmatpush.bf16.msra.mxu0 %v3340
    %3414 = vmatpush.bf16.msra.mxu0 %v3336
    %3415 = vmatmul.bf16.gmra.mxu0 %v3366
    %v3416 = vpop.f32.mrf.mxu0
    %v3417 = vadd.f32 0.0, %v3416
    %v3418 = vpop.f32.mrf.mxu0
    %3419 = vdwg.mxu0
    %v3420 = vadd.f32 %v3263, %v3378
    %v3421 = vadd.f32 %v3264, %v3391
    %v3422 = vadd.f32 %v3265, %v3404
    %v3423 = vadd.f32 %v3266, %v3417
    %s3424 = scalar_lea.vmem [#allocation2], 1408
    %v3425 = vld [vmem:[%s3424] sm:$0xff]
    %v3426 = vld [vmem:[%s3424 + $0x8] sm:$0xff]
    %v3427 = vld [vmem:[%s3424 + $0x10] sm:$0xff]
    %v3428 = vld [vmem:[%s3424 + $0x18] sm:$0xff]
    %v3429 = vld [vmem:[%s3424 + $0x20] sm:$0xff]
    %v3430 = vld [vmem:[%s3424 + $0x28] sm:$0xff]
    %v3431 = vld [vmem:[%s3424 + $0x30] sm:$0xff]
    %v3432 = vld [vmem:[%s3424 + $0x38] sm:$0xff]
    %v3433 = vld [vmem:[%s3424 + $0x40] sm:$0xff]
    %v3434 = vld [vmem:[%s3424 + $0x48] sm:$0xff]
    %v3435 = vld [vmem:[%s3424 + $0x50] sm:$0xff]
    %v3436 = vld [vmem:[%s3424 + $0x58] sm:$0xff]
    %v3437 = vld [vmem:[%s3424 + $0x60] sm:$0xff]
    %v3438 = vld [vmem:[%s3424 + $0x68] sm:$0xff]
    %v3439 = vld [vmem:[%s3424 + $0x70] sm:$0xff]
    %v3440 = vld [vmem:[%s3424 + $0x78] sm:$0xff]
    %v3441 = vrot.slane %v3126, 3
    %v3458 = vunpack.c.l.b16 %v3425
    %v3459 = vunpack.c.h.b16 %v3425
    %v3460 = vunpack.c.l.b16 %v3426
    %v3461 = vunpack.c.h.b16 %v3426
    %v3462 = vunpack.c.l.b16 %v3427
    %v3463 = vunpack.c.h.b16 %v3427
    %v3464 = vunpack.c.l.b16 %v3428
    %v3465 = vunpack.c.h.b16 %v3428
    %v3466 = vunpack.c.l.b16 %v3429
    %v3467 = vunpack.c.h.b16 %v3429
    %v3468 = vunpack.c.l.b16 %v3430
    %v3469 = vunpack.c.h.b16 %v3430
    %v3470 = vunpack.c.l.b16 %v3431
    %v3471 = vunpack.c.h.b16 %v3431
    %v3472 = vunpack.c.l.b16 %v3432
    %v3473 = vunpack.c.h.b16 %v3432
    %v3474 = vunpack.c.l.b16 %v3433
    %v3475 = vunpack.c.h.b16 %v3433
    %v3476 = vunpack.c.l.b16 %v3434
    %v3477 = vunpack.c.h.b16 %v3434
    %v3478 = vunpack.c.l.b16 %v3435
    %v3479 = vunpack.c.h.b16 %v3435
    %v3480 = vunpack.c.l.b16 %v3436
    %v3481 = vunpack.c.h.b16 %v3436
    %v3482 = vunpack.c.l.b16 %v3437
    %v3483 = vunpack.c.h.b16 %v3437
    %v3484 = vunpack.c.l.b16 %v3438
    %v3485 = vunpack.c.h.b16 %v3438
    %v3486 = vunpack.c.l.b16 %v3439
    %v3487 = vunpack.c.h.b16 %v3439
    %v3488 = vunpack.c.l.b16 %v3440
    %v3489 = vunpack.c.h.b16 %v3440
    %v3490 = vpack.c.b16 %v3462, %v3458
    %v3491 = vpack.c.b16 %v3463, %v3459
    %v3492 = vpack.c.b16 %v3464, %v3460
    %v3493 = vpack.c.b16 %v3465, %v3461
    %v3494 = vpack.c.b16 %v3470, %v3466
    %v3495 = vpack.c.b16 %v3471, %v3467
    %v3496 = vpack.c.b16 %v3472, %v3468
    %v3497 = vpack.c.b16 %v3473, %v3469
    %v3498 = vpack.c.b16 %v3478, %v3474
    %v3499 = vpack.c.b16 %v3479, %v3475
    %v3500 = vpack.c.b16 %v3480, %v3476
    %v3501 = vpack.c.b16 %v3481, %v3477
    %v3502 = vpack.c.b16 %v3486, %v3482
    %v3503 = vpack.c.b16 %v3487, %v3483
    %v3504 = vpack.c.b16 %v3488, %v3484
    %v3505 = vpack.c.b16 %v3489, %v3485
    %v3523 = vsel %vm1816, %v3441, 0
    %3525 = vmatpush.bf16.msra.mxu0 0
    %3526 = vmatpush.bf16.msra.mxu0 0
    %3527 = vmatpush.bf16.msra.mxu0 0
    %3528 = vmatpush.bf16.msra.mxu0 0
    %3529 = vmatpush.bf16.msra.mxu0 %v3502
    %3530 = vmatpush.bf16.msra.mxu0 %v3498
    %3531 = vmatpush.bf16.msra.mxu0 %v3494
    %3532 = vmatpush.bf16.msra.mxu0 %v3490
    %3533 = vmatmul.bf16.gmra.mxu0 %v3523
    %v3534 = vpop.f32.mrf.mxu0
    %v3535 = vadd.f32 0.0, %v3534
    %v3536 = vpop.f32.mrf.mxu0
    %3537 = vdwg.mxu0
    %3538 = vmatpush.bf16.msra.mxu0 0
    %3539 = vmatpush.bf16.msra.mxu0 0
    %3540 = vmatpush.bf16.msra.mxu0 0
    %3541 = vmatpush.bf16.msra.mxu0 0
    %3542 = vmatpush.bf16.msra.mxu0 %v3503
    %3543 = vmatpush.bf16.msra.mxu0 %v3499
    %3544 = vmatpush.bf16.msra.mxu0 %v3495
    %3545 = vmatpush.bf16.msra.mxu0 %v3491
    %3546 = vmatmul.bf16.gmra.mxu0 %v3523
    %v3547 = vpop.f32.mrf.mxu0
    %v3548 = vadd.f32 0.0, %v3547
    %v3549 = vpop.f32.mrf.mxu0
    %3550 = vdwg.mxu0
    %3551 = vmatpush.bf16.msra.mxu0 0
    %3552 = vmatpush.bf16.msra.mxu0 0
    %3553 = vmatpush.bf16.msra.mxu0 0
    %3554 = vmatpush.bf16.msra.mxu0 0
    %3555 = vmatpush.bf16.msra.mxu0 %v3504
    %3556 = vmatpush.bf16.msra.mxu0 %v3500
    %3557 = vmatpush.bf16.msra.mxu0 %v3496
    %3558 = vmatpush.bf16.msra.mxu0 %v3492
    %3559 = vmatmul.bf16.gmra.mxu0 %v3523
    %v3560 = vpop.f32.mrf.mxu0
    %v3561 = vadd.f32 0.0, %v3560
    %v3562 = vpop.f32.mrf.mxu0
    %3563 = vdwg.mxu0
    %3564 = vmatpush.bf16.msra.mxu0 0
    %3565 = vmatpush.bf16.msra.mxu0 0
    %3566 = vmatpush.bf16.msra.mxu0 0
    %3567 = vmatpush.bf16.msra.mxu0 0
    %3568 = vmatpush.bf16.msra.mxu0 %v3505
    %3569 = vmatpush.bf16.msra.mxu0 %v3501
    %3570 = vmatpush.bf16.msra.mxu0 %v3497
    %3571 = vmatpush.bf16.msra.mxu0 %v3493
    %3572 = vmatmul.bf16.gmra.mxu0 %v3523
    %v3573 = vpop.f32.mrf.mxu0
    %v3574 = vadd.f32 0.0, %v3573
    %v3575 = vpop.f32.mrf.mxu0
    %3576 = vdwg.mxu0
    %v3577 = vadd.f32 %v3420, %v3535
    %v3578 = vadd.f32 %v3421, %v3548
    %v3579 = vadd.f32 %v3422, %v3561
    %v3580 = vadd.f32 %v3423, %v3574
    %s3581 = scalar_lea.vmem [#allocation2], 1536
    %v3582 = vld [vmem:[%s3581] sm:$0xff]
    %v3583 = vld [vmem:[%s3581 + $0x8] sm:$0xff]
    %v3584 = vld [vmem:[%s3581 + $0x10] sm:$0xff]
    %v3585 = vld [vmem:[%s3581 + $0x18] sm:$0xff]
    %v3586 = vld [vmem:[%s3581 + $0x20] sm:$0xff]
    %v3587 = vld [vmem:[%s3581 + $0x28] sm:$0xff]
    %v3588 = vld [vmem:[%s3581 + $0x30] sm:$0xff]
    %v3589 = vld [vmem:[%s3581 + $0x38] sm:$0xff]
    %v3590 = vld [vmem:[%s3581 + $0x40] sm:$0xff]
    %v3591 = vld [vmem:[%s3581 + $0x48] sm:$0xff]
    %v3592 = vld [vmem:[%s3581 + $0x50] sm:$0xff]
    %v3593 = vld [vmem:[%s3581 + $0x58] sm:$0xff]
    %v3594 = vld [vmem:[%s3581 + $0x60] sm:$0xff]
    %v3595 = vld [vmem:[%s3581 + $0x68] sm:$0xff]
    %v3596 = vld [vmem:[%s3581 + $0x70] sm:$0xff]
    %v3597 = vld [vmem:[%s3581 + $0x78] sm:$0xff]
    %v3614 = vunpack.c.l.b16 %v3582
    %v3615 = vunpack.c.h.b16 %v3582
    %v3616 = vunpack.c.l.b16 %v3583
    %v3617 = vunpack.c.h.b16 %v3583
    %v3618 = vunpack.c.l.b16 %v3584
    %v3619 = vunpack.c.h.b16 %v3584
    %v3620 = vunpack.c.l.b16 %v3585
    %v3621 = vunpack.c.h.b16 %v3585
    %v3622 = vunpack.c.l.b16 %v3586
    %v3623 = vunpack.c.h.b16 %v3586
    %v3624 = vunpack.c.l.b16 %v3587
    %v3625 = vunpack.c.h.b16 %v3587
    %v3626 = vunpack.c.l.b16 %v3588
    %v3627 = vunpack.c.h.b16 %v3588
    %v3628 = vunpack.c.l.b16 %v3589
    %v3629 = vunpack.c.h.b16 %v3589
    %v3630 = vunpack.c.l.b16 %v3590
    %v3631 = vunpack.c.h.b16 %v3590
    %v3632 = vunpack.c.l.b16 %v3591
    %v3633 = vunpack.c.h.b16 %v3591
    %v3634 = vunpack.c.l.b16 %v3592
    %v3635 = vunpack.c.h.b16 %v3592
    %v3636 = vunpack.c.l.b16 %v3593
    %v3637 = vunpack.c.h.b16 %v3593
    %v3638 = vunpack.c.l.b16 %v3594
    %v3639 = vunpack.c.h.b16 %v3594
    %v3640 = vunpack.c.l.b16 %v3595
    %v3641 = vunpack.c.h.b16 %v3595
    %v3642 = vunpack.c.l.b16 %v3596
    %v3643 = vunpack.c.h.b16 %v3596
    %v3644 = vunpack.c.l.b16 %v3597
    %v3645 = vunpack.c.h.b16 %v3597
    %v3646 = vpack.c.b16 %v3618, %v3614
    %v3647 = vpack.c.b16 %v3619, %v3615
    %v3648 = vpack.c.b16 %v3620, %v3616
    %v3649 = vpack.c.b16 %v3621, %v3617
    %v3650 = vpack.c.b16 %v3626, %v3622
    %v3651 = vpack.c.b16 %v3627, %v3623
    %v3652 = vpack.c.b16 %v3628, %v3624
    %v3653 = vpack.c.b16 %v3629, %v3625
    %v3654 = vpack.c.b16 %v3634, %v3630
    %v3655 = vpack.c.b16 %v3635, %v3631
    %v3656 = vpack.c.b16 %v3636, %v3632
    %v3657 = vpack.c.b16 %v3637, %v3633
    %v3658 = vpack.c.b16 %v3642, %v3638
    %v3659 = vpack.c.b16 %v3643, %v3639
    %v3660 = vpack.c.b16 %v3644, %v3640
    %v3661 = vpack.c.b16 %v3645, %v3641
    %v3679 = vsel %vm1816, %v1693, 0
    %3681 = vmatpush.bf16.msra.mxu0 0
    %3682 = vmatpush.bf16.msra.mxu0 0
    %3683 = vmatpush.bf16.msra.mxu0 0
    %3684 = vmatpush.bf16.msra.mxu0 0
    %3685 = vmatpush.bf16.msra.mxu0 %v3658
    %3686 = vmatpush.bf16.msra.mxu0 %v3654
    %3687 = vmatpush.bf16.msra.mxu0 %v3650
    %3688 = vmatpush.bf16.msra.mxu0 %v3646
    %3689 = vmatmul.bf16.gmra.mxu0 %v3679
    %v3690 = vpop.f32.mrf.mxu0
    %v3691 = vadd.f32 0.0, %v3690
    %v3692 = vpop.f32.mrf.mxu0
    %3693 = vdwg.mxu0
    %3694 = vmatpush.bf16.msra.mxu0 0
    %3695 = vmatpush.bf16.msra.mxu0 0
    %3696 = vmatpush.bf16.msra.mxu0 0
    %3697 = vmatpush.bf16.msra.mxu0 0
    %3698 = vmatpush.bf16.msra.mxu0 %v3659
    %3699 = vmatpush.bf16.msra.mxu0 %v3655
    %3700 = vmatpush.bf16.msra.mxu0 %v3651
    %3701 = vmatpush.bf16.msra.mxu0 %v3647
    %3702 = vmatmul.bf16.gmra.mxu0 %v3679
    %v3703 = vpop.f32.mrf.mxu0
    %v3704 = vadd.f32 0.0, %v3703
    %v3705 = vpop.f32.mrf.mxu0
    %3706 = vdwg.mxu0
    %3707 = vmatpush.bf16.msra.mxu0 0
    %3708 = vmatpush.bf16.msra.mxu0 0
    %3709 = vmatpush.bf16.msra.mxu0 0
    %3710 = vmatpush.bf16.msra.mxu0 0
    %3711 = vmatpush.bf16.msra.mxu0 %v3660
    %3712 = vmatpush.bf16.msra.mxu0 %v3656
    %3713 = vmatpush.bf16.msra.mxu0 %v3652
    %3714 = vmatpush.bf16.msra.mxu0 %v3648
    %3715 = vmatmul.bf16.gmra.mxu0 %v3679
    %v3716 = vpop.f32.mrf.mxu0
    %v3717 = vadd.f32 0.0, %v3716
    %v3718 = vpop.f32.mrf.mxu0
    %3719 = vdwg.mxu0
    %3720 = vmatpush.bf16.msra.mxu0 0
    %3721 = vmatpush.bf16.msra.mxu0 0
    %3722 = vmatpush.bf16.msra.mxu0 0
    %3723 = vmatpush.bf16.msra.mxu0 0
    %3724 = vmatpush.bf16.msra.mxu0 %v3661
    %3725 = vmatpush.bf16.msra.mxu0 %v3657
    %3726 = vmatpush.bf16.msra.mxu0 %v3653
    %3727 = vmatpush.bf16.msra.mxu0 %v3649
    %3728 = vmatmul.bf16.gmra.mxu0 %v3679
    %v3729 = vpop.f32.mrf.mxu0
    %v3730 = vadd.f32 0.0, %v3729
    %v3731 = vpop.f32.mrf.mxu0
    %3732 = vdwg.mxu0
    %v3733 = vadd.f32 %v3577, %v3691
    %v3734 = vadd.f32 %v3578, %v3704
    %v3735 = vadd.f32 %v3579, %v3717
    %v3736 = vadd.f32 %v3580, %v3730
    %s3737 = scalar_lea.vmem [#allocation2], 1664
    %v3738 = vld [vmem:[%s3737] sm:$0xff]
    %v3739 = vld [vmem:[%s3737 + $0x8] sm:$0xff]
    %v3740 = vld [vmem:[%s3737 + $0x10] sm:$0xff]
    %v3741 = vld [vmem:[%s3737 + $0x18] sm:$0xff]
    %v3742 = vld [vmem:[%s3737 + $0x20] sm:$0xff]
    %v3743 = vld [vmem:[%s3737 + $0x28] sm:$0xff]
    %v3744 = vld [vmem:[%s3737 + $0x30] sm:$0xff]
    %v3745 = vld [vmem:[%s3737 + $0x38] sm:$0xff]
    %v3746 = vld [vmem:[%s3737 + $0x40] sm:$0xff]
    %v3747 = vld [vmem:[%s3737 + $0x48] sm:$0xff]
    %v3748 = vld [vmem:[%s3737 + $0x50] sm:$0xff]
    %v3749 = vld [vmem:[%s3737 + $0x58] sm:$0xff]
    %v3750 = vld [vmem:[%s3737 + $0x60] sm:$0xff]
    %v3751 = vld [vmem:[%s3737 + $0x68] sm:$0xff]
    %v3752 = vld [vmem:[%s3737 + $0x70] sm:$0xff]
    %v3753 = vld [vmem:[%s3737 + $0x78] sm:$0xff]
    %v3755 = vunpack.c.l.b16 %v1693
    %v3756 = vpack.c.b16 %v3755, %v3755
    %v3757 = vrot.slane %v3756, 1
    %v3774 = vunpack.c.l.b16 %v3738
    %v3775 = vunpack.c.h.b16 %v3738
    %v3776 = vunpack.c.l.b16 %v3739
    %v3777 = vunpack.c.h.b16 %v3739
    %v3778 = vunpack.c.l.b16 %v3740
    %v3779 = vunpack.c.h.b16 %v3740
    %v3780 = vunpack.c.l.b16 %v3741
    %v3781 = vunpack.c.h.b16 %v3741
    %v3782 = vunpack.c.l.b16 %v3742
    %v3783 = vunpack.c.h.b16 %v3742
    %v3784 = vunpack.c.l.b16 %v3743
    %v3785 = vunpack.c.h.b16 %v3743
    %v3786 = vunpack.c.l.b16 %v3744
    %v3787 = vunpack.c.h.b16 %v3744
    %v3788 = vunpack.c.l.b16 %v3745
    %v3789 = vunpack.c.h.b16 %v3745
    %v3790 = vunpack.c.l.b16 %v3746
    %v3791 = vunpack.c.h.b16 %v3746
    %v3792 = vunpack.c.l.b16 %v3747
    %v3793 = vunpack.c.h.b16 %v3747
    %v3794 = vunpack.c.l.b16 %v3748
    %v3795 = vunpack.c.h.b16 %v3748
    %v3796 = vunpack.c.l.b16 %v3749
    %v3797 = vunpack.c.h.b16 %v3749
    %v3798 = vunpack.c.l.b16 %v3750
    %v3799 = vunpack.c.h.b16 %v3750
    %v3800 = vunpack.c.l.b16 %v3751
    %v3801 = vunpack.c.h.b16 %v3751
    %v3802 = vunpack.c.l.b16 %v3752
    %v3803 = vunpack.c.h.b16 %v3752
    %v3804 = vunpack.c.l.b16 %v3753
    %v3805 = vunpack.c.h.b16 %v3753
    %v3806 = vpack.c.b16 %v3778, %v3774
    %v3807 = vpack.c.b16 %v3779, %v3775
    %v3808 = vpack.c.b16 %v3780, %v3776
    %v3809 = vpack.c.b16 %v3781, %v3777
    %v3810 = vpack.c.b16 %v3786, %v3782
    %v3811 = vpack.c.b16 %v3787, %v3783
    %v3812 = vpack.c.b16 %v3788, %v3784
    %v3813 = vpack.c.b16 %v3789, %v3785
    %v3814 = vpack.c.b16 %v3794, %v3790
    %v3815 = vpack.c.b16 %v3795, %v3791
    %v3816 = vpack.c.b16 %v3796, %v3792
    %v3817 = vpack.c.b16 %v3797, %v3793
    %v3818 = vpack.c.b16 %v3802, %v3798
    %v3819 = vpack.c.b16 %v3803, %v3799
    %v3820 = vpack.c.b16 %v3804, %v3800
    %v3821 = vpack.c.b16 %v3805, %v3801
    %v3839 = vsel %vm1816, %v3757, 0
    %3841 = vmatpush.bf16.msra.mxu0 0
    %3842 = vmatpush.bf16.msra.mxu0 0
    %3843 = vmatpush.bf16.msra.mxu0 0
    %3844 = vmatpush.bf16.msra.mxu0 0
    %3845 = vmatpush.bf16.msra.mxu0 %v3818
    %3846 = vmatpush.bf16.msra.mxu0 %v3814
    %3847 = vmatpush.bf16.msra.mxu0 %v3810
    %3848 = vmatpush.bf16.msra.mxu0 %v3806
    %3849 = vmatmul.bf16.gmra.mxu0 %v3839
    %v3850 = vpop.f32.mrf.mxu0
    %v3851 = vadd.f32 0.0, %v3850
    %v3852 = vpop.f32.mrf.mxu0
    %3853 = vdwg.mxu0
    %3854 = vmatpush.bf16.msra.mxu0 0
    %3855 = vmatpush.bf16.msra.mxu0 0
    %3856 = vmatpush.bf16.msra.mxu0 0
    %3857 = vmatpush.bf16.msra.mxu0 0
    %3858 = vmatpush.bf16.msra.mxu0 %v3819
    %3859 = vmatpush.bf16.msra.mxu0 %v3815
    %3860 = vmatpush.bf16.msra.mxu0 %v3811
    %3861 = vmatpush.bf16.msra.mxu0 %v3807
    %3862 = vmatmul.bf16.gmra.mxu0 %v3839
    %v3863 = vpop.f32.mrf.mxu0
    %v3864 = vadd.f32 0.0, %v3863
    %v3865 = vpop.f32.mrf.mxu0
    %3866 = vdwg.mxu0
    %3867 = vmatpush.bf16.msra.mxu0 0
    %3868 = vmatpush.bf16.msra.mxu0 0
    %3869 = vmatpush.bf16.msra.mxu0 0
    %3870 = vmatpush.bf16.msra.mxu0 0
    %3871 = vmatpush.bf16.msra.mxu0 %v3820
    %3872 = vmatpush.bf16.msra.mxu0 %v3816
    %3873 = vmatpush.bf16.msra.mxu0 %v3812
    %3874 = vmatpush.bf16.msra.mxu0 %v3808
    %3875 = vmatmul.bf16.gmra.mxu0 %v3839
    %v3876 = vpop.f32.mrf.mxu0
    %v3877 = vadd.f32 0.0, %v3876
    %v3878 = vpop.f32.mrf.mxu0
    %3879 = vdwg.mxu0
    %3880 = vmatpush.bf16.msra.mxu0 0
    %3881 = vmatpush.bf16.msra.mxu0 0
    %3882 = vmatpush.bf16.msra.mxu0 0
    %3883 = vmatpush.bf16.msra.mxu0 0
    %3884 = vmatpush.bf16.msra.mxu0 %v3821
    %3885 = vmatpush.bf16.msra.mxu0 %v3817
    %3886 = vmatpush.bf16.msra.mxu0 %v3813
    %3887 = vmatpush.bf16.msra.mxu0 %v3809
    %3888 = vmatmul.bf16.gmra.mxu0 %v3839
    %v3889 = vpop.f32.mrf.mxu0
    %v3890 = vadd.f32 0.0, %v3889
    %v3891 = vpop.f32.mrf.mxu0
    %3892 = vdwg.mxu0
    %v3893 = vadd.f32 %v3733, %v3851
    %v3894 = vadd.f32 %v3734, %v3864
    %v3895 = vadd.f32 %v3735, %v3877
    %v3896 = vadd.f32 %v3736, %v3890
    %s3897 = scalar_lea.vmem [#allocation2], 1792
    %v3898 = vld [vmem:[%s3897] sm:$0xff]
    %v3899 = vld [vmem:[%s3897 + $0x8] sm:$0xff]
    %v3900 = vld [vmem:[%s3897 + $0x10] sm:$0xff]
    %v3901 = vld [vmem:[%s3897 + $0x18] sm:$0xff]
    %v3902 = vld [vmem:[%s3897 + $0x20] sm:$0xff]
    %v3903 = vld [vmem:[%s3897 + $0x28] sm:$0xff]
    %v3904 = vld [vmem:[%s3897 + $0x30] sm:$0xff]
    %v3905 = vld [vmem:[%s3897 + $0x38] sm:$0xff]
    %v3906 = vld [vmem:[%s3897 + $0x40] sm:$0xff]
    %v3907 = vld [vmem:[%s3897 + $0x48] sm:$0xff]
    %v3908 = vld [vmem:[%s3897 + $0x50] sm:$0xff]
    %v3909 = vld [vmem:[%s3897 + $0x58] sm:$0xff]
    %v3910 = vld [vmem:[%s3897 + $0x60] sm:$0xff]
    %v3911 = vld [vmem:[%s3897 + $0x68] sm:$0xff]
    %v3912 = vld [vmem:[%s3897 + $0x70] sm:$0xff]
    %v3913 = vld [vmem:[%s3897 + $0x78] sm:$0xff]
    %v3914 = vrot.slane %v3756, 2
    %v3931 = vunpack.c.l.b16 %v3898
    %v3932 = vunpack.c.h.b16 %v3898
    %v3933 = vunpack.c.l.b16 %v3899
    %v3934 = vunpack.c.h.b16 %v3899
    %v3935 = vunpack.c.l.b16 %v3900
    %v3936 = vunpack.c.h.b16 %v3900
    %v3937 = vunpack.c.l.b16 %v3901
    %v3938 = vunpack.c.h.b16 %v3901
    %v3939 = vunpack.c.l.b16 %v3902
    %v3940 = vunpack.c.h.b16 %v3902
    %v3941 = vunpack.c.l.b16 %v3903
    %v3942 = vunpack.c.h.b16 %v3903
    %v3943 = vunpack.c.l.b16 %v3904
    %v3944 = vunpack.c.h.b16 %v3904
    %v3945 = vunpack.c.l.b16 %v3905
    %v3946 = vunpack.c.h.b16 %v3905
    %v3947 = vunpack.c.l.b16 %v3906
    %v3948 = vunpack.c.h.b16 %v3906
    %v3949 = vunpack.c.l.b16 %v3907
    %v3950 = vunpack.c.h.b16 %v3907
    %v3951 = vunpack.c.l.b16 %v3908
    %v3952 = vunpack.c.h.b16 %v3908
    %v3953 = vunpack.c.l.b16 %v3909
    %v3954 = vunpack.c.h.b16 %v3909
    %v3955 = vunpack.c.l.b16 %v3910
    %v3956 = vunpack.c.h.b16 %v3910
    %v3957 = vunpack.c.l.b16 %v3911
    %v3958 = vunpack.c.h.b16 %v3911
    %v3959 = vunpack.c.l.b16 %v3912
    %v3960 = vunpack.c.h.b16 %v3912
    %v3961 = vunpack.c.l.b16 %v3913
    %v3962 = vunpack.c.h.b16 %v3913
    %v3963 = vpack.c.b16 %v3935, %v3931
    %v3964 = vpack.c.b16 %v3936, %v3932
    %v3965 = vpack.c.b16 %v3937, %v3933
    %v3966 = vpack.c.b16 %v3938, %v3934
    %v3967 = vpack.c.b16 %v3943, %v3939
    %v3968 = vpack.c.b16 %v3944, %v3940
    %v3969 = vpack.c.b16 %v3945, %v3941
    %v3970 = vpack.c.b16 %v3946, %v3942
    %v3971 = vpack.c.b16 %v3951, %v3947
    %v3972 = vpack.c.b16 %v3952, %v3948
    %v3973 = vpack.c.b16 %v3953, %v3949
    %v3974 = vpack.c.b16 %v3954, %v3950
    %v3975 = vpack.c.b16 %v3959, %v3955
    %v3976 = vpack.c.b16 %v3960, %v3956
    %v3977 = vpack.c.b16 %v3961, %v3957
    %v3978 = vpack.c.b16 %v3962, %v3958
    %v3996 = vsel %vm1816, %v3914, 0
    %3998 = vmatpush.bf16.msra.mxu0 0
    %3999 = vmatpush.bf16.msra.mxu0 0
    %4000 = vmatpush.bf16.msra.mxu0 0
    %4001 = vmatpush.bf16.msra.mxu0 0
    %4002 = vmatpush.bf16.msra.mxu0 %v3975
    %4003 = vmatpush.bf16.msra.mxu0 %v3971
    %4004 = vmatpush.bf16.msra.mxu0 %v3967
    %4005 = vmatpush.bf16.msra.mxu0 %v3963
    %4006 = vmatmul.bf16.gmra.mxu0 %v3996
    %v4007 = vpop.f32.mrf.mxu0
    %v4008 = vadd.f32 0.0, %v4007
    %v4009 = vpop.f32.mrf.mxu0
    %4010 = vdwg.mxu0
    %4011 = vmatpush.bf16.msra.mxu0 0
    %4012 = vmatpush.bf16.msra.mxu0 0
    %4013 = vmatpush.bf16.msra.mxu0 0
    %4014 = vmatpush.bf16.msra.mxu0 0
    %4015 = vmatpush.bf16.msra.mxu0 %v3976
    %4016 = vmatpush.bf16.msra.mxu0 %v3972
    %4017 = vmatpush.bf16.msra.mxu0 %v3968
    %4018 = vmatpush.bf16.msra.mxu0 %v3964
    %4019 = vmatmul.bf16.gmra.mxu0 %v3996
    %v4020 = vpop.f32.mrf.mxu0
    %v4021 = vadd.f32 0.0, %v4020
    %v4022 = vpop.f32.mrf.mxu0
    %4023 = vdwg.mxu0
    %4024 = vmatpush.bf16.msra.mxu0 0
    %4025 = vmatpush.bf16.msra.mxu0 0
    %4026 = vmatpush.bf16.msra.mxu0 0
    %4027 = vmatpush.bf16.msra.mxu0 0
    %4028 = vmatpush.bf16.msra.mxu0 %v3977
    %4029 = vmatpush.bf16.msra.mxu0 %v3973
    %4030 = vmatpush.bf16.msra.mxu0 %v3969
    %4031 = vmatpush.bf16.msra.mxu0 %v3965
    %4032 = vmatmul.bf16.gmra.mxu0 %v3996
    %v4033 = vpop.f32.mrf.mxu0
    %v4034 = vadd.f32 0.0, %v4033
    %v4035 = vpop.f32.mrf.mxu0
    %4036 = vdwg.mxu0
    %4037 = vmatpush.bf16.msra.mxu0 0
    %4038 = vmatpush.bf16.msra.mxu0 0
    %4039 = vmatpush.bf16.msra.mxu0 0
    %4040 = vmatpush.bf16.msra.mxu0 0
    %4041 = vmatpush.bf16.msra.mxu0 %v3978
    %4042 = vmatpush.bf16.msra.mxu0 %v3974
    %4043 = vmatpush.bf16.msra.mxu0 %v3970
    %4044 = vmatpush.bf16.msra.mxu0 %v3966
    %4045 = vmatmul.bf16.gmra.mxu0 %v3996
    %v4046 = vpop.f32.mrf.mxu0
    %v4047 = vadd.f32 0.0, %v4046
    %v4048 = vpop.f32.mrf.mxu0
    %4049 = vdwg.mxu0
    %v4050 = vadd.f32 %v3893, %v4008
    %v4051 = vadd.f32 %v3894, %v4021
    %v4052 = vadd.f32 %v3895, %v4034
    %v4053 = vadd.f32 %v3896, %v4047
    %s4054 = scalar_lea.vmem [#allocation2], 1920
    %v4055 = vld [vmem:[%s4054] sm:$0xff]
    %v4056 = vld [vmem:[%s4054 + $0x8] sm:$0xff]
    %v4057 = vld [vmem:[%s4054 + $0x10] sm:$0xff]
    %v4058 = vld [vmem:[%s4054 + $0x18] sm:$0xff]
    %v4059 = vld [vmem:[%s4054 + $0x20] sm:$0xff]
    %v4060 = vld [vmem:[%s4054 + $0x28] sm:$0xff]
    %v4061 = vld [vmem:[%s4054 + $0x30] sm:$0xff]
    %v4062 = vld [vmem:[%s4054 + $0x38] sm:$0xff]
    %v4063 = vld [vmem:[%s4054 + $0x40] sm:$0xff]
    %v4064 = vld [vmem:[%s4054 + $0x48] sm:$0xff]
    %v4065 = vld [vmem:[%s4054 + $0x50] sm:$0xff]
    %v4066 = vld [vmem:[%s4054 + $0x58] sm:$0xff]
    %v4067 = vld [vmem:[%s4054 + $0x60] sm:$0xff]
    %v4068 = vld [vmem:[%s4054 + $0x68] sm:$0xff]
    %v4069 = vld [vmem:[%s4054 + $0x70] sm:$0xff]
    %v4070 = vld [vmem:[%s4054 + $0x78] sm:$0xff]
    %v4071 = vrot.slane %v3756, 3
    %v4088 = vunpack.c.l.b16 %v4055
    %v4089 = vunpack.c.h.b16 %v4055
    %v4090 = vunpack.c.l.b16 %v4056
    %v4091 = vunpack.c.h.b16 %v4056
    %v4092 = vunpack.c.l.b16 %v4057
    %v4093 = vunpack.c.h.b16 %v4057
    %v4094 = vunpack.c.l.b16 %v4058
    %v4095 = vunpack.c.h.b16 %v4058
    %v4096 = vunpack.c.l.b16 %v4059
    %v4097 = vunpack.c.h.b16 %v4059
    %v4098 = vunpack.c.l.b16 %v4060
    %v4099 = vunpack.c.h.b16 %v4060
    %v4100 = vunpack.c.l.b16 %v4061
    %v4101 = vunpack.c.h.b16 %v4061
    %v4102 = vunpack.c.l.b16 %v4062
    %v4103 = vunpack.c.h.b16 %v4062
    %v4104 = vunpack.c.l.b16 %v4063
    %v4105 = vunpack.c.h.b16 %v4063
    %v4106 = vunpack.c.l.b16 %v4064
    %v4107 = vunpack.c.h.b16 %v4064
    %v4108 = vunpack.c.l.b16 %v4065
    %v4109 = vunpack.c.h.b16 %v4065
    %v4110 = vunpack.c.l.b16 %v4066
    %v4111 = vunpack.c.h.b16 %v4066
    %v4112 = vunpack.c.l.b16 %v4067
    %v4113 = vunpack.c.h.b16 %v4067
    %v4114 = vunpack.c.l.b16 %v4068
    %v4115 = vunpack.c.h.b16 %v4068
    %v4116 = vunpack.c.l.b16 %v4069
    %v4117 = vunpack.c.h.b16 %v4069
    %v4118 = vunpack.c.l.b16 %v4070
    %v4119 = vunpack.c.h.b16 %v4070
    %v4120 = vpack.c.b16 %v4092, %v4088
    %v4121 = vpack.c.b16 %v4093, %v4089
    %v4122 = vpack.c.b16 %v4094, %v4090
    %v4123 = vpack.c.b16 %v4095, %v4091
    %v4124 = vpack.c.b16 %v4100, %v4096
    %v4125 = vpack.c.b16 %v4101, %v4097
    %v4126 = vpack.c.b16 %v4102, %v4098
    %v4127 = vpack.c.b16 %v4103, %v4099
    %v4128 = vpack.c.b16 %v4108, %v4104
    %v4129 = vpack.c.b16 %v4109, %v4105
    %v4130 = vpack.c.b16 %v4110, %v4106
    %v4131 = vpack.c.b16 %v4111, %v4107
    %v4132 = vpack.c.b16 %v4116, %v4112
    %v4133 = vpack.c.b16 %v4117, %v4113
    %v4134 = vpack.c.b16 %v4118, %v4114
    %v4135 = vpack.c.b16 %v4119, %v4115
    %v4153 = vsel %vm1816, %v4071, 0
    %4155 = vmatpush.bf16.msra.mxu0 0
    %4156 = vmatpush.bf16.msra.mxu0 0
    %4157 = vmatpush.bf16.msra.mxu0 0
    %4158 = vmatpush.bf16.msra.mxu0 0
    %4159 = vmatpush.bf16.msra.mxu0 %v4132
    %4160 = vmatpush.bf16.msra.mxu0 %v4128
    %4161 = vmatpush.bf16.msra.mxu0 %v4124
    %4162 = vmatpush.bf16.msra.mxu0 %v4120
    %4163 = vmatmul.bf16.gmra.mxu0 %v4153
    %v4164 = vpop.f32.mrf.mxu0
    %v4165 = vadd.f32 0.0, %v4164
    %v4166 = vpop.f32.mrf.mxu0
    %4167 = vdwg.mxu0
    %4168 = vmatpush.bf16.msra.mxu0 0
    %4169 = vmatpush.bf16.msra.mxu0 0
    %4170 = vmatpush.bf16.msra.mxu0 0
    %4171 = vmatpush.bf16.msra.mxu0 0
    %4172 = vmatpush.bf16.msra.mxu0 %v4133
    %4173 = vmatpush.bf16.msra.mxu0 %v4129
    %4174 = vmatpush.bf16.msra.mxu0 %v4125
    %4175 = vmatpush.bf16.msra.mxu0 %v4121
    %4176 = vmatmul.bf16.gmra.mxu0 %v4153
    %v4177 = vpop.f32.mrf.mxu0
    %v4178 = vadd.f32 0.0, %v4177
    %v4179 = vpop.f32.mrf.mxu0
    %4180 = vdwg.mxu0
    %4181 = vmatpush.bf16.msra.mxu0 0
    %4182 = vmatpush.bf16.msra.mxu0 0
    %4183 = vmatpush.bf16.msra.mxu0 0
    %4184 = vmatpush.bf16.msra.mxu0 0
    %4185 = vmatpush.bf16.msra.mxu0 %v4134
    %4186 = vmatpush.bf16.msra.mxu0 %v4130
    %4187 = vmatpush.bf16.msra.mxu0 %v4126
    %4188 = vmatpush.bf16.msra.mxu0 %v4122
    %4189 = vmatmul.bf16.gmra.mxu0 %v4153
    %v4190 = vpop.f32.mrf.mxu0
    %v4191 = vadd.f32 0.0, %v4190
    %v4192 = vpop.f32.mrf.mxu0
    %4193 = vdwg.mxu0
    %4194 = vmatpush.bf16.msra.mxu0 0
    %4195 = vmatpush.bf16.msra.mxu0 0
    %4196 = vmatpush.bf16.msra.mxu0 0
    %4197 = vmatpush.bf16.msra.mxu0 0
    %4198 = vmatpush.bf16.msra.mxu0 %v4135
    %4199 = vmatpush.bf16.msra.mxu0 %v4131
    %4200 = vmatpush.bf16.msra.mxu0 %v4127
    %4201 = vmatpush.bf16.msra.mxu0 %v4123
    %4202 = vmatmul.bf16.gmra.mxu0 %v4153
    %v4203 = vpop.f32.mrf.mxu0
    %v4204 = vadd.f32 0.0, %v4203
    %v4205 = vpop.f32.mrf.mxu0
    %4206 = vdwg.mxu0
    %v4207 = vadd.f32 %v4050, %v4165
    %v4208 = vadd.f32 %v4051, %v4178
    %v4209 = vadd.f32 %v4052, %v4191
    %v4210 = vadd.f32 %v4053, %v4204
    %v4211 = vld [vmem:[%s4] sm:$0xf]
    %v4213 = vperm.slane %v4211, 0
    %v4214 = vperm.slane %v4211, 1
    %v4215 = vperm.slane %v4211, 2
    %v4216 = vperm.slane %v4211, 3
    %v4221 = vadd.f32 %v4207, %v4213
    %v4222 = vadd.f32 %v4208, %v4214
    %v4223 = vadd.f32 %v4209, %v4215
    %v4224 = vadd.f32 %v4210, %v4216
    %v4225 = vmax.f32 %v4221, 0.0
    %v4226 = vmax.f32 %v4222, 0.0
    %v4227 = vmax.f32 %v4223, 0.0
    %v4228 = vmax.f32 %v4224, 0.0
    %v4229 = vpack.c.bf16 %v4225, %v4225
    %v4230 = vpack.c.bf16 %v4226, %v4226
    %v4231 = vpack.c.bf16 %v4227, %v4227
    %v4232 = vpack.c.bf16 %v4228, %v4228
    %v4233 = vld [vmem:[%s5] sm:$0xf]
    %v4234 = vld [vmem:[%s5 + $0x4] sm:$0xf]
    %v4235 = vld [vmem:[%s5 + $0x8] sm:$0xf]
    %v4236 = vld [vmem:[%s5 + $0xc] sm:$0xf]
    %v4237 = vld [vmem:[%s5 + $0x10] sm:$0xf]
    %v4238 = vld [vmem:[%s5 + $0x14] sm:$0xf]
    %v4239 = vld [vmem:[%s5 + $0x18] sm:$0xf]
    %v4240 = vld [vmem:[%s5 + $0x1c] sm:$0xf]
    %v4241 = vld [vmem:[%s5 + $0x20] sm:$0xf]
    %v4242 = vld [vmem:[%s5 + $0x24] sm:$0xf]
    %v4243 = vld [vmem:[%s5 + $0x28] sm:$0xf]
    %v4244 = vld [vmem:[%s5 + $0x2c] sm:$0xf]
    %v4245 = vld [vmem:[%s5 + $0x30] sm:$0xf]
    %v4246 = vld [vmem:[%s5 + $0x34] sm:$0xf]
    %v4247 = vld [vmem:[%s5 + $0x38] sm:$0xf]
    %v4248 = vld [vmem:[%s5 + $0x3c] sm:$0xf]
    %v4249 = vld [vmem:[%s5 + $0x40] sm:$0xf]
    %v4250 = vld [vmem:[%s5 + $0x44] sm:$0xf]
    %v4251 = vld [vmem:[%s5 + $0x48] sm:$0xf]
    %v4252 = vld [vmem:[%s5 + $0x4c] sm:$0xf]
    %v4253 = vld [vmem:[%s5 + $0x50] sm:$0xf]
    %v4254 = vld [vmem:[%s5 + $0x54] sm:$0xf]
    %v4255 = vld [vmem:[%s5 + $0x58] sm:$0xf]
    %v4256 = vld [vmem:[%s5 + $0x5c] sm:$0xf]
    %v4257 = vld [vmem:[%s5 + $0x60] sm:$0xf]
    %v4258 = vld [vmem:[%s5 + $0x64] sm:$0xf]
    %v4259 = vld [vmem:[%s5 + $0x68] sm:$0xf]
    %v4260 = vld [vmem:[%s5 + $0x6c] sm:$0xf]
    %v4261 = vld [vmem:[%s5 + $0x70] sm:$0xf]
    %v4262 = vld [vmem:[%s5 + $0x74] sm:$0xf]
    %v4263 = vld [vmem:[%s5 + $0x78] sm:$0xf]
    %v4264 = vld [vmem:[%s5 + $0x7c] sm:$0xf]
    %v4265 = vld [vmem:[%s5 + $0x80] sm:$0xf]
    %v4266 = vld [vmem:[%s5 + $0x84] sm:$0xf]
    %v4267 = vld [vmem:[%s5 + $0x88] sm:$0xf]
    %v4268 = vld [vmem:[%s5 + $0x8c] sm:$0xf]
    %v4269 = vld [vmem:[%s5 + $0x90] sm:$0xf]
    %v4270 = vld [vmem:[%s5 + $0x94] sm:$0xf]
    %v4271 = vld [vmem:[%s5 + $0x98] sm:$0xf]
    %v4272 = vld [vmem:[%s5 + $0x9c] sm:$0xf]
    %v4273 = vld [vmem:[%s5 + $0xa0] sm:$0xf]
    %v4274 = vld [vmem:[%s5 + $0xa4] sm:$0xf]
    %v4275 = vld [vmem:[%s5 + $0xa8] sm:$0xf]
    %v4276 = vld [vmem:[%s5 + $0xac] sm:$0xf]
    %v4277 = vld [vmem:[%s5 + $0xb0] sm:$0xf]
    %v4278 = vld [vmem:[%s5 + $0xb4] sm:$0xf]
    %v4279 = vld [vmem:[%s5 + $0xb8] sm:$0xf]
    %v4280 = vld [vmem:[%s5 + $0xbc] sm:$0xf]
    %v4281 = vld [vmem:[%s5 + $0xc0] sm:$0xf]
    %v4282 = vld [vmem:[%s5 + $0xc4] sm:$0xf]
    %v4283 = vld [vmem:[%s5 + $0xc8] sm:$0xf]
    %v4284 = vld [vmem:[%s5 + $0xcc] sm:$0xf]
    %v4285 = vld [vmem:[%s5 + $0xd0] sm:$0xf]
    %v4286 = vld [vmem:[%s5 + $0xd4] sm:$0xf]
    %v4287 = vld [vmem:[%s5 + $0xd8] sm:$0xf]
    %v4288 = vld [vmem:[%s5 + $0xdc] sm:$0xf]
    %v4289 = vld [vmem:[%s5 + $0xe0] sm:$0xf]
    %v4290 = vld [vmem:[%s5 + $0xe4] sm:$0xf]
    %v4291 = vld [vmem:[%s5 + $0xe8] sm:$0xf]
    %v4292 = vld [vmem:[%s5 + $0xec] sm:$0xf]
    %v4293 = vld [vmem:[%s5 + $0xf0] sm:$0xf]
    %v4294 = vld [vmem:[%s5 + $0xf4] sm:$0xf]
    %v4295 = vld [vmem:[%s5 + $0xf8] sm:$0xf]
    %v4296 = vld [vmem:[%s5 + $0xfc] sm:$0xf]
    %v4297 = vld [vmem:[%s6] sm:$0x1]
    %v4299 = vperm.slane %v4297, 0
    %v4365 = vunpack.c.l.b16 %v4233
    %v4366 = vunpack.c.l.b16 %v4234
    %v4367 = vunpack.c.l.b16 %v4235
    %v4368 = vunpack.c.l.b16 %v4236
    %v4369 = vunpack.c.l.b16 %v4237
    %v4370 = vunpack.c.l.b16 %v4238
    %v4371 = vunpack.c.l.b16 %v4239
    %v4372 = vunpack.c.l.b16 %v4240
    %v4373 = vunpack.c.l.b16 %v4241
    %v4374 = vunpack.c.l.b16 %v4242
    %v4375 = vunpack.c.l.b16 %v4243
    %v4376 = vunpack.c.l.b16 %v4244
    %v4377 = vunpack.c.l.b16 %v4245
    %v4378 = vunpack.c.l.b16 %v4246
    %v4379 = vunpack.c.l.b16 %v4247
    %v4380 = vunpack.c.l.b16 %v4248
    %v4381 = vunpack.c.l.b16 %v4249
    %v4382 = vunpack.c.l.b16 %v4250
    %v4383 = vunpack.c.l.b16 %v4251
    %v4384 = vunpack.c.l.b16 %v4252
    %v4385 = vunpack.c.l.b16 %v4253
    %v4386 = vunpack.c.l.b16 %v4254
    %v4387 = vunpack.c.l.b16 %v4255
    %v4388 = vunpack.c.l.b16 %v4256
    %v4389 = vunpack.c.l.b16 %v4257
    %v4390 = vunpack.c.l.b16 %v4258
    %v4391 = vunpack.c.l.b16 %v4259
    %v4392 = vunpack.c.l.b16 %v4260
    %v4393 = vunpack.c.l.b16 %v4261
    %v4394 = vunpack.c.l.b16 %v4262
    %v4395 = vunpack.c.l.b16 %v4263
    %v4396 = vunpack.c.l.b16 %v4264
    %v4397 = vunpack.c.l.b16 %v4265
    %v4398 = vunpack.c.l.b16 %v4266
    %v4399 = vunpack.c.l.b16 %v4267
    %v4400 = vunpack.c.l.b16 %v4268
    %v4401 = vunpack.c.l.b16 %v4269
    %v4402 = vunpack.c.l.b16 %v4270
    %v4403 = vunpack.c.l.b16 %v4271
    %v4404 = vunpack.c.l.b16 %v4272
    %v4405 = vunpack.c.l.b16 %v4273
    %v4406 = vunpack.c.l.b16 %v4274
    %v4407 = vunpack.c.l.b16 %v4275
    %v4408 = vunpack.c.l.b16 %v4276
    %v4409 = vunpack.c.l.b16 %v4277
    %v4410 = vunpack.c.l.b16 %v4278
    %v4411 = vunpack.c.l.b16 %v4279
    %v4412 = vunpack.c.l.b16 %v4280
    %v4413 = vunpack.c.l.b16 %v4281
    %v4414 = vunpack.c.l.b16 %v4282
    %v4415 = vunpack.c.l.b16 %v4283
    %v4416 = vunpack.c.l.b16 %v4284
    %v4417 = vunpack.c.l.b16 %v4285
    %v4418 = vunpack.c.l.b16 %v4286
    %v4419 = vunpack.c.l.b16 %v4287
    %v4420 = vunpack.c.l.b16 %v4288
    %v4421 = vunpack.c.l.b16 %v4289
    %v4422 = vunpack.c.l.b16 %v4290
    %v4423 = vunpack.c.l.b16 %v4291
    %v4424 = vunpack.c.l.b16 %v4292
    %v4425 = vunpack.c.l.b16 %v4293
    %v4426 = vunpack.c.l.b16 %v4294
    %v4427 = vunpack.c.l.b16 %v4295
    %v4428 = vunpack.c.l.b16 %v4296
    %v4429 = vpack.c.b16 %v4366, %v4365
    %v4430 = vpack.c.b16 %v4368, %v4367
    %v4431 = vpack.c.b16 %v4370, %v4369
    %v4432 = vpack.c.b16 %v4372, %v4371
    %v4433 = vpack.c.b16 %v4374, %v4373
    %v4434 = vpack.c.b16 %v4376, %v4375
    %v4435 = vpack.c.b16 %v4378, %v4377
    %v4436 = vpack.c.b16 %v4380, %v4379
    %v4437 = vpack.c.b16 %v4382, %v4381
    %v4438 = vpack.c.b16 %v4384, %v4383
    %v4439 = vpack.c.b16 %v4386, %v4385
    %v4440 = vpack.c.b16 %v4388, %v4387
    %v4441 = vpack.c.b16 %v4390, %v4389
    %v4442 = vpack.c.b16 %v4392, %v4391
    %v4443 = vpack.c.b16 %v4394, %v4393
    %v4444 = vpack.c.b16 %v4396, %v4395
    %v4445 = vpack.c.b16 %v4398, %v4397
    %v4446 = vpack.c.b16 %v4400, %v4399
    %v4447 = vpack.c.b16 %v4402, %v4401
    %v4448 = vpack.c.b16 %v4404, %v4403
    %v4449 = vpack.c.b16 %v4406, %v4405
    %v4450 = vpack.c.b16 %v4408, %v4407
    %v4451 = vpack.c.b16 %v4410, %v4409
    %v4452 = vpack.c.b16 %v4412, %v4411
    %v4453 = vpack.c.b16 %v4414, %v4413
    %v4454 = vpack.c.b16 %v4416, %v4415
    %v4455 = vpack.c.b16 %v4418, %v4417
    %v4456 = vpack.c.b16 %v4420, %v4419
    %v4457 = vpack.c.b16 %v4422, %v4421
    %v4458 = vpack.c.b16 %v4424, %v4423
    %v4459 = vpack.c.b16 %v4426, %v4425
    %v4460 = vpack.c.b16 %v4428, %v4427
    %4493 = vmatpush.bf16.msra.mxu0 %v4436
    %4494 = vmatpush.bf16.msra.mxu0 %v4435
    %4495 = vmatpush.bf16.msra.mxu0 %v4434
    %4496 = vmatpush.bf16.msra.mxu0 %v4433
    %4497 = vmatpush.bf16.msra.mxu0 %v4432
    %4498 = vmatpush.bf16.msra.mxu0 %v4431
    %4499 = vmatpush.bf16.msra.mxu0 %v4430
    %4500 = vmatpush.bf16.msra.mxu0 %v4429
    %4501 = vmatmul.bf16.gmra.mxu0 %v4229
    %v4502 = vpop.f32.mrf.mxu0
    %v4503 = vadd.f32 %v4299, %v4502
    %v4504 = vpop.f32.mrf.mxu0
    %4505 = vdwg.mxu0
    %4506 = vmatpush.bf16.msra.mxu0 %v4444
    %4507 = vmatpush.bf16.msra.mxu0 %v4443
    %4508 = vmatpush.bf16.msra.mxu0 %v4442
    %4509 = vmatpush.bf16.msra.mxu0 %v4441
    %4510 = vmatpush.bf16.msra.mxu0 %v4440
    %4511 = vmatpush.bf16.msra.mxu0 %v4439
    %4512 = vmatpush.bf16.msra.mxu0 %v4438
    %4513 = vmatpush.bf16.msra.mxu0 %v4437
    %4514 = vmatmul.bf16.gmra.mxu0 %v4230
    %v4515 = vpop.f32.mrf.mxu0
    %v4516 = vadd.f32 %v4503, %v4515
    %v4517 = vpop.f32.mrf.mxu0
    %4518 = vdwg.mxu0
    %4519 = vmatpush.bf16.msra.mxu0 %v4452
    %4520 = vmatpush.bf16.msra.mxu0 %v4451
    %4521 = vmatpush.bf16.msra.mxu0 %v4450
    %4522 = vmatpush.bf16.msra.mxu0 %v4449
    %4523 = vmatpush.bf16.msra.mxu0 %v4448
    %4524 = vmatpush.bf16.msra.mxu0 %v4447
    %4525 = vmatpush.bf16.msra.mxu0 %v4446
    %4526 = vmatpush.bf16.msra.mxu0 %v4445
    %4527 = vmatmul.bf16.gmra.mxu0 %v4231
    %v4528 = vpop.f32.mrf.mxu0
    %v4529 = vadd.f32 %v4516, %v4528
    %v4530 = vpop.f32.mrf.mxu0
    %4531 = vdwg.mxu0
    %4532 = vmatpush.bf16.msra.mxu0 %v4460
    %4533 = vmatpush.bf16.msra.mxu0 %v4459
    %4534 = vmatpush.bf16.msra.mxu0 %v4458
    %4535 = vmatpush.bf16.msra.mxu0 %v4457
    %4536 = vmatpush.bf16.msra.mxu0 %v4456
    %4537 = vmatpush.bf16.msra.mxu0 %v4455
    %4538 = vmatpush.bf16.msra.mxu0 %v4454
    %4539 = vmatpush.bf16.msra.mxu0 %v4453
    %4540 = vmatmul.bf16.gmra.mxu0 %v4232
    %v4541 = vpop.f32.mrf.mxu0
    %v4542 = vadd.f32 %v4529, %v4541
    %v4543 = vpop.f32.mrf.mxu0
    %4544 = vdwg.mxu0
    %4545 = vst [vmem:[#allocation4] sm:$0x3] %v4542
    // Predicated region
    $region45: #{cnn_forward.3} parent=1 // pred_check
      _
    $region46: #{cnn_forward.3} parent=1 // pred_check_branch
      %4547 = sbr.rel (0) target = $region48
    $region47: #{cnn_forward.3} parent=1 // pred_region
      %4549 = vsyncadd [#allocation5], 0
      %s4551 = sshll.u32 [#allocation4], 4
      %s4552 = int_to_ptr.vmem [resolvable:$true] %s4551
      %s4553 = sshll.u32 %s7, 4
      %s4554 = int_to_ptr.hbm [resolvable:$true] %s4553
      %4556 = dma.vmem_to_hbm [thread:$0]  %s4552, 32, %s4554, [#allocation5]
    $region48: #{cnn_forward.3} parent=1 // pred_fallthru
      _
    // Predicated region
    $region49: #{cnn_forward.3} parent=1 // pred_check
      _
    $region50: #{cnn_forward.3} parent=1 // pred_check_branch
      %4558 = sbr.rel (0) target = $region52
    $region51: #{cnn_forward.3} parent=1 // pred_region
      %4560 = dma.done [#allocation5], 32
    $region52: #{cnn_forward.3} parent=1 // pred_fallthru
      _
    %4561 = vsyncpa [#allocation5], 1
  %4562 = vsyncmov [#allocation3]
  %s4563 = vpop.sfrf %4562
  %p4564 = scmp.eq.s32.totalorder %s4563, 0
  %p4565 = pneg %p4564
  %4567 = shalt.err (%p4565)

</llo_original>
